<compile_context>
chip_gen: v5e
topology: v5e:2x2
jax: 0.10.0
libtpu: 0.0.40
codegen_flags: <defaults>
</compile_context>

<pallas_src>
import jax
import jax.numpy as jnp
import numpy as np
from jax.experimental import pallas as pl
from jax.experimental.pallas import tpu as pltpu

EPS = 1e-5          # nn.BatchNorm2d default eps
NEG_SLOPE = 0.2     # LeakyReLU slope
KS = 4              # conv kernel size
STRIDE = 2

LANE = 128          # TPU lane width (last-dim tiling)
SUBLANE = 8         # f32 sublane tiling


def _round_up(x, m):
    return (x + m - 1) // m * m


def _pick_tile_rows(Ho, Wo, N):
    """Output-row tile height TH (a divisor of Ho).

    TH | Ho keeps every grid step a full tile, so the BatchNorm partial
    statistics need no masking.  Target a few thousand output pixels per tile;
    when N == 1 force at least two row tiles so the 'parallel' grid axes can
    shard across both v7x TensorCores.
    """
    target = max(1, 4096 // max(Wo, 1))
    divisors = [d for d in range(1, Ho + 1) if Ho % d == 0]
    cands = [d for d in divisors if d <= target]
    th = max(cands) if cands else Ho
    if N == 1 and th == Ho:
        smaller = [d for d in divisors if d < Ho]
        if smaller:
            th = max(smaller)
    return th


# ----------------------- pass 1: fused conv (per-tap GEMMs) + BN partial stats ------

def _make_conv_stats_kernel(TH, Wo, Cin, Cp):
    def kernel(x00, x01, x10, x11, w_ref, y_ref, sum_ref, m2_ref):
        """x_ab : (Ho+1, Wo+1, Cin) bf16 parity-phase image (resident per batch elem)
        w_ref  : (KS, KS, Cin, Cp) bf16 weights (resident for the whole grid)
        y_ref  : (TH, Wo, Cp)      bf16 pre-BN conv output tile
        sum_ref, m2_ref : (SUBLANE, Cp) f32 per-tile sum / centered sum-of-squares
        """
        xs = ((x00, x01), (x10, x11))
        r0 = pl.program_id(1) * TH          # output-row offset of this tile
        acc = jnp.zeros((TH * Wo, Cp), jnp.float32)
        for kh in range(KS):
            for kw in range(KS):
                src = xs[kh % 2][kw % 2]
                a = src[pl.ds(r0 + kh // 2, TH), pl.ds(kw // 2, Wo), :]  # (TH,Wo,Cin)
                a = a.reshape(TH * Wo, Cin)
                acc = acc + jnp.dot(a, w_ref[kh, kw],
                                    preferred_element_type=jnp.float32)
        y_ref[...] = acc.reshape(TH, Wo, Cp).astype(y_ref.dtype)

        # BatchNorm partials from the f32 accumulator (before the bf16 downcast):
        # per-tile sum + M2 centered on the tile mean -> Chan combine in XLA,
        # avoiding the E[x^2]-E[x]^2 cancellation.
        cnt = jnp.float32(TH * Wo)
        s = jnp.sum(acc, axis=0, keepdims=True)          # (1, Cp)
        d = acc - s / cnt
        m2 = jnp.sum(d * d, axis=0, keepdims=True)       # (1, Cp)
        sum_ref[...] = jnp.broadcast_to(s, sum_ref.shape)
        m2_ref[...] = jnp.broadcast_to(m2, m2_ref.shape)
    return kernel


# ----------------------- pass 2: BN affine + LeakyReLU ------------------------------

def _make_bn_act_kernel(Cout):
    def kernel(y_ref, scale_ref, shift_ref, o_ref):
        y = y_ref[...].astype(jnp.float32)                     # (TH, Wo, Cp)
        yn = y * scale_ref[...] + shift_ref[...]               # (1, Cp) broadcast
        act = jnp.where(yn > 0, yn, NEG_SLOPE * yn)
        o_ref[...] = act[:, :, :Cout]                          # drop padded channels
    return kernel


@jax.jit
def block_forward(x_nchw, w_oihw, gamma, beta):
    N, Cin, H, W = x_nchw.shape
    Cout = w_oihw.shape[0]
    Ho = (H + 2 - KS) // STRIDE + 1
    Wo = (W + 2 - KS) // STRIDE + 1
    M = N * Ho * Wo
    Cp = _round_up(Cout, LANE)                     # lane-dense channel dim

    TH = _pick_tile_rows(Ho, Wo, N)
    HB = Ho // TH
    G = N * HB                                     # total grid steps
    grid = (N, HB)

    # ---- glue (XLA, ~1x input traffic): NCHW->NHWC bf16, reflect pad, split into
    #      the four (row-parity, col-parity) phases of the stride-2 conv. Pass 1
    #      reads these directly; no im2col patches array is ever materialized.
    x = jnp.transpose(x_nchw, (0, 2, 3, 1)).astype(jnp.bfloat16)
    xp = jnp.pad(x, ((0, 0), (1, 1), (1, 1), (0, 0)), mode="reflect")
    xs = [xp[:, a::2, b::2, :][:, :Ho + 1, :Wo + 1, :]
          for a in range(2) for b in range(2)]                 # 4 x (N, Ho+1, Wo+1, Cin)
    # TODO(synk): for very large spatial first layers with tiny Cin, the Cin-minor
    # layout lane-pads the resident VMEM image; a Cin-packed layout would shrink it.

    # weights (Cout,Cin,kh,kw) -> (kh,kw,Cin,Cout), pad Cout to a lane multiple, bf16
    w = jnp.transpose(w_oihw, (2, 3, 1, 0))
    w = jnp.pad(w, ((0, 0), (0, 0), (0, 0), (0, Cp - Cout))).astype(jnp.bfloat16)

    x_spec = pl.BlockSpec((None, Ho + 1, Wo + 1, Cin), lambda n, h: (n, 0, 0, 0))

    # ---- pass 1: fused conv GEMM + partial BN stats ----------------------------
    gemm_cost = pl.CostEstimate(
        flops=2 * M * (KS * KS * Cin) * Cp + 6 * M * Cp,
        transcendentals=0,
        bytes_accessed=(4 * N * (Ho + 1) * (Wo + 1) * Cin * 2
                        + KS * KS * Cin * Cp * 2
                        + M * Cp * 2
                        + 2 * G * SUBLANE * Cp * 4))
    y, psum, pm2 = pl.pallas_call(
        _make_conv_stats_kernel(TH, Wo, Cin, Cp),
        out_shape=(
            jax.ShapeDtypeStruct((N, Ho, Wo, Cp), jnp.bfloat16),       # pre-BN conv, bf16
            jax.ShapeDtypeStruct((G * SUBLANE, Cp), jnp.float32),      # per-tile sum
            jax.ShapeDtypeStruct((G * SUBLANE, Cp), jnp.float32),      # per-tile centered M2
        ),
        grid=grid,
        in_specs=[x_spec, x_spec, x_spec, x_spec,
                  pl.BlockSpec((KS, KS, Cin, Cp), lambda n, h: (0, 0, 0, 0))],  # weights resident
        out_specs=(
            pl.BlockSpec((None, TH, Wo, Cp), lambda n, h: (n, h, 0, 0)),
            pl.BlockSpec((SUBLANE, Cp), lambda n, h: (n * HB + h, 0)),
            pl.BlockSpec((SUBLANE, Cp), lambda n, h: (n * HB + h, 0)),
        ),
        compiler_params=pltpu.CompilerParams(
            dimension_semantics=("parallel", "parallel")),
        cost_estimate=gemm_cost,
    )(*xs, w)

    # ---- tiny XLA step: Chan-combine the partial stats, fold gamma/beta --------
    cnt_tile = TH * Wo
    S = psum.reshape(G, SUBLANE, Cp)[:, 0, :]                  # (G, Cp)
    M2i = pm2.reshape(G, SUBLANE, Cp)[:, 0, :]
    total_sum = jnp.sum(S, axis=0)
    mean = total_sum / M
    m_i = S / cnt_tile
    m2_between = jnp.sum(cnt_tile * (m_i - mean[None, :]) ** 2, axis=0)
    var = (jnp.sum(M2i, axis=0) + m2_between) / M              # biased, as in PyTorch BN training
    gamma_p = jnp.pad(gamma.astype(jnp.float32), (0, Cp - Cout))
    beta_p = jnp.pad(beta.astype(jnp.float32), (0, Cp - Cout))
    inv_std = jax.lax.rsqrt(var + EPS)
    scale = (gamma_p * inv_std).reshape(1, Cp)
    shift = (beta_p - mean * gamma_p * inv_std).reshape(1, Cp)

    # ---- pass 2: fully parallel normalize + LeakyReLU, final Cout channels -----
    norm_cost = pl.CostEstimate(
        flops=4 * M * Cp, transcendentals=0,
        bytes_accessed=M * Cp * 2 + M * Cout * 4 + 2 * Cp * 4)
    out_nhwc = pl.pallas_call(
        _make_bn_act_kernel(Cout),
        out_shape=jax.ShapeDtypeStruct((N, Ho, Wo, Cout), jnp.float32),
        grid=grid,
        in_specs=[
            pl.BlockSpec((None, TH, Wo, Cp), lambda n, h: (n, h, 0, 0)),
            pl.BlockSpec((1, Cp), lambda n, h: (0, 0)),        # scale resident
            pl.BlockSpec((1, Cp), lambda n, h: (0, 0)),        # shift resident
        ],
        out_specs=pl.BlockSpec((None, TH, Wo, Cout), lambda n, h: (n, h, 0, 0)),
        compiler_params=pltpu.CompilerParams(
            dimension_semantics=("parallel", "parallel")),
        cost_estimate=norm_cost,
    )(y, scale, shift)

    # TODO(synk): the remaining NHWC->NCHW transpose could be fused into pass 2
    # with an in-kernel tile transpose to save one more HBM round trip.
    return jnp.transpose(out_nhwc, (0, 3, 1, 2))


def block_reference(x_nchw, w_oihw, gamma, beta):
    """Pure-JAX reference of the PyTorch forward (training-mode BatchNorm).

    Conv operands are cast to bf16 (f32 accumulation) and the conv intermediate
    is rounded to bf16, mirroring the kernel's bf16 MXU path and bf16 HBM
    intermediate; vs a pure-f32 PyTorch forward the difference is O(1e-3) rel.
    """
    xp = jnp.pad(x_nchw, ((0, 0), (0, 0), (1, 1), (1, 1)), mode="reflect")
    y = jax.lax.conv_general_dilated(
        xp.astype(jnp.bfloat16), w_oihw.astype(jnp.bfloat16),
        window_strides=(STRIDE, STRIDE), padding="VALID",
        dimension_numbers=("NCHW", "OIHW", "NCHW"),
        preferred_element_type=jnp.float32)
    y = y.astype(jnp.bfloat16).astype(jnp.float32)   # mirror the kernel's bf16 intermediate
    mean = jnp.mean(y, axis=(0, 2, 3), keepdims=True)
    var = jnp.mean((y - mean) ** 2, axis=(0, 2, 3), keepdims=True)
    yn = (y - mean) * jax.lax.rsqrt(var + EPS) * gamma.reshape(1, -1, 1, 1) \
         + beta.reshape(1, -1, 1, 1)
    return jnp.where(yn > 0, yn, NEG_SLOPE * yn)


if __name__ == "__main__":
    # small shapes consistent with the module
    N, Cin, Cout, H, W = 2, 4, 8, 16, 16

    key = jax.random.PRNGKey(0)
    kx, kw, kg, kb = jax.random.split(key, 4)

    x = jax.random.normal(kx, (N, Cin, H, W), dtype=jnp.float32)
    # deterministic synthetic parameters (shapes from nn.Conv2d / nn.BatchNorm2d)
    w = 0.1 * jax.random.normal(kw, (Cout, Cin, KS, KS), dtype=jnp.float32)
    gamma = 1.0 + 0.1 * jax.random.normal(kg, (Cout,), dtype=jnp.float32)
    beta = 0.05 * jax.random.normal(kb, (Cout,), dtype=jnp.float32)
    # TODO(synk): BatchNorm running_mean/running_var side-effect updates are not
    # reproduced (they do not affect the forward output in training mode).

    out = jax.block_until_ready(block_forward(x, w, gamma, beta))
    ref = jax.block_until_ready(block_reference(x, w, gamma, beta))

    assert out.shape == (N, Cout, H // 2, W // 2), out.shape
    np.testing.assert_allclose(np.asarray(out), np.asarray(ref), rtol=5e-3, atol=5e-3)
    print("KERNEL_OK")
</pallas_src>

<mosaic_0001>
module attributes {stable_mosaic.version = 11 : i64} {
  func.func @kernel(%arg0: i32, %arg1: i32, %arg2: memref<1x9x9x4xbf16, #tpu.memory_space<vmem>>, %arg3: memref<1x9x9x4xbf16, #tpu.memory_space<vmem>>, %arg4: memref<1x9x9x4xbf16, #tpu.memory_space<vmem>>, %arg5: memref<1x9x9x4xbf16, #tpu.memory_space<vmem>>, %arg6: memref<4x4x4x128xbf16, #tpu.memory_space<vmem>>, %arg7: memref<1x8x8x128xbf16, #tpu.memory_space<vmem>>, %arg8: memref<8x128xf32, #tpu.memory_space<vmem>>, %arg9: memref<8x128xf32, #tpu.memory_space<vmem>>) attributes {dimension_semantics = [#tpu.dimension_semantics<parallel>, #tpu.dimension_semantics<parallel>], iteration_bounds = array<i64: 2, 1>, scalar_prefetch = 0 : i64, scratch_operands = 0 : i64, tpu.core_type = #tpu.core_type<tc>, window_params = [{transform_indices = @transform_0, window_bounds = array<i64: 1, 9, 9, 4>}, {transform_indices = @transform_1, window_bounds = array<i64: 1, 9, 9, 4>}, {transform_indices = @transform_2, window_bounds = array<i64: 1, 9, 9, 4>}, {transform_indices = @transform_3, window_bounds = array<i64: 1, 9, 9, 4>}, {pipeline_mode = #tpu.pipeline_mode<synchronous>, transform_indices = @transform_4, window_bounds = array<i64: 4, 4, 4, 128>}, {transform_indices = @transform_5, window_bounds = array<i64: 1, 8, 8, 128>}, {transform_indices = @transform_6, window_bounds = array<i64: 8, 128>}, {transform_indices = @transform_7, window_bounds = array<i64: 8, 128>}]} {
    %c8_i32 = arith.constant 8 : i32
    %0 = arith.muli %arg1, %c8_i32 : i32
    %cst = arith.constant 0.000000e+00 : f32
    %1 = vector.broadcast %cst : f32 to vector<64x128xf32>
    %c0_i32 = arith.constant 0 : i32
    %2 = arith.addi %0, %c0_i32 : i32
    %c0 = arith.constant 0 : index
    %3 = arith.index_cast %2 : i32 to index
    %c0_0 = arith.constant 0 : index
    %c0_1 = arith.constant 0 : index
    %4 = vector.load %arg2[%c0, %3, %c0_0, %c0_1] : memref<1x9x9x4xbf16, #tpu.memory_space<vmem>>, vector<1x8x8x4xbf16>
    %5 = vector.shape_cast %4 : vector<1x8x8x4xbf16> to vector<8x8x4xbf16>
    %6 = vector.shape_cast %5 : vector<8x8x4xbf16> to vector<64x4xbf16>
    %c0_2 = arith.constant 0 : index
    %c0_3 = arith.constant 0 : index
    %c0_4 = arith.constant 0 : index
    %c0_5 = arith.constant 0 : index
    %7 = vector.load %arg6[%c0_2, %c0_3, %c0_4, %c0_5] : memref<4x4x4x128xbf16, #tpu.memory_space<vmem>>, vector<1x1x4x128xbf16>
    %8 = vector.shape_cast %7 : vector<1x1x4x128xbf16> to vector<4x128xbf16>
    %cst_6 = arith.constant dense<0.000000e+00> : vector<64x128xf32>
    %9 = tpu.matmul %6, %8, %cst_6 {dimension_numbers = #tpu.dot_dimension_numbers<[1], [0], [0], [1], [0, 0, 1, 1], [], []>} : vector<64x4xbf16>, vector<4x128xbf16>, vector<64x128xf32> -> vector<64x128xf32>
    %10 = arith.addf %1, %9 : vector<64x128xf32>
    %c0_i32_7 = arith.constant 0 : i32
    %11 = arith.addi %0, %c0_i32_7 : i32
    %c0_8 = arith.constant 0 : index
    %12 = arith.index_cast %11 : i32 to index
    %c0_9 = arith.constant 0 : index
    %c0_10 = arith.constant 0 : index
    %13 = vector.load %arg3[%c0_8, %12, %c0_9, %c0_10] : memref<1x9x9x4xbf16, #tpu.memory_space<vmem>>, vector<1x8x8x4xbf16>
    %14 = vector.shape_cast %13 : vector<1x8x8x4xbf16> to vector<8x8x4xbf16>
    %15 = vector.shape_cast %14 : vector<8x8x4xbf16> to vector<64x4xbf16>
    %c0_11 = arith.constant 0 : index
    %c1 = arith.constant 1 : index
    %c0_12 = arith.constant 0 : index
    %c0_13 = arith.constant 0 : index
    %16 = vector.load %arg6[%c0_11, %c1, %c0_12, %c0_13] : memref<4x4x4x128xbf16, #tpu.memory_space<vmem>>, vector<1x1x4x128xbf16>
    %17 = vector.shape_cast %16 : vector<1x1x4x128xbf16> to vector<4x128xbf16>
    %cst_14 = arith.constant dense<0.000000e+00> : vector<64x128xf32>
    %18 = tpu.matmul %15, %17, %cst_14 {dimension_numbers = #tpu.dot_dimension_numbers<[1], [0], [0], [1], [0, 0, 1, 1], [], []>} : vector<64x4xbf16>, vector<4x128xbf16>, vector<64x128xf32> -> vector<64x128xf32>
    %19 = arith.addf %10, %18 : vector<64x128xf32>
    %c0_i32_15 = arith.constant 0 : i32
    %20 = arith.addi %0, %c0_i32_15 : i32
    %c0_16 = arith.constant 0 : index
    %21 = arith.index_cast %20 : i32 to index
    %c1_17 = arith.constant 1 : index
    %c0_18 = arith.constant 0 : index
    %22 = vector.load %arg2[%c0_16, %21, %c1_17, %c0_18] : memref<1x9x9x4xbf16, #tpu.memory_space<vmem>>, vector<1x8x8x4xbf16>
    %23 = vector.shape_cast %22 : vector<1x8x8x4xbf16> to vector<8x8x4xbf16>
    %24 = vector.shape_cast %23 : vector<8x8x4xbf16> to vector<64x4xbf16>
    %c0_19 = arith.constant 0 : index
    %c2 = arith.constant 2 : index
    %c0_20 = arith.constant 0 : index
    %c0_21 = arith.constant 0 : index
    %25 = vector.load %arg6[%c0_19, %c2, %c0_20, %c0_21] : memref<4x4x4x128xbf16, #tpu.memory_space<vmem>>, vector<1x1x4x128xbf16>
    %26 = vector.shape_cast %25 : vector<1x1x4x128xbf16> to vector<4x128xbf16>
    %cst_22 = arith.constant dense<0.000000e+00> : vector<64x128xf32>
    %27 = tpu.matmul %24, %26, %cst_22 {dimension_numbers = #tpu.dot_dimension_numbers<[1], [0], [0], [1], [0, 0, 1, 1], [], []>} : vector<64x4xbf16>, vector<4x128xbf16>, vector<64x128xf32> -> vector<64x128xf32>
    %28 = arith.addf %19, %27 : vector<64x128xf32>
    %c0_i32_23 = arith.constant 0 : i32
    %29 = arith.addi %0, %c0_i32_23 : i32
    %c0_24 = arith.constant 0 : index
    %30 = arith.index_cast %29 : i32 to index
    %c1_25 = arith.constant 1 : index
    %c0_26 = arith.constant 0 : index
    %31 = vector.load %arg3[%c0_24, %30, %c1_25, %c0_26] : memref<1x9x9x4xbf16, #tpu.memory_space<vmem>>, vector<1x8x8x4xbf16>
    %32 = vector.shape_cast %31 : vector<1x8x8x4xbf16> to vector<8x8x4xbf16>
    %33 = vector.shape_cast %32 : vector<8x8x4xbf16> to vector<64x4xbf16>
    %c0_27 = arith.constant 0 : index
    %c3 = arith.constant 3 : index
    %c0_28 = arith.constant 0 : index
    %c0_29 = arith.constant 0 : index
    %34 = vector.load %arg6[%c0_27, %c3, %c0_28, %c0_29] : memref<4x4x4x128xbf16, #tpu.memory_space<vmem>>, vector<1x1x4x128xbf16>
    %35 = vector.shape_cast %34 : vector<1x1x4x128xbf16> to vector<4x128xbf16>
    %cst_30 = arith.constant dense<0.000000e+00> : vector<64x128xf32>
    %36 = tpu.matmul %33, %35, %cst_30 {dimension_numbers = #tpu.dot_dimension_numbers<[1], [0], [0], [1], [0, 0, 1, 1], [], []>} : vector<64x4xbf16>, vector<4x128xbf16>, vector<64x128xf32> -> vector<64x128xf32>
    %37 = arith.addf %28, %36 : vector<64x128xf32>
    %c0_i32_31 = arith.constant 0 : i32
    %38 = arith.addi %0, %c0_i32_31 : i32
    %c0_32 = arith.constant 0 : index
    %39 = arith.index_cast %38 : i32 to index
    %c0_33 = arith.constant 0 : index
    %c0_34 = arith.constant 0 : index
    %40 = vector.load %arg4[%c0_32, %39, %c0_33, %c0_34] : memref<1x9x9x4xbf16, #tpu.memory_space<vmem>>, vector<1x8x8x4xbf16>
    %41 = vector.shape_cast %40 : vector<1x8x8x4xbf16> to vector<8x8x4xbf16>
    %42 = vector.shape_cast %41 : vector<8x8x4xbf16> to vector<64x4xbf16>
    %c1_35 = arith.constant 1 : index
    %c0_36 = arith.constant 0 : index
    %c0_37 = arith.constant 0 : index
    %c0_38 = arith.constant 0 : index
    %43 = vector.load %arg6[%c1_35, %c0_36, %c0_37, %c0_38] : memref<4x4x4x128xbf16, #tpu.memory_space<vmem>>, vector<1x1x4x128xbf16>
    %44 = vector.shape_cast %43 : vector<1x1x4x128xbf16> to vector<4x128xbf16>
    %cst_39 = arith.constant dense<0.000000e+00> : vector<64x128xf32>
    %45 = tpu.matmul %42, %44, %cst_39 {dimension_numbers = #tpu.dot_dimension_numbers<[1], [0], [0], [1], [0, 0, 1, 1], [], []>} : vector<64x4xbf16>, vector<4x128xbf16>, vector<64x128xf32> -> vector<64x128xf32>
    %46 = arith.addf %37, %45 : vector<64x128xf32>
    %c0_i32_40 = arith.constant 0 : i32
    %47 = arith.addi %0, %c0_i32_40 : i32
    %c0_41 = arith.constant 0 : index
    %48 = arith.index_cast %47 : i32 to index
    %c0_42 = arith.constant 0 : index
    %c0_43 = arith.constant 0 : index
    %49 = vector.load %arg5[%c0_41, %48, %c0_42, %c0_43] : memref<1x9x9x4xbf16, #tpu.memory_space<vmem>>, vector<1x8x8x4xbf16>
    %50 = vector.shape_cast %49 : vector<1x8x8x4xbf16> to vector<8x8x4xbf16>
    %51 = vector.shape_cast %50 : vector<8x8x4xbf16> to vector<64x4xbf16>
    %c1_44 = arith.constant 1 : index
    %c1_45 = arith.constant 1 : index
    %c0_46 = arith.constant 0 : index
    %c0_47 = arith.constant 0 : index
    %52 = vector.load %arg6[%c1_44, %c1_45, %c0_46, %c0_47] : memref<4x4x4x128xbf16, #tpu.memory_space<vmem>>, vector<1x1x4x128xbf16>
    %53 = vector.shape_cast %52 : vector<1x1x4x128xbf16> to vector<4x128xbf16>
    %cst_48 = arith.constant dense<0.000000e+00> : vector<64x128xf32>
    %54 = tpu.matmul %51, %53, %cst_48 {dimension_numbers = #tpu.dot_dimension_numbers<[1], [0], [0], [1], [0, 0, 1, 1], [], []>} : vector<64x4xbf16>, vector<4x128xbf16>, vector<64x128xf32> -> vector<64x128xf32>
    %55 = arith.addf %46, %54 : vector<64x128xf32>
    %c0_i32_49 = arith.constant 0 : i32
    %56 = arith.addi %0, %c0_i32_49 : i32
    %c0_50 = arith.constant 0 : index
    %57 = arith.index_cast %56 : i32 to index
    %c1_51 = arith.constant 1 : index
    %c0_52 = arith.constant 0 : index
    %58 = vector.load %arg4[%c0_50, %57, %c1_51, %c0_52] : memref<1x9x9x4xbf16, #tpu.memory_space<vmem>>, vector<1x8x8x4xbf16>
    %59 = vector.shape_cast %58 : vector<1x8x8x4xbf16> to vector<8x8x4xbf16>
    %60 = vector.shape_cast %59 : vector<8x8x4xbf16> to vector<64x4xbf16>
    %c1_53 = arith.constant 1 : index
    %c2_54 = arith.constant 2 : index
    %c0_55 = arith.constant 0 : index
    %c0_56 = arith.constant 0 : index
    %61 = vector.load %arg6[%c1_53, %c2_54, %c0_55, %c0_56] : memref<4x4x4x128xbf16, #tpu.memory_space<vmem>>, vector<1x1x4x128xbf16>
    %62 = vector.shape_cast %61 : vector<1x1x4x128xbf16> to vector<4x128xbf16>
    %cst_57 = arith.constant dense<0.000000e+00> : vector<64x128xf32>
    %63 = tpu.matmul %60, %62, %cst_57 {dimension_numbers = #tpu.dot_dimension_numbers<[1], [0], [0], [1], [0, 0, 1, 1], [], []>} : vector<64x4xbf16>, vector<4x128xbf16>, vector<64x128xf32> -> vector<64x128xf32>
    %64 = arith.addf %55, %63 : vector<64x128xf32>
    %c0_i32_58 = arith.constant 0 : i32
    %65 = arith.addi %0, %c0_i32_58 : i32
    %c0_59 = arith.constant 0 : index
    %66 = arith.index_cast %65 : i32 to index
    %c1_60 = arith.constant 1 : index
    %c0_61 = arith.constant 0 : index
    %67 = vector.load %arg5[%c0_59, %66, %c1_60, %c0_61] : memref<1x9x9x4xbf16, #tpu.memory_space<vmem>>, vector<1x8x8x4xbf16>
    %68 = vector.shape_cast %67 : vector<1x8x8x4xbf16> to vector<8x8x4xbf16>
    %69 = vector.shape_cast %68 : vector<8x8x4xbf16> to vector<64x4xbf16>
    %c1_62 = arith.constant 1 : index
    %c3_63 = arith.constant 3 : index
    %c0_64 = arith.constant 0 : index
    %c0_65 = arith.constant 0 : index
    %70 = vector.load %arg6[%c1_62, %c3_63, %c0_64, %c0_65] : memref<4x4x4x128xbf16, #tpu.memory_space<vmem>>, vector<1x1x4x128xbf16>
    %71 = vector.shape_cast %70 : vector<1x1x4x128xbf16> to vector<4x128xbf16>
    %cst_66 = arith.constant dense<0.000000e+00> : vector<64x128xf32>
    %72 = tpu.matmul %69, %71, %cst_66 {dimension_numbers = #tpu.dot_dimension_numbers<[1], [0], [0], [1], [0, 0, 1, 1], [], []>} : vector<64x4xbf16>, vector<4x128xbf16>, vector<64x128xf32> -> vector<64x128xf32>
    %73 = arith.addf %64, %72 : vector<64x128xf32>
    %c1_i32 = arith.constant 1 : i32
    %74 = arith.addi %0, %c1_i32 : i32
    %c0_67 = arith.constant 0 : index
    %75 = arith.index_cast %74 : i32 to index
    %c0_68 = arith.constant 0 : index
    %c0_69 = arith.constant 0 : index
    %76 = vector.load %arg2[%c0_67, %75, %c0_68, %c0_69] : memref<1x9x9x4xbf16, #tpu.memory_space<vmem>>, vector<1x8x8x4xbf16>
    %77 = vector.shape_cast %76 : vector<1x8x8x4xbf16> to vector<8x8x4xbf16>
    %78 = vector.shape_cast %77 : vector<8x8x4xbf16> to vector<64x4xbf16>
    %c2_70 = arith.constant 2 : index
    %c0_71 = arith.constant 0 : index
    %c0_72 = arith.constant 0 : index
    %c0_73 = arith.constant 0 : index
    %79 = vector.load %arg6[%c2_70, %c0_71, %c0_72, %c0_73] : memref<4x4x4x128xbf16, #tpu.memory_space<vmem>>, vector<1x1x4x128xbf16>
    %80 = vector.shape_cast %79 : vector<1x1x4x128xbf16> to vector<4x128xbf16>
    %cst_74 = arith.constant dense<0.000000e+00> : vector<64x128xf32>
    %81 = tpu.matmul %78, %80, %cst_74 {dimension_numbers = #tpu.dot_dimension_numbers<[1], [0], [0], [1], [0, 0, 1, 1], [], []>} : vector<64x4xbf16>, vector<4x128xbf16>, vector<64x128xf32> -> vector<64x128xf32>
    %82 = arith.addf %73, %81 : vector<64x128xf32>
    %c1_i32_75 = arith.constant 1 : i32
    %83 = arith.addi %0, %c1_i32_75 : i32
    %c0_76 = arith.constant 0 : index
    %84 = arith.index_cast %83 : i32 to index
    %c0_77 = arith.constant 0 : index
    %c0_78 = arith.constant 0 : index
    %85 = vector.load %arg3[%c0_76, %84, %c0_77, %c0_78] : memref<1x9x9x4xbf16, #tpu.memory_space<vmem>>, vector<1x8x8x4xbf16>
    %86 = vector.shape_cast %85 : vector<1x8x8x4xbf16> to vector<8x8x4xbf16>
    %87 = vector.shape_cast %86 : vector<8x8x4xbf16> to vector<64x4xbf16>
    %c2_79 = arith.constant 2 : index
    %c1_80 = arith.constant 1 : index
    %c0_81 = arith.constant 0 : index
    %c0_82 = arith.constant 0 : index
    %88 = vector.load %arg6[%c2_79, %c1_80, %c0_81, %c0_82] : memref<4x4x4x128xbf16, #tpu.memory_space<vmem>>, vector<1x1x4x128xbf16>
    %89 = vector.shape_cast %88 : vector<1x1x4x128xbf16> to vector<4x128xbf16>
    %cst_83 = arith.constant dense<0.000000e+00> : vector<64x128xf32>
    %90 = tpu.matmul %87, %89, %cst_83 {dimension_numbers = #tpu.dot_dimension_numbers<[1], [0], [0], [1], [0, 0, 1, 1], [], []>} : vector<64x4xbf16>, vector<4x128xbf16>, vector<64x128xf32> -> vector<64x128xf32>
    %91 = arith.addf %82, %90 : vector<64x128xf32>
    %c1_i32_84 = arith.constant 1 : i32
    %92 = arith.addi %0, %c1_i32_84 : i32
    %c0_85 = arith.constant 0 : index
    %93 = arith.index_cast %92 : i32 to index
    %c1_86 = arith.constant 1 : index
    %c0_87 = arith.constant 0 : index
    %94 = vector.load %arg2[%c0_85, %93, %c1_86, %c0_87] : memref<1x9x9x4xbf16, #tpu.memory_space<vmem>>, vector<1x8x8x4xbf16>
    %95 = vector.shape_cast %94 : vector<1x8x8x4xbf16> to vector<8x8x4xbf16>
    %96 = vector.shape_cast %95 : vector<8x8x4xbf16> to vector<64x4xbf16>
    %c2_88 = arith.constant 2 : index
    %c2_89 = arith.constant 2 : index
    %c0_90 = arith.constant 0 : index
    %c0_91 = arith.constant 0 : index
    %97 = vector.load %arg6[%c2_88, %c2_89, %c0_90, %c0_91] : memref<4x4x4x128xbf16, #tpu.memory_space<vmem>>, vector<1x1x4x128xbf16>
    %98 = vector.shape_cast %97 : vector<1x1x4x128xbf16> to vector<4x128xbf16>
    %cst_92 = arith.constant dense<0.000000e+00> : vector<64x128xf32>
    %99 = tpu.matmul %96, %98, %cst_92 {dimension_numbers = #tpu.dot_dimension_numbers<[1], [0], [0], [1], [0, 0, 1, 1], [], []>} : vector<64x4xbf16>, vector<4x128xbf16>, vector<64x128xf32> -> vector<64x128xf32>
    %100 = arith.addf %91, %99 : vector<64x128xf32>
    %c1_i32_93 = arith.constant 1 : i32
    %101 = arith.addi %0, %c1_i32_93 : i32
    %c0_94 = arith.constant 0 : index
    %102 = arith.index_cast %101 : i32 to index
    %c1_95 = arith.constant 1 : index
    %c0_96 = arith.constant 0 : index
    %103 = vector.load %arg3[%c0_94, %102, %c1_95, %c0_96] : memref<1x9x9x4xbf16, #tpu.memory_space<vmem>>, vector<1x8x8x4xbf16>
    %104 = vector.shape_cast %103 : vector<1x8x8x4xbf16> to vector<8x8x4xbf16>
    %105 = vector.shape_cast %104 : vector<8x8x4xbf16> to vector<64x4xbf16>
    %c2_97 = arith.constant 2 : index
    %c3_98 = arith.constant 3 : index
    %c0_99 = arith.constant 0 : index
    %c0_100 = arith.constant 0 : index
    %106 = vector.load %arg6[%c2_97, %c3_98, %c0_99, %c0_100] : memref<4x4x4x128xbf16, #tpu.memory_space<vmem>>, vector<1x1x4x128xbf16>
    %107 = vector.shape_cast %106 : vector<1x1x4x128xbf16> to vector<4x128xbf16>
    %cst_101 = arith.constant dense<0.000000e+00> : vector<64x128xf32>
    %108 = tpu.matmul %105, %107, %cst_101 {dimension_numbers = #tpu.dot_dimension_numbers<[1], [0], [0], [1], [0, 0, 1, 1], [], []>} : vector<64x4xbf16>, vector<4x128xbf16>, vector<64x128xf32> -> vector<64x128xf32>
    %109 = arith.addf %100, %108 : vector<64x128xf32>
    %c1_i32_102 = arith.constant 1 : i32
    %110 = arith.addi %0, %c1_i32_102 : i32
    %c0_103 = arith.constant 0 : index
    %111 = arith.index_cast %110 : i32 to index
    %c0_104 = arith.constant 0 : index
    %c0_105 = arith.constant 0 : index
    %112 = vector.load %arg4[%c0_103, %111, %c0_104, %c0_105] : memref<1x9x9x4xbf16, #tpu.memory_space<vmem>>, vector<1x8x8x4xbf16>
    %113 = vector.shape_cast %112 : vector<1x8x8x4xbf16> to vector<8x8x4xbf16>
    %114 = vector.shape_cast %113 : vector<8x8x4xbf16> to vector<64x4xbf16>
    %c3_106 = arith.constant 3 : index
    %c0_107 = arith.constant 0 : index
    %c0_108 = arith.constant 0 : index
    %c0_109 = arith.constant 0 : index
    %115 = vector.load %arg6[%c3_106, %c0_107, %c0_108, %c0_109] : memref<4x4x4x128xbf16, #tpu.memory_space<vmem>>, vector<1x1x4x128xbf16>
    %116 = vector.shape_cast %115 : vector<1x1x4x128xbf16> to vector<4x128xbf16>
    %cst_110 = arith.constant dense<0.000000e+00> : vector<64x128xf32>
    %117 = tpu.matmul %114, %116, %cst_110 {dimension_numbers = #tpu.dot_dimension_numbers<[1], [0], [0], [1], [0, 0, 1, 1], [], []>} : vector<64x4xbf16>, vector<4x128xbf16>, vector<64x128xf32> -> vector<64x128xf32>
    %118 = arith.addf %109, %117 : vector<64x128xf32>
    %c1_i32_111 = arith.constant 1 : i32
    %119 = arith.addi %0, %c1_i32_111 : i32
    %c0_112 = arith.constant 0 : index
    %120 = arith.index_cast %119 : i32 to index
    %c0_113 = arith.constant 0 : index
    %c0_114 = arith.constant 0 : index
    %121 = vector.load %arg5[%c0_112, %120, %c0_113, %c0_114] : memref<1x9x9x4xbf16, #tpu.memory_space<vmem>>, vector<1x8x8x4xbf16>
    %122 = vector.shape_cast %121 : vector<1x8x8x4xbf16> to vector<8x8x4xbf16>
    %123 = vector.shape_cast %122 : vector<8x8x4xbf16> to vector<64x4xbf16>
    %c3_115 = arith.constant 3 : index
    %c1_116 = arith.constant 1 : index
    %c0_117 = arith.constant 0 : index
    %c0_118 = arith.constant 0 : index
    %124 = vector.load %arg6[%c3_115, %c1_116, %c0_117, %c0_118] : memref<4x4x4x128xbf16, #tpu.memory_space<vmem>>, vector<1x1x4x128xbf16>
    %125 = vector.shape_cast %124 : vector<1x1x4x128xbf16> to vector<4x128xbf16>
    %cst_119 = arith.constant dense<0.000000e+00> : vector<64x128xf32>
    %126 = tpu.matmul %123, %125, %cst_119 {dimension_numbers = #tpu.dot_dimension_numbers<[1], [0], [0], [1], [0, 0, 1, 1], [], []>} : vector<64x4xbf16>, vector<4x128xbf16>, vector<64x128xf32> -> vector<64x128xf32>
    %127 = arith.addf %118, %126 : vector<64x128xf32>
    %c1_i32_120 = arith.constant 1 : i32
    %128 = arith.addi %0, %c1_i32_120 : i32
    %c0_121 = arith.constant 0 : index
    %129 = arith.index_cast %128 : i32 to index
    %c1_122 = arith.constant 1 : index
    %c0_123 = arith.constant 0 : index
    %130 = vector.load %arg4[%c0_121, %129, %c1_122, %c0_123] : memref<1x9x9x4xbf16, #tpu.memory_space<vmem>>, vector<1x8x8x4xbf16>
    %131 = vector.shape_cast %130 : vector<1x8x8x4xbf16> to vector<8x8x4xbf16>
    %132 = vector.shape_cast %131 : vector<8x8x4xbf16> to vector<64x4xbf16>
    %c3_124 = arith.constant 3 : index
    %c2_125 = arith.constant 2 : index
    %c0_126 = arith.constant 0 : index
    %c0_127 = arith.constant 0 : index
    %133 = vector.load %arg6[%c3_124, %c2_125, %c0_126, %c0_127] : memref<4x4x4x128xbf16, #tpu.memory_space<vmem>>, vector<1x1x4x128xbf16>
    %134 = vector.shape_cast %133 : vector<1x1x4x128xbf16> to vector<4x128xbf16>
    %cst_128 = arith.constant dense<0.000000e+00> : vector<64x128xf32>
    %135 = tpu.matmul %132, %134, %cst_128 {dimension_numbers = #tpu.dot_dimension_numbers<[1], [0], [0], [1], [0, 0, 1, 1], [], []>} : vector<64x4xbf16>, vector<4x128xbf16>, vector<64x128xf32> -> vector<64x128xf32>
    %136 = arith.addf %127, %135 : vector<64x128xf32>
    %c1_i32_129 = arith.constant 1 : i32
    %137 = arith.addi %0, %c1_i32_129 : i32
    %c0_130 = arith.constant 0 : index
    %138 = arith.index_cast %137 : i32 to index
    %c1_131 = arith.constant 1 : index
    %c0_132 = arith.constant 0 : index
    %139 = vector.load %arg5[%c0_130, %138, %c1_131, %c0_132] : memref<1x9x9x4xbf16, #tpu.memory_space<vmem>>, vector<1x8x8x4xbf16>
    %140 = vector.shape_cast %139 : vector<1x8x8x4xbf16> to vector<8x8x4xbf16>
    %141 = vector.shape_cast %140 : vector<8x8x4xbf16> to vector<64x4xbf16>
    %c3_133 = arith.constant 3 : index
    %c3_134 = arith.constant 3 : index
    %c0_135 = arith.constant 0 : index
    %c0_136 = arith.constant 0 : index
    %142 = vector.load %arg6[%c3_133, %c3_134, %c0_135, %c0_136] : memref<4x4x4x128xbf16, #tpu.memory_space<vmem>>, vector<1x1x4x128xbf16>
    %143 = vector.shape_cast %142 : vector<1x1x4x128xbf16> to vector<4x128xbf16>
    %cst_137 = arith.constant dense<0.000000e+00> : vector<64x128xf32>
    %144 = tpu.matmul %141, %143, %cst_137 {dimension_numbers = #tpu.dot_dimension_numbers<[1], [0], [0], [1], [0, 0, 1, 1], [], []>} : vector<64x4xbf16>, vector<4x128xbf16>, vector<64x128xf32> -> vector<64x128xf32>
    %145 = arith.addf %136, %144 : vector<64x128xf32>
    %146 = vector.shape_cast %145 : vector<64x128xf32> to vector<8x8x128xf32>
    %147 = arith.truncf %146 : vector<8x8x128xf32> to vector<8x8x128xbf16>
    %c0_138 = arith.constant 0 : index
    %c0_139 = arith.constant 0 : index
    %c0_140 = arith.constant 0 : index
    %c0_141 = arith.constant 0 : index
    %148 = vector.load %arg7[%c0_138, %c0_139, %c0_140, %c0_141] : memref<1x8x8x128xbf16, #tpu.memory_space<vmem>>, vector<1x8x8x128xbf16>
    %149 = vector.shape_cast %148 : vector<1x8x8x128xbf16> to vector<8x8x128xbf16>
    %150 = vector.shape_cast %147 : vector<8x8x128xbf16> to vector<1x8x8x128xbf16>
    tpu.vector_store %arg7[%c0_138, %c0_139, %c0_140, %c0_141], %150 {strides = array<i32>} : memref<1x8x8x128xbf16, #tpu.memory_space<vmem>>, vector<1x8x8x128xbf16>,
    %cst_142 = arith.constant dense<0.000000e+00> : vector<128xf32>
    %151 = vector.multi_reduction <add>, %145, %cst_142 [0] : vector<64x128xf32> to vector<128xf32>
    %152 = vector.shape_cast %151 : vector<128xf32> to vector<1x128xf32>
    %cst_143 = arith.constant 6.400000e+01 : f32
    %153 = vector.broadcast %cst_143 : f32 to vector<1x128xf32>
    %154 = arith.divf %152, %153 : vector<1x128xf32>
    %155 = vector.broadcast %154 : vector<1x128xf32> to vector<64x128xf32>
    %156 = arith.subf %145, %155 : vector<64x128xf32>
    %157 = arith.mulf %156, %156 : vector<64x128xf32>
    %cst_144 = arith.constant dense<0.000000e+00> : vector<128xf32>
    %158 = vector.multi_reduction <add>, %157, %cst_144 [0] : vector<64x128xf32> to vector<128xf32>
    %159 = vector.shape_cast %158 : vector<128xf32> to vector<1x128xf32>
    %160 = vector.shape_cast %152 : vector<1x128xf32> to vector<1x128xf32>
    %161 = vector.broadcast %160 : vector<1x128xf32> to vector<8x128xf32>
    %c0_145 = arith.constant 0 : index
    %c0_146 = arith.constant 0 : index
    %162 = vector.load %arg8[%c0_145, %c0_146] : memref<8x128xf32, #tpu.memory_space<vmem>>, vector<8x128xf32>
    tpu.vector_store %arg8[%c0_145, %c0_146], %161 {strides = array<i32>} : memref<8x128xf32, #tpu.memory_space<vmem>>, vector<8x128xf32>,
    %163 = vector.shape_cast %159 : vector<1x128xf32> to vector<1x128xf32>
    %164 = vector.broadcast %163 : vector<1x128xf32> to vector<8x128xf32>
    %c0_147 = arith.constant 0 : index
    %c0_148 = arith.constant 0 : index
    %165 = vector.load %arg9[%c0_147, %c0_148] : memref<8x128xf32, #tpu.memory_space<vmem>>, vector<8x128xf32>
    tpu.vector_store %arg9[%c0_147, %c0_148], %164 {strides = array<i32>} : memref<8x128xf32, #tpu.memory_space<vmem>>, vector<8x128xf32>,
    return
  }
  func.func @transform_0(%arg0: i32, %arg1: i32) -> (i32, i32, i32, i32) {
    %c0_i32 = arith.constant 0 : i32
    %c0_i32_0 = arith.constant 0 : i32
    %c0_i32_1 = arith.constant 0 : i32
    %c0_i32_2 = arith.constant 0 : i32
    return %arg0, %c0_i32, %c0_i32_0, %c0_i32_1 : i32, i32, i32, i32
  }
  func.func @transform_1(%arg0: i32, %arg1: i32) -> (i32, i32, i32, i32) {
    %c0_i32 = arith.constant 0 : i32
    %c0_i32_0 = arith.constant 0 : i32
    %c0_i32_1 = arith.constant 0 : i32
    %c0_i32_2 = arith.constant 0 : i32
    return %arg0, %c0_i32, %c0_i32_0, %c0_i32_1 : i32, i32, i32, i32
  }
  func.func @transform_2(%arg0: i32, %arg1: i32) -> (i32, i32, i32, i32) {
    %c0_i32 = arith.constant 0 : i32
    %c0_i32_0 = arith.constant 0 : i32
    %c0_i32_1 = arith.constant 0 : i32
    %c0_i32_2 = arith.constant 0 : i32
    return %arg0, %c0_i32, %c0_i32_0, %c0_i32_1 : i32, i32, i32, i32
  }
  func.func @transform_3(%arg0: i32, %arg1: i32) -> (i32, i32, i32, i32) {
    %c0_i32 = arith.constant 0 : i32
    %c0_i32_0 = arith.constant 0 : i32
    %c0_i32_1 = arith.constant 0 : i32
    %c0_i32_2 = arith.constant 0 : i32
    return %arg0, %c0_i32, %c0_i32_0, %c0_i32_1 : i32, i32, i32, i32
  }
  func.func @transform_4(%arg0: i32, %arg1: i32) -> (i32, i32, i32, i32) {
    %c0_i32 = arith.constant 0 : i32
    %c0_i32_0 = arith.constant 0 : i32
    %c0_i32_1 = arith.constant 0 : i32
    %c0_i32_2 = arith.constant 0 : i32
    %c0_i32_3 = arith.constant 0 : i32
    return %c0_i32, %c0_i32_0, %c0_i32_1, %c0_i32_2 : i32, i32, i32, i32
  }
  func.func @transform_5(%arg0: i32, %arg1: i32) -> (i32, i32, i32, i32) {
    %c0_i32 = arith.constant 0 : i32
    %c0_i32_0 = arith.constant 0 : i32
    %c0_i32_1 = arith.constant 0 : i32
    return %arg0, %arg1, %c0_i32, %c0_i32_0 : i32, i32, i32, i32
  }
  func.func @transform_6(%arg0: i32, %arg1: i32) -> (i32, i32) {
    %c1_i32 = arith.constant 1 : i32
    %0 = arith.muli %arg0, %c1_i32 : i32
    %1 = arith.addi %0, %arg1 : i32
    %c0_i32 = arith.constant 0 : i32
    %c0_i32_0 = arith.constant 0 : i32
    return %1, %c0_i32 : i32, i32
  }
  func.func @transform_7(%arg0: i32, %arg1: i32) -> (i32, i32) {
    %c1_i32 = arith.constant 1 : i32
    %0 = arith.muli %arg0, %c1_i32 : i32
    %1 = arith.addi %0, %arg1 : i32
    %c0_i32 = arith.constant 0 : i32
    %c0_i32_0 = arith.constant 0 : i32
    return %1, %c0_i32 : i32, i32
  }
}

module attributes {stable_mosaic.version = 11 : i64} {
  func.func @kernel(%arg0: i32, %arg1: i32, %arg2: memref<1x8x8x128xbf16, #tpu.memory_space<vmem>>, %arg3: memref<1x128xf32, #tpu.memory_space<vmem>>, %arg4: memref<1x128xf32, #tpu.memory_space<vmem>>, %arg5: memref<1x8x8x8xf32, #tpu.memory_space<vmem>>) attributes {dimension_semantics = [#tpu.dimension_semantics<parallel>, #tpu.dimension_semantics<parallel>], iteration_bounds = array<i64: 2, 1>, scalar_prefetch = 0 : i64, scratch_operands = 0 : i64, tpu.core_type = #tpu.core_type<tc>, window_params = [{transform_indices = @transform_0, window_bounds = array<i64: 1, 8, 8, 128>}, {pipeline_mode = #tpu.pipeline_mode<synchronous>, transform_indices = @transform_1, window_bounds = array<i64: 1, 128>}, {pipeline_mode = #tpu.pipeline_mode<synchronous>, transform_indices = @transform_2, window_bounds = array<i64: 1, 128>}, {transform_indices = @transform_3, window_bounds = array<i64: 1, 8, 8, 8>}]} {
    %c0 = arith.constant 0 : index
    %c0_0 = arith.constant 0 : index
    %c0_1 = arith.constant 0 : index
    %c0_2 = arith.constant 0 : index
    %0 = vector.load %arg2[%c0, %c0_0, %c0_1, %c0_2] : memref<1x8x8x128xbf16, #tpu.memory_space<vmem>>, vector<1x8x8x128xbf16>
    %1 = vector.shape_cast %0 : vector<1x8x8x128xbf16> to vector<8x8x128xbf16>
    %2 = arith.extf %1 : vector<8x8x128xbf16> to vector<8x8x128xf32>
    %c0_3 = arith.constant 0 : index
    %c0_4 = arith.constant 0 : index
    %3 = vector.load %arg3[%c0_3, %c0_4] : memref<1x128xf32, #tpu.memory_space<vmem>>, vector<1x128xf32>
    %4 = vector.shape_cast %3 : vector<1x128xf32> to vector<1x1x128xf32>
    %5 = vector.broadcast %4 : vector<1x1x128xf32> to vector<8x8x128xf32>
    %6 = arith.mulf %2, %5 : vector<8x8x128xf32>
    %c0_5 = arith.constant 0 : index
    %c0_6 = arith.constant 0 : index
    %7 = vector.load %arg4[%c0_5, %c0_6] : memref<1x128xf32, #tpu.memory_space<vmem>>, vector<1x128xf32>
    %8 = vector.shape_cast %7 : vector<1x128xf32> to vector<1x1x128xf32>
    %9 = vector.broadcast %8 : vector<1x1x128xf32> to vector<8x8x128xf32>
    %10 = arith.addf %6, %9 : vector<8x8x128xf32>
    %cst = arith.constant 0.000000e+00 : f32
    %11 = vector.broadcast %cst : f32 to vector<8x8x128xf32>
    %12 = arith.cmpf ogt, %10, %11 : vector<8x8x128xf32>
    %cst_7 = arith.constant 2.000000e-01 : f32
    %13 = vector.broadcast %cst_7 : f32 to vector<8x8x128xf32>
    %14 = arith.mulf %13, %10 : vector<8x8x128xf32>
    %15 = arith.select %12, %10, %14 : vector<8x8x128xi1>, vector<8x8x128xf32>
    %16 = vector.extract_strided_slice %15 {offsets = [0, 0, 0], sizes = [8, 8, 8], strides = [1, 1, 1]} : vector<8x8x128xf32> to vector<8x8x8xf32>
    %c0_8 = arith.constant 0 : index
    %c0_9 = arith.constant 0 : index
    %c0_10 = arith.constant 0 : index
    %c0_11 = arith.constant 0 : index
    %17 = vector.load %arg5[%c0_8, %c0_9, %c0_10, %c0_11] : memref<1x8x8x8xf32, #tpu.memory_space<vmem>>, vector<1x8x8x8xf32>
    %18 = vector.shape_cast %17 : vector<1x8x8x8xf32> to vector<8x8x8xf32>
    %19 = vector.shape_cast %16 : vector<8x8x8xf32> to vector<1x8x8x8xf32>
    tpu.vector_store %arg5[%c0_8, %c0_9, %c0_10, %c0_11], %19 {strides = array<i32>} : memref<1x8x8x8xf32, #tpu.memory_space<vmem>>, vector<1x8x8x8xf32>,
    return
  }
  func.func @transform_0(%arg0: i32, %arg1: i32) -> (i32, i32, i32, i32) {
    %c0_i32 = arith.constant 0 : i32
    %c0_i32_0 = arith.constant 0 : i32
    %c0_i32_1 = arith.constant 0 : i32
    return %arg0, %arg1, %c0_i32, %c0_i32_0 : i32, i32, i32, i32
  }
  func.func @transform_1(%arg0: i32, %arg1: i32) -> (i32, i32) {
    %c0_i32 = arith.constant 0 : i32
    %c0_i32_0 = arith.constant 0 : i32
    %c0_i32_1 = arith.constant 0 : i32
    return %c0_i32, %c0_i32_0 : i32, i32
  }
  func.func @transform_2(%arg0: i32, %arg1: i32) -> (i32, i32) {
    %c0_i32 = arith.constant 0 : i32
    %c0_i32_0 = arith.constant 0 : i32
    %c0_i32_1 = arith.constant 0 : i32
    return %c0_i32, %c0_i32_0 : i32, i32
  }
  func.func @transform_3(%arg0: i32, %arg1: i32) -> (i32, i32, i32, i32) {
    %c0_i32 = arith.constant 0 : i32
    %c0_i32_0 = arith.constant 0 : i32
    %c0_i32_1 = arith.constant 0 : i32
    return %arg0, %arg1, %c0_i32, %c0_i32_0 : i32, i32, i32, i32
  }
}

</mosaic_0001>

<llo_original>
// kernel: block_forward.3
$region0: #{block_forward.3}
  #allocation0 [shape = 'u32[]', space=smem, size = 0x4, offset = 0x4, fixed_abs, tag = 'smem constant byte address 0x4 - core index']
  #allocation1 [shape = 'u32[72,128]{1,0:T(1,128)}', space=vmem, size = 0x9000, scoped, tag = 'internal scratch']
  %s0 = inlined_call_operand.vmem [shape: bf16[2,8,8,128], index: 0, kind: input, shape index: {}]
  %s1 = inlined_call_operand.vmem [shape: f32[1,128], index: 1, kind: input, shape index: {}]
  %s2 = inlined_call_operand.vmem [shape: f32[1,128], index: 2, kind: input, shape index: {}]
  %s3 = inlined_call_operand.vmem [shape: f32[2,8,8,8], index: 3, kind: output, shape index: {}]
  %s4 = sld [smem:[#allocation0]]
  $region45: #{block_forward.3} parent=0
    _
  %s6 = ssub.s32 1, %s4
  %s7 = scalar_select 0, %s6, %s4
  loop: start=0, step=1, limit=4
  $region2: #{block_forward.3} parent=0 // loop_pre_header
    _
  $region3: #{block_forward.3} parent=0 // loop_header
    %s9 = sphi 0, %s13
    %p10 = scmp.ge.s32.totalorder %s9, 4
    %s16 = sphi 0, %s28
    %s17 = sphi 0, %s24
    %s18 = sphi 0, %s16
    %s19 = sphi 0, %s17
    %s20 = sphi 0, %s18
    %s21 = sphi 0, %s19
    %s33 = sphi 0, %s35
    %s36 = sphi 0, %s33
    %s37 = sphi 0, %s36
    %s53 = sphi 0, %s37
    %s57 = sphi 0, %s57
    %s59 = sphi 0, %s57
    %s60 = sphi 0, %s59
    %s74 = sphi 0, %s60
    %s78 = sphi 0, %s78
    %s80 = sphi 0, %s78
    %s81 = sphi 0, %s80
    %s95 = sphi 0, %s81
    %s103 = sphi 0, %s105
    %s106 = sphi 0, %s103
    %s107 = sphi 0, %s106
    %s123 = sphi 0, %s107
  $region4: #{block_forward.3} parent=0 // loop_header_branch
    %12 = sbr.rel (%p10) target = $region8
  $region5: #{block_forward.3} parent=0 // loop_body
    %s14 = ssub.s32 %s9, 1
    %s15 = ssub.s32 %s9, 2
    %s22 = sadd.s32 1, %s17
    %p23 = scmp.ge.s32.totalorder %s22, 1
    %s24 = scalar_select %p23, 0, %s22
    %s25 = sadd.s32 1, %s16
    %s26 = scalar_select %p23, %s25, %s16
    %p27 = scmp.ge.s32.totalorder %s26, 2
    %s28 = scalar_select %p27, 0, %s26
    %s29 = ssub.s32 %s16, %s28
    %s30 = ssub.s32 %s17, %s24
    %s31 = sor.u32 %s29, %s30
    %p32 = scmp.eq.s32.totalorder %s31, 0
    %s34 = sadd.s32 %s33, 1
    %s35 = scalar_select %p32, %s33, %s34
    %p38 = pneg %p32
    %p39 = scmp.eq.s32.totalorder %s9, 1
    %p40 = por %p38, %p39
    %p41 = scmp.ne.s32.totalorder %s33, %s36
    %p42 = scmp.eq.s32.totalorder %s9, 0
    %p43 = por %p41, %p42
    %p44 = scmp.ne.s32.totalorder %s33, %s36
    %p45 = scmp.eq.s32.totalorder %s14, 1
    %p46 = por %p44, %p45
    %p47 = scmp.ne.s32.totalorder %s36, %s37
    %p48 = scmp.eq.s32.totalorder %s14, 0
    %p49 = por %p47, %p48
    %p50 = scmp.ne.s32.totalorder %s36, %s37
    %p51 = scmp.eq.s32.totalorder %s15, 1
    %p52 = por %p50, %p51
    %p54 = scmp.ne.s32.totalorder %s37, %s53
    %p55 = scmp.eq.s32.totalorder %s15, 0
    %p56 = por %p54, %p55
    %s58 = sadd.s32 %s57, 1
    %p61 = scmp.eq.s32.totalorder %s9, 1
    %p62 = scmp.ne.s32.totalorder %s57, %s59
    %p63 = scmp.eq.s32.totalorder %s9, 0
    %p64 = por %p62, %p63
    %p65 = scmp.ne.s32.totalorder %s57, %s59
    %p66 = scmp.eq.s32.totalorder %s14, 1
    %p67 = por %p65, %p66
    %p68 = scmp.ne.s32.totalorder %s59, %s60
    %p69 = scmp.eq.s32.totalorder %s14, 0
    %p70 = por %p68, %p69
    %p71 = scmp.ne.s32.totalorder %s59, %s60
    %p72 = scmp.eq.s32.totalorder %s15, 1
    %p73 = por %p71, %p72
    %p75 = scmp.ne.s32.totalorder %s60, %s74
    %p76 = scmp.eq.s32.totalorder %s15, 0
    %p77 = por %p75, %p76
    %s79 = sadd.s32 %s78, 1
    %p82 = scmp.eq.s32.totalorder %s9, 1
    %p83 = scmp.ne.s32.totalorder %s78, %s80
    %p84 = scmp.eq.s32.totalorder %s9, 0
    %p85 = por %p83, %p84
    %p86 = scmp.ne.s32.totalorder %s78, %s80
    %p87 = scmp.eq.s32.totalorder %s14, 1
    %p88 = por %p86, %p87
    %p89 = scmp.ne.s32.totalorder %s80, %s81
    %p90 = scmp.eq.s32.totalorder %s14, 0
    %p91 = por %p89, %p90
    %p92 = scmp.ne.s32.totalorder %s80, %s81
    %p93 = scmp.eq.s32.totalorder %s15, 1
    %p94 = por %p92, %p93
    %p96 = scmp.ne.s32.totalorder %s81, %s95
    %p97 = scmp.eq.s32.totalorder %s15, 0
    %p98 = por %p96, %p97
    %s99 = ssub.s32 %s16, %s28
    %s100 = ssub.s32 %s17, %s24
    %s101 = sor.u32 %s99, %s100
    %p102 = scmp.eq.s32.totalorder %s101, 0
    %s104 = sadd.s32 %s103, 1
    %s105 = scalar_select %p102, %s103, %s104
    %p108 = pneg %p102
    %p109 = scmp.eq.s32.totalorder %s9, 1
    %p110 = por %p108, %p109
    %p111 = scmp.ne.s32.totalorder %s103, %s106
    %p112 = scmp.eq.s32.totalorder %s9, 0
    %p113 = por %p111, %p112
    %p114 = scmp.ne.s32.totalorder %s103, %s106
    %p115 = scmp.eq.s32.totalorder %s14, 1
    %p116 = por %p114, %p115
    %p117 = scmp.ne.s32.totalorder %s106, %s107
    %p118 = scmp.eq.s32.totalorder %s14, 0
    %p119 = por %p117, %p118
    %p120 = scmp.ne.s32.totalorder %s106, %s107
    %p121 = scmp.eq.s32.totalorder %s15, 1
    %p122 = por %p120, %p121
    %p124 = scmp.ne.s32.totalorder %s107, %s123
    %p125 = scmp.eq.s32.totalorder %s15, 0
    %p126 = por %p124, %p125
    %p127 = scmp.le.s32.totalorder 1, %s9
    %p128 = scmp.lt.s32.totalorder %s9, 3
    %p129 = pnand %p127, %p128
    %p130 = pneg %p129
    // Predicated region
    $region9: #{block_forward.3} parent=5 // pred_check
      _
    $region10: #{block_forward.3} parent=5 // pred_check_branch
      %132 = sbr.rel (%p129) target = $region12
    $region11: #{block_forward.3} parent=5 // pred_region
      %s133 = ssub.s32 %s9, 1
      // Predicated region
      $region13: #{block_forward.3} parent=11 // pred_check
        %p134 = pneg %p70
      $region14: #{block_forward.3} parent=11 // pred_check_branch
        %136 = sbr.rel (%p134) target = $region16
      $region15: #{block_forward.3} parent=11 // pred_region
        _
      $region16: #{block_forward.3} parent=11 // pred_fallthru
        _
      // Predicated region
      $region17: #{block_forward.3} parent=11 // pred_check
        %p137 = pneg %p91
      $region18: #{block_forward.3} parent=11 // pred_check_branch
        %139 = sbr.rel (%p137) target = $region20
      $region19: #{block_forward.3} parent=11 // pred_region
        _
      $region20: #{block_forward.3} parent=11 // pred_fallthru
        _
    $region12: #{block_forward.3} parent=5 // pred_fallthru
      _
    %p140 = scmp.lt.s32.totalorder %s9, 2
    // Predicated region
    $region21: #{block_forward.3} parent=5 // pred_check
      %p141 = pneg %p140
    $region22: #{block_forward.3} parent=5 // pred_check_branch
      %143 = sbr.rel (%p141) target = $region24
    $region23: #{block_forward.3} parent=5 // pred_region
      // Predicated region
      $region25: #{block_forward.3} parent=23 // pred_check
        %p144 = pneg %p43
      $region26: #{block_forward.3} parent=23 // pred_check_branch
        %146 = sbr.rel (%p144) target = $region28
      $region27: #{block_forward.3} parent=23 // pred_region
        %s147 = smul.u32 8, %s17
        %p148 = scmp.lt.s32.totalorder %s16, 1
        %s149 = scalar_select %p148, %s16, 1
        %p150 = scmp.lt.s32.totalorder %s147, 7
        %s151 = scalar_select %p150, %s147, 7
        %s152 = smul.addr %s149, 8
        %s153 = sadd.s32 %s151, %s152
        %s154 = smul.addr %s153, 4
        %s155 = scalar_lea.vmem %s0, %s154
        %s156 = smul.u32 8, %s17
      $region28: #{block_forward.3} parent=23 // pred_fallthru
        _
    $region24: #{block_forward.3} parent=5 // pred_fallthru
      _
    %p157 = scmp.le.s32.totalorder 1, %s9
    %p158 = scmp.lt.s32.totalorder %s9, 3
    %p159 = pnand %p157, %p158
    %p160 = pneg %p159
    // Predicated region
    $region29: #{block_forward.3} parent=5 // pred_check
      _
    $region30: #{block_forward.3} parent=5 // pred_check_branch
      %162 = sbr.rel (%p159) target = $region32
    $region31: #{block_forward.3} parent=5 // pred_region
      %s163 = ssub.s32 %s9, 1
      %s164 = smul.u32 8, %s19
      %p165 = scmp.lt.s32.totalorder %s18, 1
      %s166 = scalar_select %p165, %s18, 1
      %p167 = scmp.lt.s32.totalorder %s164, 7
      %s168 = scalar_select %p167, %s164, 7
      %s169 = smul.addr %s166, 8
      %s170 = sadd.s32 %s168, %s169
      %s171 = smul.addr %s170, 4
      %s172 = scalar_lea.vmem %s0, %s171
      %p173 = pneg %p49
      %p174 = pneg %p46
      %p175 = pneg %p70
      %p176 = pneg %p67
      %p177 = pneg %p91
      %p178 = pneg %p88
      %p179 = pneg %p119
      %p180 = pneg %p116
      %s181 = smul.u32 8, %s19
      %p182 = scmp.lt.s32.totalorder %s18, 1
      %s183 = scalar_select %p182, %s18, 1
      %p184 = scmp.lt.s32.totalorder %s181, 7
      %s185 = scalar_select %p184, %s181, 7
      %s186 = smul.addr %s183, 8
      %s187 = sadd.s32 %s185, %s186
      %s188 = smul.addr %s187, 8
      %s189 = scalar_lea.vmem %s3, %s188
      %s190 = smul.u32 8, %s19
      %p191 = scmp.lt.s32.totalorder %s18, 1
      %s192 = scalar_select %p191, %s18, 1
      %p193 = scmp.lt.s32.totalorder %s190, 7
      %s194 = scalar_select %p193, %s190, 7
      %s195 = smul.addr %s192, 8
      %s196 = sadd.s32 %s194, %s195
      %s197 = smul.addr %s196, 4
      %s198 = scalar_lea.vmem %s0, %s197
      %s199 = smul.u32 8, %s19
      %s200 = smul.u32 8, %s19
      %p201 = scmp.lt.s32.totalorder %s18, 1
      %s202 = scalar_select %p201, %s18, 1
      %p203 = scmp.lt.s32.totalorder %s200, 7
      %s204 = scalar_select %p203, %s200, 7
      %s205 = smul.addr %s202, 8
      %s206 = sadd.s32 %s204, %s205
      %s207 = smul.addr %s206, 8
      %s208 = scalar_lea.vmem %s3, %s207
      %s209 = smul.u32 8, %s19
      %v210 = vld [vmem:[%s198] sm:$0xf]
      %v211 = vld [vmem:[%s198 + $0x4] sm:$0xf]
      %v212 = vld [vmem:[%s198 + $0x8] sm:$0xf]
      %v213 = vld [vmem:[%s198 + $0xc] sm:$0xf]
      %v214 = vld [vmem:[%s198 + $0x10] sm:$0xf]
      %v215 = vld [vmem:[%s198 + $0x14] sm:$0xf]
      %v216 = vld [vmem:[%s198 + $0x18] sm:$0xf]
      %v217 = vld [vmem:[%s198 + $0x1c] sm:$0xf]
      %v218 = vunpack.c.l.bf16 %v210
      %v219 = vunpack.c.l.bf16 %v211
      %v220 = vunpack.c.l.bf16 %v212
      %v221 = vunpack.c.l.bf16 %v213
      %v222 = vunpack.c.l.bf16 %v214
      %v223 = vunpack.c.l.bf16 %v215
      %v224 = vunpack.c.l.bf16 %v216
      %v225 = vunpack.c.l.bf16 %v217
      %v226 = vld [vmem:[%s1] sm:$0x1]
      %v228 = vperm.slane %v226, 0
      %v230 = vmul.f32 %v218, %v228
      %v231 = vmul.f32 %v219, %v228
      %v232 = vmul.f32 %v220, %v228
      %v233 = vmul.f32 %v221, %v228
      %v234 = vmul.f32 %v222, %v228
      %v235 = vmul.f32 %v223, %v228
      %v236 = vmul.f32 %v224, %v228
      %v237 = vmul.f32 %v225, %v228
      %v238 = vld [vmem:[%s2] sm:$0x1]
      %v240 = vperm.slane %v238, 0
      %v242 = vadd.f32 %v230, %v240
      %v243 = vadd.f32 %v231, %v240
      %v244 = vadd.f32 %v232, %v240
      %v245 = vadd.f32 %v233, %v240
      %v246 = vadd.f32 %v234, %v240
      %v247 = vadd.f32 %v235, %v240
      %v248 = vadd.f32 %v236, %v240
      %v249 = vadd.f32 %v237, %v240
      %vm250 = vcmp.gt.f32.partialorder %v242, 0.0
      %vm251 = vcmp.gt.f32.partialorder %v243, 0.0
      %vm252 = vcmp.gt.f32.partialorder %v244, 0.0
      %vm253 = vcmp.gt.f32.partialorder %v245, 0.0
      %vm254 = vcmp.gt.f32.partialorder %v246, 0.0
      %vm255 = vcmp.gt.f32.partialorder %v247, 0.0
      %vm256 = vcmp.gt.f32.partialorder %v248, 0.0
      %vm257 = vcmp.gt.f32.partialorder %v249, 0.0
      %v258 = vmul.f32 %v242, 0.2
      %v259 = vmul.f32 %v243, 0.2
      %v260 = vmul.f32 %v244, 0.2
      %v261 = vmul.f32 %v245, 0.2
      %v262 = vmul.f32 %v246, 0.2
      %v263 = vmul.f32 %v247, 0.2
      %v264 = vmul.f32 %v248, 0.2
      %v265 = vmul.f32 %v249, 0.2
      %v266 = vsel %vm250, %v242, %v258
      %v267 = vsel %vm251, %v243, %v259
      %v268 = vsel %vm252, %v244, %v260
      %v269 = vsel %vm253, %v245, %v261
      %v270 = vsel %vm254, %v246, %v262
      %v271 = vsel %vm255, %v247, %v263
      %v272 = vsel %vm256, %v248, %v264
      %v273 = vsel %vm257, %v249, %v265
      %vm274 = vcmask 64512
      %275 = vst.msk [vmem:[%s208] sm:$0xff] %vm274, %v266
      %276 = vst.msk [vmem:[%s208 + $0x8] sm:$0xff] %vm274, %v267
      %277 = vst.msk [vmem:[%s208 + $0x10] sm:$0xff] %vm274, %v268
      %278 = vst.msk [vmem:[%s208 + $0x18] sm:$0xff] %vm274, %v269
      %279 = vst.msk [vmem:[%s208 + $0x20] sm:$0xff] %vm274, %v270
      %280 = vst.msk [vmem:[%s208 + $0x28] sm:$0xff] %vm274, %v271
      %281 = vst.msk [vmem:[%s208 + $0x30] sm:$0xff] %vm274, %v272
      %282 = vst.msk [vmem:[%s208 + $0x38] sm:$0xff] %vm274, %v273
      %s283 = smul.u32 8, %s19
      %p284 = scmp.lt.s32.totalorder %s18, 1
      %s285 = scalar_select %p284, %s18, 1
      %p286 = scmp.lt.s32.totalorder %s283, 7
      %s287 = scalar_select %p286, %s283, 7
      %s288 = smul.addr %s285, 8
      %s289 = sadd.s32 %s287, %s288
      %s290 = smul.addr %s289, 8
      %s291 = scalar_lea.vmem %s3, %s290
      // Predicated region
      $region33: #{block_forward.3} parent=31 // pred_check
        %p292 = pneg %p116
      $region34: #{block_forward.3} parent=31 // pred_check_branch
        %294 = sbr.rel (%p292) target = $region36
      $region35: #{block_forward.3} parent=31 // pred_region
        %s295 = smul.u32 8, %s19
      $region36: #{block_forward.3} parent=31 // pred_fallthru
        _
    $region32: #{block_forward.3} parent=5 // pred_fallthru
      _
    %p296 = scmp.le.s32.totalorder 2, %s9
    // Predicated region
    $region37: #{block_forward.3} parent=5 // pred_check
      %p297 = pneg %p296
    $region38: #{block_forward.3} parent=5 // pred_check_branch
      %299 = sbr.rel (%p297) target = $region40
    $region39: #{block_forward.3} parent=5 // pred_region
      %s300 = ssub.s32 %s9, 2
      // Predicated region
      $region41: #{block_forward.3} parent=39 // pred_check
        %p301 = pneg %p122
      $region42: #{block_forward.3} parent=39 // pred_check_branch
        %303 = sbr.rel (%p301) target = $region44
      $region43: #{block_forward.3} parent=39 // pred_region
        %s304 = smul.u32 8, %s21
        %p305 = scmp.lt.s32.totalorder %s20, 1
        %s306 = scalar_select %p305, %s20, 1
        %p307 = scmp.lt.s32.totalorder %s304, 7
        %s308 = scalar_select %p307, %s304, 7
        %s309 = smul.addr %s306, 8
        %s310 = sadd.s32 %s308, %s309
        %s311 = smul.addr %s310, 8
        %s312 = scalar_lea.vmem %s3, %s311
      $region44: #{block_forward.3} parent=39 // pred_fallthru
        _
    $region40: #{block_forward.3} parent=5 // pred_fallthru
      _
  $region6: #{block_forward.3} parent=0 // loop_footer
    %s13 = sadd.s32 1, %s9
  $region7: #{block_forward.3} parent=0 // loop_footer_branch
    %8 = sbr.rel target = $region3
  $region8: #{block_forward.3} parent=0 // loop_exit
    _

// kernel: block_forward.2
$region0: #{block_forward.2}
  #allocation0 [shape = 'u32[]', space=smem, size = 0x4, offset = 0x4, fixed_abs, tag = 'smem constant byte address 0x4 - core index']
  #allocation1 [shape = 'u32[72,128]{1,0:T(1,128)}', space=vmem, size = 0x9000, scoped, tag = 'internal scratch']
  %s0 = inlined_call_operand.vmem [shape: bf16[2,9,9,4], index: 0, kind: input, shape index: {}]
  %s1 = inlined_call_operand.vmem [shape: bf16[2,9,9,4], index: 1, kind: input, shape index: {}]
  %s2 = inlined_call_operand.vmem [shape: bf16[2,9,9,4], index: 2, kind: input, shape index: {}]
  %s3 = inlined_call_operand.vmem [shape: bf16[2,9,9,4], index: 3, kind: input, shape index: {}]
  %s4 = inlined_call_operand.vmem [shape: bf16[4,4,4,128], index: 4, kind: input, shape index: {}]
  %s5 = inlined_call_operand.vmem [shape: bf16[2,8,8,128], index: 5, kind: output, shape index: {0}]
  %s6 = inlined_call_operand.vmem [shape: f32[16,128], index: 6, kind: output, shape index: {1}]
  %s7 = inlined_call_operand.vmem [shape: f32[16,128], index: 7, kind: output, shape index: {2}]
  %8 = xla_tuple %s5, %s6, %s7
  %s9 = sld [smem:[#allocation0]]
  $region69: #{block_forward.2} parent=0
    _
  %s11 = ssub.s32 1, %s9
  %s12 = scalar_select 0, %s11, %s9
  loop: start=0, step=1, limit=4
  $region2: #{block_forward.2} parent=0 // loop_pre_header
    _
  $region3: #{block_forward.2} parent=0 // loop_header
    %s14 = sphi 0, %s18
    %p15 = scmp.ge.s32.totalorder %s14, 4
    %s21 = sphi 0, %s33
    %s22 = sphi 0, %s29
    %s23 = sphi 0, %s21
    %s24 = sphi 0, %s22
    %s25 = sphi 0, %s23
    %s26 = sphi 0, %s24
    %s36 = sphi 0, %s38
    %s39 = sphi 0, %s36
    %s40 = sphi 0, %s39
    %s56 = sphi 0, %s40
    %s62 = sphi 0, %s64
    %s65 = sphi 0, %s62
    %s66 = sphi 0, %s65
    %s82 = sphi 0, %s66
    %s88 = sphi 0, %s90
    %s91 = sphi 0, %s88
    %s92 = sphi 0, %s91
    %s108 = sphi 0, %s92
    %s114 = sphi 0, %s116
    %s117 = sphi 0, %s114
    %s118 = sphi 0, %s117
    %s134 = sphi 0, %s118
    %s138 = sphi 0, %s138
    %s140 = sphi 0, %s138
    %s141 = sphi 0, %s140
    %s155 = sphi 0, %s141
    %s163 = sphi 0, %s165
    %s166 = sphi 0, %s163
    %s167 = sphi 0, %s166
    %s183 = sphi 0, %s167
    %s191 = sphi 0, %s193
    %s194 = sphi 0, %s191
    %s195 = sphi 0, %s194
    %s211 = sphi 0, %s195
    %s219 = sphi 0, %s221
    %s222 = sphi 0, %s219
    %s223 = sphi 0, %s222
    %s239 = sphi 0, %s223
  $region4: #{block_forward.2} parent=0 // loop_header_branch
    %17 = sbr.rel (%p15) target = $region8
  $region5: #{block_forward.2} parent=0 // loop_body
    %s19 = ssub.s32 %s14, 1
    %s20 = ssub.s32 %s14, 2
    %s27 = sadd.s32 1, %s22
    %p28 = scmp.ge.s32.totalorder %s27, 1
    %s29 = scalar_select %p28, 0, %s27
    %s30 = sadd.s32 1, %s21
    %s31 = scalar_select %p28, %s30, %s21
    %p32 = scmp.ge.s32.totalorder %s31, 2
    %s33 = scalar_select %p32, 0, %s31
    %s34 = ssub.s32 %s21, %s33
    %p35 = scmp.eq.s32.totalorder %s34, 0
    %s37 = sadd.s32 %s36, 1
    %s38 = scalar_select %p35, %s36, %s37
    %p41 = pneg %p35
    %p42 = scmp.eq.s32.totalorder %s14, 1
    %p43 = por %p41, %p42
    %p44 = scmp.ne.s32.totalorder %s36, %s39
    %p45 = scmp.eq.s32.totalorder %s14, 0
    %p46 = por %p44, %p45
    %p47 = scmp.ne.s32.totalorder %s36, %s39
    %p48 = scmp.eq.s32.totalorder %s19, 1
    %p49 = por %p47, %p48
    %p50 = scmp.ne.s32.totalorder %s39, %s40
    %p51 = scmp.eq.s32.totalorder %s19, 0
    %p52 = por %p50, %p51
    %p53 = scmp.ne.s32.totalorder %s39, %s40
    %p54 = scmp.eq.s32.totalorder %s20, 1
    %p55 = por %p53, %p54
    %p57 = scmp.ne.s32.totalorder %s40, %s56
    %p58 = scmp.eq.s32.totalorder %s20, 0
    %p59 = por %p57, %p58
    %s60 = ssub.s32 %s21, %s33
    %p61 = scmp.eq.s32.totalorder %s60, 0
    %s63 = sadd.s32 %s62, 1
    %s64 = scalar_select %p61, %s62, %s63
    %p67 = pneg %p61
    %p68 = scmp.eq.s32.totalorder %s14, 1
    %p69 = por %p67, %p68
    %p70 = scmp.ne.s32.totalorder %s62, %s65
    %p71 = scmp.eq.s32.totalorder %s14, 0
    %p72 = por %p70, %p71
    %p73 = scmp.ne.s32.totalorder %s62, %s65
    %p74 = scmp.eq.s32.totalorder %s19, 1
    %p75 = por %p73, %p74
    %p76 = scmp.ne.s32.totalorder %s65, %s66
    %p77 = scmp.eq.s32.totalorder %s19, 0
    %p78 = por %p76, %p77
    %p79 = scmp.ne.s32.totalorder %s65, %s66
    %p80 = scmp.eq.s32.totalorder %s20, 1
    %p81 = por %p79, %p80
    %p83 = scmp.ne.s32.totalorder %s66, %s82
    %p84 = scmp.eq.s32.totalorder %s20, 0
    %p85 = por %p83, %p84
    %s86 = ssub.s32 %s21, %s33
    %p87 = scmp.eq.s32.totalorder %s86, 0
    %s89 = sadd.s32 %s88, 1
    %s90 = scalar_select %p87, %s88, %s89
    %p93 = pneg %p87
    %p94 = scmp.eq.s32.totalorder %s14, 1
    %p95 = por %p93, %p94
    %p96 = scmp.ne.s32.totalorder %s88, %s91
    %p97 = scmp.eq.s32.totalorder %s14, 0
    %p98 = por %p96, %p97
    %p99 = scmp.ne.s32.totalorder %s88, %s91
    %p100 = scmp.eq.s32.totalorder %s19, 1
    %p101 = por %p99, %p100
    %p102 = scmp.ne.s32.totalorder %s91, %s92
    %p103 = scmp.eq.s32.totalorder %s19, 0
    %p104 = por %p102, %p103
    %p105 = scmp.ne.s32.totalorder %s91, %s92
    %p106 = scmp.eq.s32.totalorder %s20, 1
    %p107 = por %p105, %p106
    %p109 = scmp.ne.s32.totalorder %s92, %s108
    %p110 = scmp.eq.s32.totalorder %s20, 0
    %p111 = por %p109, %p110
    %s112 = ssub.s32 %s21, %s33
    %p113 = scmp.eq.s32.totalorder %s112, 0
    %s115 = sadd.s32 %s114, 1
    %s116 = scalar_select %p113, %s114, %s115
    %p119 = pneg %p113
    %p120 = scmp.eq.s32.totalorder %s14, 1
    %p121 = por %p119, %p120
    %p122 = scmp.ne.s32.totalorder %s114, %s117
    %p123 = scmp.eq.s32.totalorder %s14, 0
    %p124 = por %p122, %p123
    %p125 = scmp.ne.s32.totalorder %s114, %s117
    %p126 = scmp.eq.s32.totalorder %s19, 1
    %p127 = por %p125, %p126
    %p128 = scmp.ne.s32.totalorder %s117, %s118
    %p129 = scmp.eq.s32.totalorder %s19, 0
    %p130 = por %p128, %p129
    %p131 = scmp.ne.s32.totalorder %s117, %s118
    %p132 = scmp.eq.s32.totalorder %s20, 1
    %p133 = por %p131, %p132
    %p135 = scmp.ne.s32.totalorder %s118, %s134
    %p136 = scmp.eq.s32.totalorder %s20, 0
    %p137 = por %p135, %p136
    %s139 = sadd.s32 %s138, 1
    %p142 = scmp.eq.s32.totalorder %s14, 1
    %p143 = scmp.ne.s32.totalorder %s138, %s140
    %p144 = scmp.eq.s32.totalorder %s14, 0
    %p145 = por %p143, %p144
    %p146 = scmp.ne.s32.totalorder %s138, %s140
    %p147 = scmp.eq.s32.totalorder %s19, 1
    %p148 = por %p146, %p147
    %p149 = scmp.ne.s32.totalorder %s140, %s141
    %p150 = scmp.eq.s32.totalorder %s19, 0
    %p151 = por %p149, %p150
    %p152 = scmp.ne.s32.totalorder %s140, %s141
    %p153 = scmp.eq.s32.totalorder %s20, 1
    %p154 = por %p152, %p153
    %p156 = scmp.ne.s32.totalorder %s141, %s155
    %p157 = scmp.eq.s32.totalorder %s20, 0
    %p158 = por %p156, %p157
    %s159 = ssub.s32 %s21, %s33
    %s160 = ssub.s32 %s22, %s29
    %s161 = sor.u32 %s159, %s160
    %p162 = scmp.eq.s32.totalorder %s161, 0
    %s164 = sadd.s32 %s163, 1
    %s165 = scalar_select %p162, %s163, %s164
    %p168 = pneg %p162
    %p169 = scmp.eq.s32.totalorder %s14, 1
    %p170 = por %p168, %p169
    %p171 = scmp.ne.s32.totalorder %s163, %s166
    %p172 = scmp.eq.s32.totalorder %s14, 0
    %p173 = por %p171, %p172
    %p174 = scmp.ne.s32.totalorder %s163, %s166
    %p175 = scmp.eq.s32.totalorder %s19, 1
    %p176 = por %p174, %p175
    %p177 = scmp.ne.s32.totalorder %s166, %s167
    %p178 = scmp.eq.s32.totalorder %s19, 0
    %p179 = por %p177, %p178
    %p180 = scmp.ne.s32.totalorder %s166, %s167
    %p181 = scmp.eq.s32.totalorder %s20, 1
    %p182 = por %p180, %p181
    %p184 = scmp.ne.s32.totalorder %s167, %s183
    %p185 = scmp.eq.s32.totalorder %s20, 0
    %p186 = por %p184, %p185
    %s187 = sadd.s32 %s21, %s22
    %s188 = sadd.s32 %s33, %s29
    %s189 = ssub.s32 %s187, %s188
    %p190 = scmp.eq.s32.totalorder %s189, 0
    %s192 = sadd.s32 %s191, 1
    %s193 = scalar_select %p190, %s191, %s192
    %p196 = pneg %p190
    %p197 = scmp.eq.s32.totalorder %s14, 1
    %p198 = por %p196, %p197
    %p199 = scmp.ne.s32.totalorder %s191, %s194
    %p200 = scmp.eq.s32.totalorder %s14, 0
    %p201 = por %p199, %p200
    %p202 = scmp.ne.s32.totalorder %s191, %s194
    %p203 = scmp.eq.s32.totalorder %s19, 1
    %p204 = por %p202, %p203
    %p205 = scmp.ne.s32.totalorder %s194, %s195
    %p206 = scmp.eq.s32.totalorder %s19, 0
    %p207 = por %p205, %p206
    %p208 = scmp.ne.s32.totalorder %s194, %s195
    %p209 = scmp.eq.s32.totalorder %s20, 1
    %p210 = por %p208, %p209
    %p212 = scmp.ne.s32.totalorder %s195, %s211
    %p213 = scmp.eq.s32.totalorder %s20, 0
    %p214 = por %p212, %p213
    %s215 = sadd.s32 %s21, %s22
    %s216 = sadd.s32 %s33, %s29
    %s217 = ssub.s32 %s215, %s216
    %p218 = scmp.eq.s32.totalorder %s217, 0
    %s220 = sadd.s32 %s219, 1
    %s221 = scalar_select %p218, %s219, %s220
    %p224 = pneg %p218
    %p225 = scmp.eq.s32.totalorder %s14, 1
    %p226 = por %p224, %p225
    %p227 = scmp.ne.s32.totalorder %s219, %s222
    %p228 = scmp.eq.s32.totalorder %s14, 0
    %p229 = por %p227, %p228
    %p230 = scmp.ne.s32.totalorder %s219, %s222
    %p231 = scmp.eq.s32.totalorder %s19, 1
    %p232 = por %p230, %p231
    %p233 = scmp.ne.s32.totalorder %s222, %s223
    %p234 = scmp.eq.s32.totalorder %s19, 0
    %p235 = por %p233, %p234
    %p236 = scmp.ne.s32.totalorder %s222, %s223
    %p237 = scmp.eq.s32.totalorder %s20, 1
    %p238 = por %p236, %p237
    %p240 = scmp.ne.s32.totalorder %s223, %s239
    %p241 = scmp.eq.s32.totalorder %s20, 0
    %p242 = por %p240, %p241
    %p243 = scmp.le.s32.totalorder 1, %s14
    %p244 = scmp.lt.s32.totalorder %s14, 3
    %p245 = pnand %p243, %p244
    %p246 = pneg %p245
    // Predicated region
    $region9: #{block_forward.2} parent=5 // pred_check
      _
    $region10: #{block_forward.2} parent=5 // pred_check_branch
      %248 = sbr.rel (%p245) target = $region12
    $region11: #{block_forward.2} parent=5 // pred_region
      %s249 = ssub.s32 %s14, 1
      // Predicated region
      $region13: #{block_forward.2} parent=11 // pred_check
        %p250 = pneg %p151
      $region14: #{block_forward.2} parent=11 // pred_check_branch
        %252 = sbr.rel (%p250) target = $region16
      $region15: #{block_forward.2} parent=11 // pred_region
        _
      $region16: #{block_forward.2} parent=11 // pred_fallthru
        _
    $region12: #{block_forward.2} parent=5 // pred_fallthru
      _
    %p253 = scmp.lt.s32.totalorder %s14, 2
    // Predicated region
    $region17: #{block_forward.2} parent=5 // pred_check
      %p254 = pneg %p253
    $region18: #{block_forward.2} parent=5 // pred_check_branch
      %256 = sbr.rel (%p254) target = $region20
    $region19: #{block_forward.2} parent=5 // pred_region
      // Predicated region
      $region21: #{block_forward.2} parent=19 // pred_check
        %p257 = pneg %p46
      $region22: #{block_forward.2} parent=19 // pred_check_branch
        %259 = sbr.rel (%p257) target = $region24
      $region23: #{block_forward.2} parent=19 // pred_region
        %p260 = scmp.lt.s32.totalorder %s21, 1
        %s261 = scalar_select %p260, %s21, 1
        %s262 = smul.addr %s261, 18
        %s263 = smul.addr %s262, 4
        %s264 = scalar_lea.vmem %s0, %s263
      $region24: #{block_forward.2} parent=19 // pred_fallthru
        _
      // Predicated region
      $region25: #{block_forward.2} parent=19 // pred_check
        %p265 = pneg %p72
      $region26: #{block_forward.2} parent=19 // pred_check_branch
        %267 = sbr.rel (%p265) target = $region28
      $region27: #{block_forward.2} parent=19 // pred_region
        %p268 = scmp.lt.s32.totalorder %s21, 1
        %s269 = scalar_select %p268, %s21, 1
        %s270 = smul.addr %s269, 18
        %s271 = smul.addr %s270, 4
        %s272 = scalar_lea.vmem %s1, %s271
      $region28: #{block_forward.2} parent=19 // pred_fallthru
        _
      // Predicated region
      $region29: #{block_forward.2} parent=19 // pred_check
        %p273 = pneg %p98
      $region30: #{block_forward.2} parent=19 // pred_check_branch
        %275 = sbr.rel (%p273) target = $region32
      $region31: #{block_forward.2} parent=19 // pred_region
        %p276 = scmp.lt.s32.totalorder %s21, 1
        %s277 = scalar_select %p276, %s21, 1
        %s278 = smul.addr %s277, 18
        %s279 = smul.addr %s278, 4
        %s280 = scalar_lea.vmem %s2, %s279
      $region32: #{block_forward.2} parent=19 // pred_fallthru
        _
      // Predicated region
      $region33: #{block_forward.2} parent=19 // pred_check
        %p281 = pneg %p124
      $region34: #{block_forward.2} parent=19 // pred_check_branch
        %283 = sbr.rel (%p281) target = $region36
      $region35: #{block_forward.2} parent=19 // pred_region
        %p284 = scmp.lt.s32.totalorder %s21, 1
        %s285 = scalar_select %p284, %s21, 1
        %s286 = smul.addr %s285, 18
        %s287 = smul.addr %s286, 4
        %s288 = scalar_lea.vmem %s3, %s287
      $region36: #{block_forward.2} parent=19 // pred_fallthru
        _
    $region20: #{block_forward.2} parent=5 // pred_fallthru
      _
    %p289 = scmp.le.s32.totalorder 1, %s14
    %p290 = scmp.lt.s32.totalorder %s14, 3
    %p291 = pnand %p289, %p290
    %p292 = pneg %p291
    // Predicated region
    $region37: #{block_forward.2} parent=5 // pred_check
      _
    $region38: #{block_forward.2} parent=5 // pred_check_branch
      %294 = sbr.rel (%p291) target = $region40
    $region39: #{block_forward.2} parent=5 // pred_region
      %s295 = ssub.s32 %s14, 1
      %p296 = scmp.lt.s32.totalorder %s23, 1
      %s297 = scalar_select %p296, %s23, 1
      %s298 = smul.addr %s297, 18
      %s299 = smul.addr %s298, 4
      %s300 = scalar_lea.vmem %s0, %s299
      %p301 = pneg %p52
      %p302 = pneg %p49
      %p303 = scmp.lt.s32.totalorder %s23, 1
      %s304 = scalar_select %p303, %s23, 1
      %s305 = smul.addr %s304, 18
      %s306 = smul.addr %s305, 4
      %s307 = scalar_lea.vmem %s1, %s306
      %p308 = pneg %p78
      %p309 = pneg %p75
      %p310 = scmp.lt.s32.totalorder %s23, 1
      %s311 = scalar_select %p310, %s23, 1
      %s312 = smul.addr %s311, 18
      %s313 = smul.addr %s312, 4
      %s314 = scalar_lea.vmem %s2, %s313
      %p315 = pneg %p104
      %p316 = pneg %p101
      %p317 = scmp.lt.s32.totalorder %s23, 1
      %s318 = scalar_select %p317, %s23, 1
      %s319 = smul.addr %s318, 18
      %s320 = smul.addr %s319, 4
      %s321 = scalar_lea.vmem %s3, %s320
      %p322 = pneg %p130
      %p323 = pneg %p127
      %p324 = pneg %p151
      %p325 = pneg %p148
      %p326 = pneg %p179
      %p327 = pneg %p176
      %s328 = smul.u32 8, %s24
      %p329 = scmp.lt.s32.totalorder %s23, 1
      %s330 = scalar_select %p329, %s23, 1
      %p331 = scmp.lt.s32.totalorder %s328, 7
      %s332 = scalar_select %p331, %s328, 7
      %s333 = smul.addr %s330, 8
      %s334 = sadd.s32 %s332, %s333
      %s335 = smul.addr %s334, 4
      %s336 = scalar_lea.vmem %s5, %s335
      %p337 = pneg %p207
      %p338 = pneg %p204
      %s339 = sadd.s32 %s23, %s24
      %p340 = scmp.lt.s32.totalorder %s339, 1
      %s341 = scalar_select %p340, %s339, 1
      %s342 = smul.addr %s341, 8
      %s343 = scalar_lea.vmem %s6, %s342
      %p344 = pneg %p235
      %p345 = pneg %p232
      %s346 = sadd.s32 %s23, %s24
      %p347 = scmp.lt.s32.totalorder %s346, 1
      %s348 = scalar_select %p347, %s346, 1
      %s349 = smul.addr %s348, 8
      %s350 = scalar_lea.vmem %s7, %s349
      %p351 = scmp.lt.s32.totalorder %s23, 1
      %s352 = scalar_select %p351, %s23, 1
      %s353 = smul.addr %s352, 18
      %s354 = smul.addr %s353, 4
      %s355 = scalar_lea.vmem %s0, %s354
      %p356 = scmp.lt.s32.totalorder %s23, 1
      %s357 = scalar_select %p356, %s23, 1
      %s358 = smul.addr %s357, 18
      %s359 = smul.addr %s358, 4
      %s360 = scalar_lea.vmem %s1, %s359
      %p361 = scmp.lt.s32.totalorder %s23, 1
      %s362 = scalar_select %p361, %s23, 1
      %s363 = smul.addr %s362, 18
      %s364 = smul.addr %s363, 4
      %s365 = scalar_lea.vmem %s2, %s364
      %p366 = scmp.lt.s32.totalorder %s23, 1
      %s367 = scalar_select %p366, %s23, 1
      %s368 = smul.addr %s367, 18
      %s369 = smul.addr %s368, 4
      %s370 = scalar_lea.vmem %s3, %s369
      %s371 = smul.u32 8, %s24
      %p372 = scmp.lt.s32.totalorder %s23, 1
      %s373 = scalar_select %p372, %s23, 1
      %p374 = scmp.lt.s32.totalorder %s371, 7
      %s375 = scalar_select %p374, %s371, 7
      %s376 = smul.addr %s373, 8
      %s377 = sadd.s32 %s375, %s376
      %s378 = smul.addr %s377, 4
      %s379 = scalar_lea.vmem %s5, %s378
      %s380 = smul.u32 8, %s24
      %s381 = sadd.s32 %s23, %s24
      %p382 = scmp.lt.s32.totalorder %s381, 1
      %s383 = scalar_select %p382, %s381, 1
      %s384 = smul.addr %s383, 8
      %s385 = scalar_lea.vmem %s6, %s384
      %s386 = sadd.s32 %s23, %s24
      %s387 = sadd.s32 %s23, %s24
      %p388 = scmp.lt.s32.totalorder %s387, 1
      %s389 = scalar_select %p388, %s387, 1
      %s390 = smul.addr %s389, 8
      %s391 = scalar_lea.vmem %s7, %s390
      %s392 = sadd.s32 %s23, %s24
      %s394 = smul.u32 %s24, 8
      %s395 = smul.u32 %s394, 2
      %s396 = smul.addr %s395, 4
      %s397 = scalar_lea.vmem %s355, %s396
      %v398 = vld [vmem:[%s397] sm:$0xf]
      %v399 = vld [vmem:[%s397 + $0x8] sm:$0xf]
      %v400 = vld [vmem:[%s397 + $0x10] sm:$0xf]
      %v401 = vld [vmem:[%s397 + $0x18] sm:$0xf]
      %v402 = vld [vmem:[%s397 + $0x20] sm:$0xf]
      %v403 = vld [vmem:[%s397 + $0x28] sm:$0xf]
      %v404 = vld [vmem:[%s397 + $0x30] sm:$0xf]
      %v405 = vld [vmem:[%s397 + $0x38] sm:$0xf]
      %v406 = vld [vmem:[%s4] sm:$0x3]
      %s407 = smul.addr %s395, 4
      %s408 = scalar_lea.vmem %s360, %s407
      %v409 = vld [vmem:[%s408] sm:$0xf]
      %v410 = vld [vmem:[%s408 + $0x8] sm:$0xf]
      %v411 = vld [vmem:[%s408 + $0x10] sm:$0xf]
      %v412 = vld [vmem:[%s408 + $0x18] sm:$0xf]
      %v413 = vld [vmem:[%s408 + $0x20] sm:$0xf]
      %v414 = vld [vmem:[%s408 + $0x28] sm:$0xf]
      %v415 = vld [vmem:[%s408 + $0x30] sm:$0xf]
      %v416 = vld [vmem:[%s408 + $0x38] sm:$0xf]
      %s417 = scalar_lea.vmem %s4, 2
      %v418 = vld [vmem:[%s417] sm:$0x3]
      %v427 = vunpack.c.l.b16 %v409
      %v428 = vunpack.c.l.b16 %v410
      %v429 = vunpack.c.l.b16 %v411
      %v430 = vunpack.c.l.b16 %v412
      %v431 = vunpack.c.l.b16 %v413
      %v432 = vunpack.c.l.b16 %v414
      %v433 = vunpack.c.l.b16 %v415
      %v434 = vunpack.c.l.b16 %v416
      %v435 = vpack.c.b16 %v428, %v427
      %v436 = vpack.c.b16 %v430, %v429
      %v437 = vpack.c.b16 %v432, %v431
      %v438 = vpack.c.b16 %v434, %v433
      %vm439 = vcmask 31744
      %v441 = vsel %vm439, %v435, 0
      %v444 = vsel %vm439, %v436, 0
      %v447 = vsel %vm439, %v437, 0
      %v450 = vsel %vm439, %v438, 0
      %vm452 = vcmask 1041408
      %v454 = vsel %vm452, %v418, 0
      %456 = vmatpush.bf16.msra.mxu0 0
      %457 = vmatpush.bf16.msra.mxu0 0
      %458 = vmatpush.bf16.msra.mxu0 0
      %459 = vmatpush.bf16.msra.mxu0 0
      %460 = vmatpush.bf16.msra.mxu0 0
      %461 = vmatpush.bf16.msra.mxu0 0
      %462 = vmatpush.bf16.msra.mxu0 0
      %463 = vmatpush.bf16.msra.mxu0 %v454
      %464 = vmatmul.bf16.gmra.mxu0 %v441
      %v465 = vpop.f32.mrf.mxu0
      %v466 = vadd.f32 0.0, %v465
      %v467 = vpop.f32.mrf.mxu0
      %v468 = vadd.f32 0.0, %v467
      %469 = vmatmul.bf16.gmra.mxu0 %v444
      %v470 = vpop.f32.mrf.mxu0
      %v471 = vadd.f32 0.0, %v470
      %v472 = vpop.f32.mrf.mxu0
      %v473 = vadd.f32 0.0, %v472
      %474 = vmatmul.bf16.gmra.mxu0 %v447
      %v475 = vpop.f32.mrf.mxu0
      %v476 = vadd.f32 0.0, %v475
      %v477 = vpop.f32.mrf.mxu0
      %v478 = vadd.f32 0.0, %v477
      %479 = vmatmul.bf16.gmra.mxu0 %v450
      %v480 = vpop.f32.mrf.mxu0
      %v481 = vadd.f32 0.0, %v480
      %v482 = vpop.f32.mrf.mxu0
      %v483 = vadd.f32 0.0, %v482
      %484 = vdwg.mxu0
      %v493 = vunpack.c.l.b16 %v398
      %v494 = vunpack.c.l.b16 %v399
      %v495 = vunpack.c.l.b16 %v400
      %v496 = vunpack.c.l.b16 %v401
      %v497 = vunpack.c.l.b16 %v402
      %v498 = vunpack.c.l.b16 %v403
      %v499 = vunpack.c.l.b16 %v404
      %v500 = vunpack.c.l.b16 %v405
      %v501 = vpack.c.b16 %v494, %v493
      %v502 = vpack.c.b16 %v496, %v495
      %v503 = vpack.c.b16 %v498, %v497
      %v504 = vpack.c.b16 %v500, %v499
      %v506 = vsel %vm439, %v501, 0
      %v509 = vsel %vm439, %v502, 0
      %v512 = vsel %vm439, %v503, 0
      %v515 = vsel %vm439, %v504, 0
      %v518 = vsel %vm452, %v406, 0
      %520 = vmatpush.bf16.msra.mxu0 0
      %521 = vmatpush.bf16.msra.mxu0 0
      %522 = vmatpush.bf16.msra.mxu0 0
      %523 = vmatpush.bf16.msra.mxu0 0
      %524 = vmatpush.bf16.msra.mxu0 0
      %525 = vmatpush.bf16.msra.mxu0 0
      %526 = vmatpush.bf16.msra.mxu0 0
      %527 = vmatpush.bf16.msra.mxu0 %v518
      %528 = vmatmul.bf16.gmra.mxu0 %v506
      %v529 = vpop.f32.mrf.mxu0
      %v530 = vadd.f32 %v466, %v529
      %v531 = vpop.f32.mrf.mxu0
      %v532 = vadd.f32 %v468, %v531
      %533 = vmatmul.bf16.gmra.mxu0 %v509
      %v534 = vpop.f32.mrf.mxu0
      %v535 = vadd.f32 %v471, %v534
      %v536 = vpop.f32.mrf.mxu0
      %v537 = vadd.f32 %v473, %v536
      %538 = vmatmul.bf16.gmra.mxu0 %v512
      %v539 = vpop.f32.mrf.mxu0
      %v540 = vadd.f32 %v476, %v539
      %v541 = vpop.f32.mrf.mxu0
      %v542 = vadd.f32 %v478, %v541
      %543 = vmatmul.bf16.gmra.mxu0 %v515
      %v544 = vpop.f32.mrf.mxu0
      %v545 = vadd.f32 %v481, %v544
      %v546 = vpop.f32.mrf.mxu0
      %v547 = vadd.f32 %v483, %v546
      %548 = vdwg.mxu0
      %v549 = vld [vmem:[%s397] sm:$0xf]
      %v550 = vld [vmem:[%s397 + $0x4] sm:$0x1]
      %v551 = vld [vmem:[%s397 + $0x8] sm:$0xf]
      %v552 = vld [vmem:[%s397 + $0xc] sm:$0x1]
      %v553 = vld [vmem:[%s397 + $0x10] sm:$0xf]
      %v554 = vld [vmem:[%s397 + $0x14] sm:$0x1]
      %v555 = vld [vmem:[%s397 + $0x18] sm:$0xf]
      %v556 = vld [vmem:[%s397 + $0x1c] sm:$0x1]
      %v557 = vld [vmem:[%s397 + $0x20] sm:$0xf]
      %v558 = vld [vmem:[%s397 + $0x24] sm:$0x1]
      %v559 = vld [vmem:[%s397 + $0x28] sm:$0xf]
      %v560 = vld [vmem:[%s397 + $0x2c] sm:$0x1]
      %v561 = vld [vmem:[%s397 + $0x30] sm:$0xf]
      %v562 = vld [vmem:[%s397 + $0x34] sm:$0x1]
      %v563 = vld [vmem:[%s397 + $0x38] sm:$0xf]
      %v564 = vld [vmem:[%s397 + $0x3c] sm:$0x1]
      %vm565 = vsmask.f32 3328
      %vm566 = vsmask.f32 7440
      %vm567 = vmor %vm565, %vm566
      %v569 = vshrl.u32 %v549, 16
      %v571 = vrot.slane %v569, 4
      %v572 = vshll.u32 %v549, 16
      %v574 = vrot.slane %v572, 5
      %v575 = vor.u32 %v571, %v574
      %v576 = vrot.slane %v575, 4
      %v578 = vshll.u32 %v550, 16
      %v580 = vrot.slane %v578, 5
      %v581 = vsel %vm567, %v576, %v580
      %v583 = vshrl.u32 %v551, 16
      %v585 = vrot.slane %v583, 4
      %v586 = vshll.u32 %v551, 16
      %v588 = vrot.slane %v586, 5
      %v589 = vor.u32 %v585, %v588
      %v590 = vrot.slane %v589, 4
      %v592 = vshll.u32 %v552, 16
      %v594 = vrot.slane %v592, 5
      %v595 = vsel %vm567, %v590, %v594
      %v597 = vshrl.u32 %v553, 16
      %v599 = vrot.slane %v597, 4
      %v600 = vshll.u32 %v553, 16
      %v602 = vrot.slane %v600, 5
      %v603 = vor.u32 %v599, %v602
      %v604 = vrot.slane %v603, 4
      %v606 = vshll.u32 %v554, 16
      %v608 = vrot.slane %v606, 5
      %v609 = vsel %vm567, %v604, %v608
      %v611 = vshrl.u32 %v555, 16
      %v613 = vrot.slane %v611, 4
      %v614 = vshll.u32 %v555, 16
      %v616 = vrot.slane %v614, 5
      %v617 = vor.u32 %v613, %v616
      %v618 = vrot.slane %v617, 4
      %v620 = vshll.u32 %v556, 16
      %v622 = vrot.slane %v620, 5
      %v623 = vsel %vm567, %v618, %v622
      %v625 = vshrl.u32 %v557, 16
      %v627 = vrot.slane %v625, 4
      %v628 = vshll.u32 %v557, 16
      %v630 = vrot.slane %v628, 5
      %v631 = vor.u32 %v627, %v630
      %v632 = vrot.slane %v631, 4
      %v634 = vshll.u32 %v558, 16
      %v636 = vrot.slane %v634, 5
      %v637 = vsel %vm567, %v632, %v636
      %v639 = vshrl.u32 %v559, 16
      %v641 = vrot.slane %v639, 4
      %v642 = vshll.u32 %v559, 16
      %v644 = vrot.slane %v642, 5
      %v645 = vor.u32 %v641, %v644
      %v646 = vrot.slane %v645, 4
      %v648 = vshll.u32 %v560, 16
      %v650 = vrot.slane %v648, 5
      %v651 = vsel %vm567, %v646, %v650
      %v653 = vshrl.u32 %v561, 16
      %v655 = vrot.slane %v653, 4
      %v656 = vshll.u32 %v561, 16
      %v658 = vrot.slane %v656, 5
      %v659 = vor.u32 %v655, %v658
      %v660 = vrot.slane %v659, 4
      %v662 = vshll.u32 %v562, 16
      %v664 = vrot.slane %v662, 5
      %v665 = vsel %vm567, %v660, %v664
      %v667 = vshrl.u32 %v563, 16
      %v669 = vrot.slane %v667, 4
      %v670 = vshll.u32 %v563, 16
      %v672 = vrot.slane %v670, 5
      %v673 = vor.u32 %v669, %v672
      %v674 = vrot.slane %v673, 4
      %v676 = vshll.u32 %v564, 16
      %v678 = vrot.slane %v676, 5
      %v679 = vsel %vm567, %v674, %v678
      %s680 = scalar_lea.vmem %s4, 4
      %v681 = vld [vmem:[%s680] sm:$0x3]
      %v682 = vunpack.c.l.b16 %v581
      %v683 = vunpack.c.l.b16 %v595
      %v684 = vunpack.c.l.b16 %v609
      %v685 = vunpack.c.l.b16 %v623
      %v686 = vunpack.c.l.b16 %v637
      %v687 = vunpack.c.l.b16 %v651
      %v688 = vunpack.c.l.b16 %v665
      %v689 = vunpack.c.l.b16 %v679
      %v690 = vpack.c.b16 %v683, %v682
      %v691 = vpack.c.b16 %v685, %v684
      %v692 = vpack.c.b16 %v687, %v686
      %v693 = vpack.c.b16 %v689, %v688
      %v695 = vsel %vm439, %v690, 0
      %v698 = vsel %vm439, %v691, 0
      %v701 = vsel %vm439, %v692, 0
      %v704 = vsel %vm439, %v693, 0
      %v707 = vsel %vm452, %v681, 0
      %709 = vmatpush.bf16.msra.mxu0 0
      %710 = vmatpush.bf16.msra.mxu0 0
      %711 = vmatpush.bf16.msra.mxu0 0
      %712 = vmatpush.bf16.msra.mxu0 0
      %713 = vmatpush.bf16.msra.mxu0 0
      %714 = vmatpush.bf16.msra.mxu0 0
      %715 = vmatpush.bf16.msra.mxu0 0
      %716 = vmatpush.bf16.msra.mxu0 %v707
      %717 = vmatmul.bf16.gmra.mxu0 %v695
      %v718 = vpop.f32.mrf.mxu0
      %v719 = vadd.f32 0.0, %v718
      %v720 = vpop.f32.mrf.mxu0
      %v721 = vadd.f32 0.0, %v720
      %722 = vmatmul.bf16.gmra.mxu0 %v698
      %v723 = vpop.f32.mrf.mxu0
      %v724 = vadd.f32 0.0, %v723
      %v725 = vpop.f32.mrf.mxu0
      %v726 = vadd.f32 0.0, %v725
      %727 = vmatmul.bf16.gmra.mxu0 %v701
      %v728 = vpop.f32.mrf.mxu0
      %v729 = vadd.f32 0.0, %v728
      %v730 = vpop.f32.mrf.mxu0
      %v731 = vadd.f32 0.0, %v730
      %732 = vmatmul.bf16.gmra.mxu0 %v704
      %v733 = vpop.f32.mrf.mxu0
      %v734 = vadd.f32 0.0, %v733
      %v735 = vpop.f32.mrf.mxu0
      %v736 = vadd.f32 0.0, %v735
      %737 = vdwg.mxu0
      %v738 = vadd.f32 %v530, %v719
      %v739 = vadd.f32 %v532, %v721
      %v740 = vadd.f32 %v535, %v724
      %v741 = vadd.f32 %v537, %v726
      %v742 = vadd.f32 %v540, %v729
      %v743 = vadd.f32 %v542, %v731
      %v744 = vadd.f32 %v545, %v734
      %v745 = vadd.f32 %v547, %v736
      %v746 = vld [vmem:[%s408] sm:$0xf]
      %v747 = vld [vmem:[%s408 + $0x4] sm:$0x1]
      %v748 = vld [vmem:[%s408 + $0x8] sm:$0xf]
      %v749 = vld [vmem:[%s408 + $0xc] sm:$0x1]
      %v750 = vld [vmem:[%s408 + $0x10] sm:$0xf]
      %v751 = vld [vmem:[%s408 + $0x14] sm:$0x1]
      %v752 = vld [vmem:[%s408 + $0x18] sm:$0xf]
      %v753 = vld [vmem:[%s408 + $0x1c] sm:$0x1]
      %v754 = vld [vmem:[%s408 + $0x20] sm:$0xf]
      %v755 = vld [vmem:[%s408 + $0x24] sm:$0x1]
      %v756 = vld [vmem:[%s408 + $0x28] sm:$0xf]
      %v757 = vld [vmem:[%s408 + $0x2c] sm:$0x1]
      %v758 = vld [vmem:[%s408 + $0x30] sm:$0xf]
      %v759 = vld [vmem:[%s408 + $0x34] sm:$0x1]
      %v760 = vld [vmem:[%s408 + $0x38] sm:$0xf]
      %v761 = vld [vmem:[%s408 + $0x3c] sm:$0x1]
      %v763 = vshrl.u32 %v746, 16
      %v765 = vrot.slane %v763, 4
      %v766 = vshll.u32 %v746, 16
      %v768 = vrot.slane %v766, 5
      %v769 = vor.u32 %v765, %v768
      %v770 = vrot.slane %v769, 4
      %v772 = vshll.u32 %v747, 16
      %v774 = vrot.slane %v772, 5
      %v775 = vsel %vm567, %v770, %v774
      %v777 = vshrl.u32 %v748, 16
      %v779 = vrot.slane %v777, 4
      %v780 = vshll.u32 %v748, 16
      %v782 = vrot.slane %v780, 5
      %v783 = vor.u32 %v779, %v782
      %v784 = vrot.slane %v783, 4
      %v786 = vshll.u32 %v749, 16
      %v788 = vrot.slane %v786, 5
      %v789 = vsel %vm567, %v784, %v788
      %v791 = vshrl.u32 %v750, 16
      %v793 = vrot.slane %v791, 4
      %v794 = vshll.u32 %v750, 16
      %v796 = vrot.slane %v794, 5
      %v797 = vor.u32 %v793, %v796
      %v798 = vrot.slane %v797, 4
      %v800 = vshll.u32 %v751, 16
      %v802 = vrot.slane %v800, 5
      %v803 = vsel %vm567, %v798, %v802
      %v805 = vshrl.u32 %v752, 16
      %v807 = vrot.slane %v805, 4
      %v808 = vshll.u32 %v752, 16
      %v810 = vrot.slane %v808, 5
      %v811 = vor.u32 %v807, %v810
      %v812 = vrot.slane %v811, 4
      %v814 = vshll.u32 %v753, 16
      %v816 = vrot.slane %v814, 5
      %v817 = vsel %vm567, %v812, %v816
      %v819 = vshrl.u32 %v754, 16
      %v821 = vrot.slane %v819, 4
      %v822 = vshll.u32 %v754, 16
      %v824 = vrot.slane %v822, 5
      %v825 = vor.u32 %v821, %v824
      %v826 = vrot.slane %v825, 4
      %v828 = vshll.u32 %v755, 16
      %v830 = vrot.slane %v828, 5
      %v831 = vsel %vm567, %v826, %v830
      %v833 = vshrl.u32 %v756, 16
      %v835 = vrot.slane %v833, 4
      %v836 = vshll.u32 %v756, 16
      %v838 = vrot.slane %v836, 5
      %v839 = vor.u32 %v835, %v838
      %v840 = vrot.slane %v839, 4
      %v842 = vshll.u32 %v757, 16
      %v844 = vrot.slane %v842, 5
      %v845 = vsel %vm567, %v840, %v844
      %v847 = vshrl.u32 %v758, 16
      %v849 = vrot.slane %v847, 4
      %v850 = vshll.u32 %v758, 16
      %v852 = vrot.slane %v850, 5
      %v853 = vor.u32 %v849, %v852
      %v854 = vrot.slane %v853, 4
      %v856 = vshll.u32 %v759, 16
      %v858 = vrot.slane %v856, 5
      %v859 = vsel %vm567, %v854, %v858
      %v861 = vshrl.u32 %v760, 16
      %v863 = vrot.slane %v861, 4
      %v864 = vshll.u32 %v760, 16
      %v866 = vrot.slane %v864, 5
      %v867 = vor.u32 %v863, %v866
      %v868 = vrot.slane %v867, 4
      %v870 = vshll.u32 %v761, 16
      %v872 = vrot.slane %v870, 5
      %v873 = vsel %vm567, %v868, %v872
      %s874 = scalar_lea.vmem %s4, 6
      %v875 = vld [vmem:[%s874] sm:$0x3]
      %v876 = vunpack.c.l.b16 %v775
      %v877 = vunpack.c.l.b16 %v789
      %v878 = vunpack.c.l.b16 %v803
      %v879 = vunpack.c.l.b16 %v817
      %v880 = vunpack.c.l.b16 %v831
      %v881 = vunpack.c.l.b16 %v845
      %v882 = vunpack.c.l.b16 %v859
      %v883 = vunpack.c.l.b16 %v873
      %v884 = vpack.c.b16 %v877, %v876
      %v885 = vpack.c.b16 %v879, %v878
      %v886 = vpack.c.b16 %v881, %v880
      %v887 = vpack.c.b16 %v883, %v882
      %v889 = vsel %vm439, %v884, 0
      %v892 = vsel %vm439, %v885, 0
      %v895 = vsel %vm439, %v886, 0
      %v898 = vsel %vm439, %v887, 0
      %v901 = vsel %vm452, %v875, 0
      %903 = vmatpush.bf16.msra.mxu0 0
      %904 = vmatpush.bf16.msra.mxu0 0
      %905 = vmatpush.bf16.msra.mxu0 0
      %906 = vmatpush.bf16.msra.mxu0 0
      %907 = vmatpush.bf16.msra.mxu0 0
      %908 = vmatpush.bf16.msra.mxu0 0
      %909 = vmatpush.bf16.msra.mxu0 0
      %910 = vmatpush.bf16.msra.mxu0 %v901
      %911 = vmatmul.bf16.gmra.mxu0 %v889
      %v912 = vpop.f32.mrf.mxu0
      %v913 = vadd.f32 0.0, %v912
      %v914 = vpop.f32.mrf.mxu0
      %v915 = vadd.f32 0.0, %v914
      %916 = vmatmul.bf16.gmra.mxu0 %v892
      %v917 = vpop.f32.mrf.mxu0
      %v918 = vadd.f32 0.0, %v917
      %v919 = vpop.f32.mrf.mxu0
      %v920 = vadd.f32 0.0, %v919
      %921 = vmatmul.bf16.gmra.mxu0 %v895
      %v922 = vpop.f32.mrf.mxu0
      %v923 = vadd.f32 0.0, %v922
      %v924 = vpop.f32.mrf.mxu0
      %v925 = vadd.f32 0.0, %v924
      %926 = vmatmul.bf16.gmra.mxu0 %v898
      %v927 = vpop.f32.mrf.mxu0
      %v928 = vadd.f32 0.0, %v927
      %v929 = vpop.f32.mrf.mxu0
      %v930 = vadd.f32 0.0, %v929
      %931 = vdwg.mxu0
      %v932 = vadd.f32 %v738, %v913
      %v933 = vadd.f32 %v739, %v915
      %v934 = vadd.f32 %v740, %v918
      %v935 = vadd.f32 %v741, %v920
      %v936 = vadd.f32 %v742, %v923
      %v937 = vadd.f32 %v743, %v925
      %v938 = vadd.f32 %v744, %v928
      %v939 = vadd.f32 %v745, %v930
      %s940 = smul.addr %s395, 4
      %s941 = scalar_lea.vmem %s365, %s940
      %v942 = vld [vmem:[%s941] sm:$0xf]
      %v943 = vld [vmem:[%s941 + $0x8] sm:$0xf]
      %v944 = vld [vmem:[%s941 + $0x10] sm:$0xf]
      %v945 = vld [vmem:[%s941 + $0x18] sm:$0xf]
      %v946 = vld [vmem:[%s941 + $0x20] sm:$0xf]
      %v947 = vld [vmem:[%s941 + $0x28] sm:$0xf]
      %v948 = vld [vmem:[%s941 + $0x30] sm:$0xf]
      %v949 = vld [vmem:[%s941 + $0x38] sm:$0xf]
      %s950 = scalar_lea.vmem %s4, 8
      %v951 = vld [vmem:[%s950] sm:$0x3]
      %v960 = vunpack.c.l.b16 %v942
      %v961 = vunpack.c.l.b16 %v943
      %v962 = vunpack.c.l.b16 %v944
      %v963 = vunpack.c.l.b16 %v945
      %v964 = vunpack.c.l.b16 %v946
      %v965 = vunpack.c.l.b16 %v947
      %v966 = vunpack.c.l.b16 %v948
      %v967 = vunpack.c.l.b16 %v949
      %v968 = vpack.c.b16 %v961, %v960
      %v969 = vpack.c.b16 %v963, %v962
      %v970 = vpack.c.b16 %v965, %v964
      %v971 = vpack.c.b16 %v967, %v966
      %v973 = vsel %vm439, %v968, 0
      %v976 = vsel %vm439, %v969, 0
      %v979 = vsel %vm439, %v970, 0
      %v982 = vsel %vm439, %v971, 0
      %v985 = vsel %vm452, %v951, 0
      %987 = vmatpush.bf16.msra.mxu0 0
      %988 = vmatpush.bf16.msra.mxu0 0
      %989 = vmatpush.bf16.msra.mxu0 0
      %990 = vmatpush.bf16.msra.mxu0 0
      %991 = vmatpush.bf16.msra.mxu0 0
      %992 = vmatpush.bf16.msra.mxu0 0
      %993 = vmatpush.bf16.msra.mxu0 0
      %994 = vmatpush.bf16.msra.mxu0 %v985
      %995 = vmatmul.bf16.gmra.mxu0 %v973
      %v996 = vpop.f32.mrf.mxu0
      %v997 = vadd.f32 0.0, %v996
      %v998 = vpop.f32.mrf.mxu0
      %v999 = vadd.f32 0.0, %v998
      %1000 = vmatmul.bf16.gmra.mxu0 %v976
      %v1001 = vpop.f32.mrf.mxu0
      %v1002 = vadd.f32 0.0, %v1001
      %v1003 = vpop.f32.mrf.mxu0
      %v1004 = vadd.f32 0.0, %v1003
      %1005 = vmatmul.bf16.gmra.mxu0 %v979
      %v1006 = vpop.f32.mrf.mxu0
      %v1007 = vadd.f32 0.0, %v1006
      %v1008 = vpop.f32.mrf.mxu0
      %v1009 = vadd.f32 0.0, %v1008
      %1010 = vmatmul.bf16.gmra.mxu0 %v982
      %v1011 = vpop.f32.mrf.mxu0
      %v1012 = vadd.f32 0.0, %v1011
      %v1013 = vpop.f32.mrf.mxu0
      %v1014 = vadd.f32 0.0, %v1013
      %1015 = vdwg.mxu0
      %v1016 = vadd.f32 %v932, %v997
      %v1017 = vadd.f32 %v933, %v999
      %v1018 = vadd.f32 %v934, %v1002
      %v1019 = vadd.f32 %v935, %v1004
      %v1020 = vadd.f32 %v936, %v1007
      %v1021 = vadd.f32 %v937, %v1009
      %v1022 = vadd.f32 %v938, %v1012
      %v1023 = vadd.f32 %v939, %v1014
      %s1024 = smul.addr %s395, 4
      %s1025 = scalar_lea.vmem %s370, %s1024
      %v1026 = vld [vmem:[%s1025] sm:$0xf]
      %v1027 = vld [vmem:[%s1025 + $0x8] sm:$0xf]
      %v1028 = vld [vmem:[%s1025 + $0x10] sm:$0xf]
      %v1029 = vld [vmem:[%s1025 + $0x18] sm:$0xf]
      %v1030 = vld [vmem:[%s1025 + $0x20] sm:$0xf]
      %v1031 = vld [vmem:[%s1025 + $0x28] sm:$0xf]
      %v1032 = vld [vmem:[%s1025 + $0x30] sm:$0xf]
      %v1033 = vld [vmem:[%s1025 + $0x38] sm:$0xf]
      %s1034 = scalar_lea.vmem %s4, 10
      %v1035 = vld [vmem:[%s1034] sm:$0x3]
      %v1044 = vunpack.c.l.b16 %v1026
      %v1045 = vunpack.c.l.b16 %v1027
      %v1046 = vunpack.c.l.b16 %v1028
      %v1047 = vunpack.c.l.b16 %v1029
      %v1048 = vunpack.c.l.b16 %v1030
      %v1049 = vunpack.c.l.b16 %v1031
      %v1050 = vunpack.c.l.b16 %v1032
      %v1051 = vunpack.c.l.b16 %v1033
      %v1052 = vpack.c.b16 %v1045, %v1044
      %v1053 = vpack.c.b16 %v1047, %v1046
      %v1054 = vpack.c.b16 %v1049, %v1048
      %v1055 = vpack.c.b16 %v1051, %v1050
      %v1057 = vsel %vm439, %v1052, 0
      %v1060 = vsel %vm439, %v1053, 0
      %v1063 = vsel %vm439, %v1054, 0
      %v1066 = vsel %vm439, %v1055, 0
      %v1069 = vsel %vm452, %v1035, 0
      %1071 = vmatpush.bf16.msra.mxu0 0
      %1072 = vmatpush.bf16.msra.mxu0 0
      %1073 = vmatpush.bf16.msra.mxu0 0
      %1074 = vmatpush.bf16.msra.mxu0 0
      %1075 = vmatpush.bf16.msra.mxu0 0
      %1076 = vmatpush.bf16.msra.mxu0 0
      %1077 = vmatpush.bf16.msra.mxu0 0
      %1078 = vmatpush.bf16.msra.mxu0 %v1069
      %1079 = vmatmul.bf16.gmra.mxu0 %v1057
      %v1080 = vpop.f32.mrf.mxu0
      %v1081 = vadd.f32 0.0, %v1080
      %v1082 = vpop.f32.mrf.mxu0
      %v1083 = vadd.f32 0.0, %v1082
      %1084 = vmatmul.bf16.gmra.mxu0 %v1060
      %v1085 = vpop.f32.mrf.mxu0
      %v1086 = vadd.f32 0.0, %v1085
      %v1087 = vpop.f32.mrf.mxu0
      %v1088 = vadd.f32 0.0, %v1087
      %1089 = vmatmul.bf16.gmra.mxu0 %v1063
      %v1090 = vpop.f32.mrf.mxu0
      %v1091 = vadd.f32 0.0, %v1090
      %v1092 = vpop.f32.mrf.mxu0
      %v1093 = vadd.f32 0.0, %v1092
      %1094 = vmatmul.bf16.gmra.mxu0 %v1066
      %v1095 = vpop.f32.mrf.mxu0
      %v1096 = vadd.f32 0.0, %v1095
      %v1097 = vpop.f32.mrf.mxu0
      %v1098 = vadd.f32 0.0, %v1097
      %1099 = vdwg.mxu0
      %v1100 = vadd.f32 %v1016, %v1081
      %v1101 = vadd.f32 %v1017, %v1083
      %v1102 = vadd.f32 %v1018, %v1086
      %v1103 = vadd.f32 %v1019, %v1088
      %v1104 = vadd.f32 %v1020, %v1091
      %v1105 = vadd.f32 %v1021, %v1093
      %v1106 = vadd.f32 %v1022, %v1096
      %v1107 = vadd.f32 %v1023, %v1098
      %v1108 = vld [vmem:[%s941] sm:$0xf]
      %v1109 = vld [vmem:[%s941 + $0x4] sm:$0x1]
      %v1110 = vld [vmem:[%s941 + $0x8] sm:$0xf]
      %v1111 = vld [vmem:[%s941 + $0xc] sm:$0x1]
      %v1112 = vld [vmem:[%s941 + $0x10] sm:$0xf]
      %v1113 = vld [vmem:[%s941 + $0x14] sm:$0x1]
      %v1114 = vld [vmem:[%s941 + $0x18] sm:$0xf]
      %v1115 = vld [vmem:[%s941 + $0x1c] sm:$0x1]
      %v1116 = vld [vmem:[%s941 + $0x20] sm:$0xf]
      %v1117 = vld [vmem:[%s941 + $0x24] sm:$0x1]
      %v1118 = vld [vmem:[%s941 + $0x28] sm:$0xf]
      %v1119 = vld [vmem:[%s941 + $0x2c] sm:$0x1]
      %v1120 = vld [vmem:[%s941 + $0x30] sm:$0xf]
      %v1121 = vld [vmem:[%s941 + $0x34] sm:$0x1]
      %v1122 = vld [vmem:[%s941 + $0x38] sm:$0xf]
      %v1123 = vld [vmem:[%s941 + $0x3c] sm:$0x1]
      %v1125 = vshrl.u32 %v1108, 16
      %v1127 = vrot.slane %v1125, 4
      %v1128 = vshll.u32 %v1108, 16
      %v1130 = vrot.slane %v1128, 5
      %v1131 = vor.u32 %v1127, %v1130
      %v1132 = vrot.slane %v1131, 4
      %v1134 = vshll.u32 %v1109, 16
      %v1136 = vrot.slane %v1134, 5
      %v1137 = vsel %vm567, %v1132, %v1136
      %v1139 = vshrl.u32 %v1110, 16
      %v1141 = vrot.slane %v1139, 4
      %v1142 = vshll.u32 %v1110, 16
      %v1144 = vrot.slane %v1142, 5
      %v1145 = vor.u32 %v1141, %v1144
      %v1146 = vrot.slane %v1145, 4
      %v1148 = vshll.u32 %v1111, 16
      %v1150 = vrot.slane %v1148, 5
      %v1151 = vsel %vm567, %v1146, %v1150
      %v1153 = vshrl.u32 %v1112, 16
      %v1155 = vrot.slane %v1153, 4
      %v1156 = vshll.u32 %v1112, 16
      %v1158 = vrot.slane %v1156, 5
      %v1159 = vor.u32 %v1155, %v1158
      %v1160 = vrot.slane %v1159, 4
      %v1162 = vshll.u32 %v1113, 16
      %v1164 = vrot.slane %v1162, 5
      %v1165 = vsel %vm567, %v1160, %v1164
      %v1167 = vshrl.u32 %v1114, 16
      %v1169 = vrot.slane %v1167, 4
      %v1170 = vshll.u32 %v1114, 16
      %v1172 = vrot.slane %v1170, 5
      %v1173 = vor.u32 %v1169, %v1172
      %v1174 = vrot.slane %v1173, 4
      %v1176 = vshll.u32 %v1115, 16
      %v1178 = vrot.slane %v1176, 5
      %v1179 = vsel %vm567, %v1174, %v1178
      %v1181 = vshrl.u32 %v1116, 16
      %v1183 = vrot.slane %v1181, 4
      %v1184 = vshll.u32 %v1116, 16
      %v1186 = vrot.slane %v1184, 5
      %v1187 = vor.u32 %v1183, %v1186
      %v1188 = vrot.slane %v1187, 4
      %v1190 = vshll.u32 %v1117, 16
      %v1192 = vrot.slane %v1190, 5
      %v1193 = vsel %vm567, %v1188, %v1192
      %v1195 = vshrl.u32 %v1118, 16
      %v1197 = vrot.slane %v1195, 4
      %v1198 = vshll.u32 %v1118, 16
      %v1200 = vrot.slane %v1198, 5
      %v1201 = vor.u32 %v1197, %v1200
      %v1202 = vrot.slane %v1201, 4
      %v1204 = vshll.u32 %v1119, 16
      %v1206 = vrot.slane %v1204, 5
      %v1207 = vsel %vm567, %v1202, %v1206
      %v1209 = vshrl.u32 %v1120, 16
      %v1211 = vrot.slane %v1209, 4
      %v1212 = vshll.u32 %v1120, 16
      %v1214 = vrot.slane %v1212, 5
      %v1215 = vor.u32 %v1211, %v1214
      %v1216 = vrot.slane %v1215, 4
      %v1218 = vshll.u32 %v1121, 16
      %v1220 = vrot.slane %v1218, 5
      %v1221 = vsel %vm567, %v1216, %v1220
      %v1223 = vshrl.u32 %v1122, 16
      %v1225 = vrot.slane %v1223, 4
      %v1226 = vshll.u32 %v1122, 16
      %v1228 = vrot.slane %v1226, 5
      %v1229 = vor.u32 %v1225, %v1228
      %v1230 = vrot.slane %v1229, 4
      %v1232 = vshll.u32 %v1123, 16
      %v1234 = vrot.slane %v1232, 5
      %v1235 = vsel %vm567, %v1230, %v1234
      %s1236 = scalar_lea.vmem %s4, 12
      %v1237 = vld [vmem:[%s1236] sm:$0x3]
      %v1238 = vunpack.c.l.b16 %v1137
      %v1239 = vunpack.c.l.b16 %v1151
      %v1240 = vunpack.c.l.b16 %v1165
      %v1241 = vunpack.c.l.b16 %v1179
      %v1242 = vunpack.c.l.b16 %v1193
      %v1243 = vunpack.c.l.b16 %v1207
      %v1244 = vunpack.c.l.b16 %v1221
      %v1245 = vunpack.c.l.b16 %v1235
      %v1246 = vpack.c.b16 %v1239, %v1238
      %v1247 = vpack.c.b16 %v1241, %v1240
      %v1248 = vpack.c.b16 %v1243, %v1242
      %v1249 = vpack.c.b16 %v1245, %v1244
      %v1251 = vsel %vm439, %v1246, 0
      %v1254 = vsel %vm439, %v1247, 0
      %v1257 = vsel %vm439, %v1248, 0
      %v1260 = vsel %vm439, %v1249, 0
      %v1263 = vsel %vm452, %v1237, 0
      %1265 = vmatpush.bf16.msra.mxu0 0
      %1266 = vmatpush.bf16.msra.mxu0 0
      %1267 = vmatpush.bf16.msra.mxu0 0
      %1268 = vmatpush.bf16.msra.mxu0 0
      %1269 = vmatpush.bf16.msra.mxu0 0
      %1270 = vmatpush.bf16.msra.mxu0 0
      %1271 = vmatpush.bf16.msra.mxu0 0
      %1272 = vmatpush.bf16.msra.mxu0 %v1263
      %1273 = vmatmul.bf16.gmra.mxu0 %v1251
      %v1274 = vpop.f32.mrf.mxu0
      %v1275 = vadd.f32 0.0, %v1274
      %v1276 = vpop.f32.mrf.mxu0
      %v1277 = vadd.f32 0.0, %v1276
      %1278 = vmatmul.bf16.gmra.mxu0 %v1254
      %v1279 = vpop.f32.mrf.mxu0
      %v1280 = vadd.f32 0.0, %v1279
      %v1281 = vpop.f32.mrf.mxu0
      %v1282 = vadd.f32 0.0, %v1281
      %1283 = vmatmul.bf16.gmra.mxu0 %v1257
      %v1284 = vpop.f32.mrf.mxu0
      %v1285 = vadd.f32 0.0, %v1284
      %v1286 = vpop.f32.mrf.mxu0
      %v1287 = vadd.f32 0.0, %v1286
      %1288 = vmatmul.bf16.gmra.mxu0 %v1260
      %v1289 = vpop.f32.mrf.mxu0
      %v1290 = vadd.f32 0.0, %v1289
      %v1291 = vpop.f32.mrf.mxu0
      %v1292 = vadd.f32 0.0, %v1291
      %1293 = vdwg.mxu0
      %v1294 = vadd.f32 %v1100, %v1275
      %v1295 = vadd.f32 %v1101, %v1277
      %v1296 = vadd.f32 %v1102, %v1280
      %v1297 = vadd.f32 %v1103, %v1282
      %v1298 = vadd.f32 %v1104, %v1285
      %v1299 = vadd.f32 %v1105, %v1287
      %v1300 = vadd.f32 %v1106, %v1290
      %v1301 = vadd.f32 %v1107, %v1292
      %v1302 = vld [vmem:[%s1025] sm:$0xf]
      %v1303 = vld [vmem:[%s1025 + $0x4] sm:$0x1]
      %v1304 = vld [vmem:[%s1025 + $0x8] sm:$0xf]
      %v1305 = vld [vmem:[%s1025 + $0xc] sm:$0x1]
      %v1306 = vld [vmem:[%s1025 + $0x10] sm:$0xf]
      %v1307 = vld [vmem:[%s1025 + $0x14] sm:$0x1]
      %v1308 = vld [vmem:[%s1025 + $0x18] sm:$0xf]
      %v1309 = vld [vmem:[%s1025 + $0x1c] sm:$0x1]
      %v1310 = vld [vmem:[%s1025 + $0x20] sm:$0xf]
      %v1311 = vld [vmem:[%s1025 + $0x24] sm:$0x1]
      %v1312 = vld [vmem:[%s1025 + $0x28] sm:$0xf]
      %v1313 = vld [vmem:[%s1025 + $0x2c] sm:$0x1]
      %v1314 = vld [vmem:[%s1025 + $0x30] sm:$0xf]
      %v1315 = vld [vmem:[%s1025 + $0x34] sm:$0x1]
      %v1316 = vld [vmem:[%s1025 + $0x38] sm:$0xf]
      %v1317 = vld [vmem:[%s1025 + $0x3c] sm:$0x1]
      %v1319 = vshrl.u32 %v1302, 16
      %v1321 = vrot.slane %v1319, 4
      %v1322 = vshll.u32 %v1302, 16
      %v1324 = vrot.slane %v1322, 5
      %v1325 = vor.u32 %v1321, %v1324
      %v1326 = vrot.slane %v1325, 4
      %v1328 = vshll.u32 %v1303, 16
      %v1330 = vrot.slane %v1328, 5
      %v1331 = vsel %vm567, %v1326, %v1330
      %v1333 = vshrl.u32 %v1304, 16
      %v1335 = vrot.slane %v1333, 4
      %v1336 = vshll.u32 %v1304, 16
      %v1338 = vrot.slane %v1336, 5
      %v1339 = vor.u32 %v1335, %v1338
      %v1340 = vrot.slane %v1339, 4
      %v1342 = vshll.u32 %v1305, 16
      %v1344 = vrot.slane %v1342, 5
      %v1345 = vsel %vm567, %v1340, %v1344
      %v1347 = vshrl.u32 %v1306, 16
      %v1349 = vrot.slane %v1347, 4
      %v1350 = vshll.u32 %v1306, 16
      %v1352 = vrot.slane %v1350, 5
      %v1353 = vor.u32 %v1349, %v1352
      %v1354 = vrot.slane %v1353, 4
      %v1356 = vshll.u32 %v1307, 16
      %v1358 = vrot.slane %v1356, 5
      %v1359 = vsel %vm567, %v1354, %v1358
      %v1361 = vshrl.u32 %v1308, 16
      %v1363 = vrot.slane %v1361, 4
      %v1364 = vshll.u32 %v1308, 16
      %v1366 = vrot.slane %v1364, 5
      %v1367 = vor.u32 %v1363, %v1366
      %v1368 = vrot.slane %v1367, 4
      %v1370 = vshll.u32 %v1309, 16
      %v1372 = vrot.slane %v1370, 5
      %v1373 = vsel %vm567, %v1368, %v1372
      %v1375 = vshrl.u32 %v1310, 16
      %v1377 = vrot.slane %v1375, 4
      %v1378 = vshll.u32 %v1310, 16
      %v1380 = vrot.slane %v1378, 5
      %v1381 = vor.u32 %v1377, %v1380
      %v1382 = vrot.slane %v1381, 4
      %v1384 = vshll.u32 %v1311, 16
      %v1386 = vrot.slane %v1384, 5
      %v1387 = vsel %vm567, %v1382, %v1386
      %v1389 = vshrl.u32 %v1312, 16
      %v1391 = vrot.slane %v1389, 4
      %v1392 = vshll.u32 %v1312, 16
      %v1394 = vrot.slane %v1392, 5
      %v1395 = vor.u32 %v1391, %v1394
      %v1396 = vrot.slane %v1395, 4
      %v1398 = vshll.u32 %v1313, 16
      %v1400 = vrot.slane %v1398, 5
      %v1401 = vsel %vm567, %v1396, %v1400
      %v1403 = vshrl.u32 %v1314, 16
      %v1405 = vrot.slane %v1403, 4
      %v1406 = vshll.u32 %v1314, 16
      %v1408 = vrot.slane %v1406, 5
      %v1409 = vor.u32 %v1405, %v1408
      %v1410 = vrot.slane %v1409, 4
      %v1412 = vshll.u32 %v1315, 16
      %v1414 = vrot.slane %v1412, 5
      %v1415 = vsel %vm567, %v1410, %v1414
      %v1417 = vshrl.u32 %v1316, 16
      %v1419 = vrot.slane %v1417, 4
      %v1420 = vshll.u32 %v1316, 16
      %v1422 = vrot.slane %v1420, 5
      %v1423 = vor.u32 %v1419, %v1422
      %v1424 = vrot.slane %v1423, 4
      %v1426 = vshll.u32 %v1317, 16
      %v1428 = vrot.slane %v1426, 5
      %v1429 = vsel %vm567, %v1424, %v1428
      %s1430 = scalar_lea.vmem %s4, 14
      %v1431 = vld [vmem:[%s1430] sm:$0x3]
      %v1432 = vunpack.c.l.b16 %v1331
      %v1433 = vunpack.c.l.b16 %v1345
      %v1434 = vunpack.c.l.b16 %v1359
      %v1435 = vunpack.c.l.b16 %v1373
      %v1436 = vunpack.c.l.b16 %v1387
      %v1437 = vunpack.c.l.b16 %v1401
      %v1438 = vunpack.c.l.b16 %v1415
      %v1439 = vunpack.c.l.b16 %v1429
      %v1440 = vpack.c.b16 %v1433, %v1432
      %v1441 = vpack.c.b16 %v1435, %v1434
      %v1442 = vpack.c.b16 %v1437, %v1436
      %v1443 = vpack.c.b16 %v1439, %v1438
      %v1445 = vsel %vm439, %v1440, 0
      %v1448 = vsel %vm439, %v1441, 0
      %v1451 = vsel %vm439, %v1442, 0
      %v1454 = vsel %vm439, %v1443, 0
      %v1457 = vsel %vm452, %v1431, 0
      %1459 = vmatpush.bf16.msra.mxu0 0
      %1460 = vmatpush.bf16.msra.mxu0 0
      %1461 = vmatpush.bf16.msra.mxu0 0
      %1462 = vmatpush.bf16.msra.mxu0 0
      %1463 = vmatpush.bf16.msra.mxu0 0
      %1464 = vmatpush.bf16.msra.mxu0 0
      %1465 = vmatpush.bf16.msra.mxu0 0
      %1466 = vmatpush.bf16.msra.mxu0 %v1457
      %1467 = vmatmul.bf16.gmra.mxu0 %v1445
      %v1468 = vpop.f32.mrf.mxu0
      %v1469 = vadd.f32 0.0, %v1468
      %v1470 = vpop.f32.mrf.mxu0
      %v1471 = vadd.f32 0.0, %v1470
      %1472 = vmatmul.bf16.gmra.mxu0 %v1448
      %v1473 = vpop.f32.mrf.mxu0
      %v1474 = vadd.f32 0.0, %v1473
      %v1475 = vpop.f32.mrf.mxu0
      %v1476 = vadd.f32 0.0, %v1475
      %1477 = vmatmul.bf16.gmra.mxu0 %v1451
      %v1478 = vpop.f32.mrf.mxu0
      %v1479 = vadd.f32 0.0, %v1478
      %v1480 = vpop.f32.mrf.mxu0
      %v1481 = vadd.f32 0.0, %v1480
      %1482 = vmatmul.bf16.gmra.mxu0 %v1454
      %v1483 = vpop.f32.mrf.mxu0
      %v1484 = vadd.f32 0.0, %v1483
      %v1485 = vpop.f32.mrf.mxu0
      %v1486 = vadd.f32 0.0, %v1485
      %1487 = vdwg.mxu0
      %v1488 = vadd.f32 %v1294, %v1469
      %v1489 = vadd.f32 %v1295, %v1471
      %v1490 = vadd.f32 %v1296, %v1474
      %v1491 = vadd.f32 %v1297, %v1476
      %v1492 = vadd.f32 %v1298, %v1479
      %v1493 = vadd.f32 %v1299, %v1481
      %v1494 = vadd.f32 %v1300, %v1484
      %v1495 = vadd.f32 %v1301, %v1486
      %s1496 = sadd.s32 %s394, 1
      %s1497 = smul.u32 %s1496, 2
      %s1498 = smul.addr %s1497, 4
      %s1499 = scalar_lea.vmem %s355, %s1498
      %v1500 = vld [vmem:[%s1499] sm:$0xf]
      %v1501 = vld [vmem:[%s1499 + $0x8] sm:$0xf]
      %v1502 = vld [vmem:[%s1499 + $0x10] sm:$0xf]
      %v1503 = vld [vmem:[%s1499 + $0x18] sm:$0xf]
      %v1504 = vld [vmem:[%s1499 + $0x20] sm:$0xf]
      %v1505 = vld [vmem:[%s1499 + $0x28] sm:$0xf]
      %v1506 = vld [vmem:[%s1499 + $0x30] sm:$0xf]
      %v1507 = vld [vmem:[%s1499 + $0x38] sm:$0xf]
      %s1508 = scalar_lea.vmem %s4, 16
      %v1509 = vld [vmem:[%s1508] sm:$0x3]
      %v1518 = vunpack.c.l.b16 %v1500
      %v1519 = vunpack.c.l.b16 %v1501
      %v1520 = vunpack.c.l.b16 %v1502
      %v1521 = vunpack.c.l.b16 %v1503
      %v1522 = vunpack.c.l.b16 %v1504
      %v1523 = vunpack.c.l.b16 %v1505
      %v1524 = vunpack.c.l.b16 %v1506
      %v1525 = vunpack.c.l.b16 %v1507
      %v1526 = vpack.c.b16 %v1519, %v1518
      %v1527 = vpack.c.b16 %v1521, %v1520
      %v1528 = vpack.c.b16 %v1523, %v1522
      %v1529 = vpack.c.b16 %v1525, %v1524
      %v1531 = vsel %vm439, %v1526, 0
      %v1534 = vsel %vm439, %v1527, 0
      %v1537 = vsel %vm439, %v1528, 0
      %v1540 = vsel %vm439, %v1529, 0
      %v1543 = vsel %vm452, %v1509, 0
      %1545 = vmatpush.bf16.msra.mxu0 0
      %1546 = vmatpush.bf16.msra.mxu0 0
      %1547 = vmatpush.bf16.msra.mxu0 0
      %1548 = vmatpush.bf16.msra.mxu0 0
      %1549 = vmatpush.bf16.msra.mxu0 0
      %1550 = vmatpush.bf16.msra.mxu0 0
      %1551 = vmatpush.bf16.msra.mxu0 0
      %1552 = vmatpush.bf16.msra.mxu0 %v1543
      %1553 = vmatmul.bf16.gmra.mxu0 %v1531
      %v1554 = vpop.f32.mrf.mxu0
      %v1555 = vadd.f32 0.0, %v1554
      %v1556 = vpop.f32.mrf.mxu0
      %v1557 = vadd.f32 0.0, %v1556
      %1558 = vmatmul.bf16.gmra.mxu0 %v1534
      %v1559 = vpop.f32.mrf.mxu0
      %v1560 = vadd.f32 0.0, %v1559
      %v1561 = vpop.f32.mrf.mxu0
      %v1562 = vadd.f32 0.0, %v1561
      %1563 = vmatmul.bf16.gmra.mxu0 %v1537
      %v1564 = vpop.f32.mrf.mxu0
      %v1565 = vadd.f32 0.0, %v1564
      %v1566 = vpop.f32.mrf.mxu0
      %v1567 = vadd.f32 0.0, %v1566
      %1568 = vmatmul.bf16.gmra.mxu0 %v1540
      %v1569 = vpop.f32.mrf.mxu0
      %v1570 = vadd.f32 0.0, %v1569
      %v1571 = vpop.f32.mrf.mxu0
      %v1572 = vadd.f32 0.0, %v1571
      %1573 = vdwg.mxu0
      %v1574 = vadd.f32 %v1488, %v1555
      %v1575 = vadd.f32 %v1489, %v1557
      %v1576 = vadd.f32 %v1490, %v1560
      %v1577 = vadd.f32 %v1491, %v1562
      %v1578 = vadd.f32 %v1492, %v1565
      %v1579 = vadd.f32 %v1493, %v1567
      %v1580 = vadd.f32 %v1494, %v1570
      %v1581 = vadd.f32 %v1495, %v1572
      %s1582 = smul.addr %s1497, 4
      %s1583 = scalar_lea.vmem %s360, %s1582
      %v1584 = vld [vmem:[%s1583] sm:$0xf]
      %v1585 = vld [vmem:[%s1583 + $0x8] sm:$0xf]
      %v1586 = vld [vmem:[%s1583 + $0x10] sm:$0xf]
      %v1587 = vld [vmem:[%s1583 + $0x18] sm:$0xf]
      %v1588 = vld [vmem:[%s1583 + $0x20] sm:$0xf]
      %v1589 = vld [vmem:[%s1583 + $0x28] sm:$0xf]
      %v1590 = vld [vmem:[%s1583 + $0x30] sm:$0xf]
      %v1591 = vld [vmem:[%s1583 + $0x38] sm:$0xf]
      %s1592 = scalar_lea.vmem %s4, 18
      %v1593 = vld [vmem:[%s1592] sm:$0x3]
      %v1602 = vunpack.c.l.b16 %v1584
      %v1603 = vunpack.c.l.b16 %v1585
      %v1604 = vunpack.c.l.b16 %v1586
      %v1605 = vunpack.c.l.b16 %v1587
      %v1606 = vunpack.c.l.b16 %v1588
      %v1607 = vunpack.c.l.b16 %v1589
      %v1608 = vunpack.c.l.b16 %v1590
      %v1609 = vunpack.c.l.b16 %v1591
      %v1610 = vpack.c.b16 %v1603, %v1602
      %v1611 = vpack.c.b16 %v1605, %v1604
      %v1612 = vpack.c.b16 %v1607, %v1606
      %v1613 = vpack.c.b16 %v1609, %v1608
      %v1615 = vsel %vm439, %v1610, 0
      %v1618 = vsel %vm439, %v1611, 0
      %v1621 = vsel %vm439, %v1612, 0
      %v1624 = vsel %vm439, %v1613, 0
      %v1627 = vsel %vm452, %v1593, 0
      %1629 = vmatpush.bf16.msra.mxu0 0
      %1630 = vmatpush.bf16.msra.mxu0 0
      %1631 = vmatpush.bf16.msra.mxu0 0
      %1632 = vmatpush.bf16.msra.mxu0 0
      %1633 = vmatpush.bf16.msra.mxu0 0
      %1634 = vmatpush.bf16.msra.mxu0 0
      %1635 = vmatpush.bf16.msra.mxu0 0
      %1636 = vmatpush.bf16.msra.mxu0 %v1627
      %1637 = vmatmul.bf16.gmra.mxu0 %v1615
      %v1638 = vpop.f32.mrf.mxu0
      %v1639 = vadd.f32 0.0, %v1638
      %v1640 = vpop.f32.mrf.mxu0
      %v1641 = vadd.f32 0.0, %v1640
      %1642 = vmatmul.bf16.gmra.mxu0 %v1618
      %v1643 = vpop.f32.mrf.mxu0
      %v1644 = vadd.f32 0.0, %v1643
      %v1645 = vpop.f32.mrf.mxu0
      %v1646 = vadd.f32 0.0, %v1645
      %1647 = vmatmul.bf16.gmra.mxu0 %v1621
      %v1648 = vpop.f32.mrf.mxu0
      %v1649 = vadd.f32 0.0, %v1648
      %v1650 = vpop.f32.mrf.mxu0
      %v1651 = vadd.f32 0.0, %v1650
      %1652 = vmatmul.bf16.gmra.mxu0 %v1624
      %v1653 = vpop.f32.mrf.mxu0
      %v1654 = vadd.f32 0.0, %v1653
      %v1655 = vpop.f32.mrf.mxu0
      %v1656 = vadd.f32 0.0, %v1655
      %1657 = vdwg.mxu0
      %v1658 = vadd.f32 %v1574, %v1639
      %v1659 = vadd.f32 %v1575, %v1641
      %v1660 = vadd.f32 %v1576, %v1644
      %v1661 = vadd.f32 %v1577, %v1646
      %v1662 = vadd.f32 %v1578, %v1649
      %v1663 = vadd.f32 %v1579, %v1651
      %v1664 = vadd.f32 %v1580, %v1654
      %v1665 = vadd.f32 %v1581, %v1656
      %v1666 = vld [vmem:[%s1499] sm:$0xf]
      %v1667 = vld [vmem:[%s1499 + $0x4] sm:$0x1]
      %v1668 = vld [vmem:[%s1499 + $0x8] sm:$0xf]
      %v1669 = vld [vmem:[%s1499 + $0xc] sm:$0x1]
      %v1670 = vld [vmem:[%s1499 + $0x10] sm:$0xf]
      %v1671 = vld [vmem:[%s1499 + $0x14] sm:$0x1]
      %v1672 = vld [vmem:[%s1499 + $0x18] sm:$0xf]
      %v1673 = vld [vmem:[%s1499 + $0x1c] sm:$0x1]
      %v1674 = vld [vmem:[%s1499 + $0x20] sm:$0xf]
      %v1675 = vld [vmem:[%s1499 + $0x24] sm:$0x1]
      %v1676 = vld [vmem:[%s1499 + $0x28] sm:$0xf]
      %v1677 = vld [vmem:[%s1499 + $0x2c] sm:$0x1]
      %v1678 = vld [vmem:[%s1499 + $0x30] sm:$0xf]
      %v1679 = vld [vmem:[%s1499 + $0x34] sm:$0x1]
      %v1680 = vld [vmem:[%s1499 + $0x38] sm:$0xf]
      %v1681 = vld [vmem:[%s1499 + $0x3c] sm:$0x1]
      %v1683 = vshrl.u32 %v1666, 16
      %v1685 = vrot.slane %v1683, 4
      %v1686 = vshll.u32 %v1666, 16
      %v1688 = vrot.slane %v1686, 5
      %v1689 = vor.u32 %v1685, %v1688
      %v1690 = vrot.slane %v1689, 4
      %v1692 = vshll.u32 %v1667, 16
      %v1694 = vrot.slane %v1692, 5
      %v1695 = vsel %vm567, %v1690, %v1694
      %v1697 = vshrl.u32 %v1668, 16
      %v1699 = vrot.slane %v1697, 4
      %v1700 = vshll.u32 %v1668, 16
      %v1702 = vrot.slane %v1700, 5
      %v1703 = vor.u32 %v1699, %v1702
      %v1704 = vrot.slane %v1703, 4
      %v1706 = vshll.u32 %v1669, 16
      %v1708 = vrot.slane %v1706, 5
      %v1709 = vsel %vm567, %v1704, %v1708
      %v1711 = vshrl.u32 %v1670, 16
      %v1713 = vrot.slane %v1711, 4
      %v1714 = vshll.u32 %v1670, 16
      %v1716 = vrot.slane %v1714, 5
      %v1717 = vor.u32 %v1713, %v1716
      %v1718 = vrot.slane %v1717, 4
      %v1720 = vshll.u32 %v1671, 16
      %v1722 = vrot.slane %v1720, 5
      %v1723 = vsel %vm567, %v1718, %v1722
      %v1725 = vshrl.u32 %v1672, 16
      %v1727 = vrot.slane %v1725, 4
      %v1728 = vshll.u32 %v1672, 16
      %v1730 = vrot.slane %v1728, 5
      %v1731 = vor.u32 %v1727, %v1730
      %v1732 = vrot.slane %v1731, 4
      %v1734 = vshll.u32 %v1673, 16
      %v1736 = vrot.slane %v1734, 5
      %v1737 = vsel %vm567, %v1732, %v1736
      %v1739 = vshrl.u32 %v1674, 16
      %v1741 = vrot.slane %v1739, 4
      %v1742 = vshll.u32 %v1674, 16
      %v1744 = vrot.slane %v1742, 5
      %v1745 = vor.u32 %v1741, %v1744
      %v1746 = vrot.slane %v1745, 4
      %v1748 = vshll.u32 %v1675, 16
      %v1750 = vrot.slane %v1748, 5
      %v1751 = vsel %vm567, %v1746, %v1750
      %v1753 = vshrl.u32 %v1676, 16
      %v1755 = vrot.slane %v1753, 4
      %v1756 = vshll.u32 %v1676, 16
      %v1758 = vrot.slane %v1756, 5
      %v1759 = vor.u32 %v1755, %v1758
      %v1760 = vrot.slane %v1759, 4
      %v1762 = vshll.u32 %v1677, 16
      %v1764 = vrot.slane %v1762, 5
      %v1765 = vsel %vm567, %v1760, %v1764
      %v1767 = vshrl.u32 %v1678, 16
      %v1769 = vrot.slane %v1767, 4
      %v1770 = vshll.u32 %v1678, 16
      %v1772 = vrot.slane %v1770, 5
      %v1773 = vor.u32 %v1769, %v1772
      %v1774 = vrot.slane %v1773, 4
      %v1776 = vshll.u32 %v1679, 16
      %v1778 = vrot.slane %v1776, 5
      %v1779 = vsel %vm567, %v1774, %v1778
      %v1781 = vshrl.u32 %v1680, 16
      %v1783 = vrot.slane %v1781, 4
      %v1784 = vshll.u32 %v1680, 16
      %v1786 = vrot.slane %v1784, 5
      %v1787 = vor.u32 %v1783, %v1786
      %v1788 = vrot.slane %v1787, 4
      %v1790 = vshll.u32 %v1681, 16
      %v1792 = vrot.slane %v1790, 5
      %v1793 = vsel %vm567, %v1788, %v1792
      %s1794 = scalar_lea.vmem %s4, 20
      %v1795 = vld [vmem:[%s1794] sm:$0x3]
      %v1796 = vunpack.c.l.b16 %v1695
      %v1797 = vunpack.c.l.b16 %v1709
      %v1798 = vunpack.c.l.b16 %v1723
      %v1799 = vunpack.c.l.b16 %v1737
      %v1800 = vunpack.c.l.b16 %v1751
      %v1801 = vunpack.c.l.b16 %v1765
      %v1802 = vunpack.c.l.b16 %v1779
      %v1803 = vunpack.c.l.b16 %v1793
      %v1804 = vpack.c.b16 %v1797, %v1796
      %v1805 = vpack.c.b16 %v1799, %v1798
      %v1806 = vpack.c.b16 %v1801, %v1800
      %v1807 = vpack.c.b16 %v1803, %v1802
      %v1809 = vsel %vm439, %v1804, 0
      %v1812 = vsel %vm439, %v1805, 0
      %v1815 = vsel %vm439, %v1806, 0
      %v1818 = vsel %vm439, %v1807, 0
      %v1821 = vsel %vm452, %v1795, 0
      %1823 = vmatpush.bf16.msra.mxu0 0
      %1824 = vmatpush.bf16.msra.mxu0 0
      %1825 = vmatpush.bf16.msra.mxu0 0
      %1826 = vmatpush.bf16.msra.mxu0 0
      %1827 = vmatpush.bf16.msra.mxu0 0
      %1828 = vmatpush.bf16.msra.mxu0 0
      %1829 = vmatpush.bf16.msra.mxu0 0
      %1830 = vmatpush.bf16.msra.mxu0 %v1821
      %1831 = vmatmul.bf16.gmra.mxu0 %v1809
      %v1832 = vpop.f32.mrf.mxu0
      %v1833 = vadd.f32 0.0, %v1832
      %v1834 = vpop.f32.mrf.mxu0
      %v1835 = vadd.f32 0.0, %v1834
      %1836 = vmatmul.bf16.gmra.mxu0 %v1812
      %v1837 = vpop.f32.mrf.mxu0
      %v1838 = vadd.f32 0.0, %v1837
      %v1839 = vpop.f32.mrf.mxu0
      %v1840 = vadd.f32 0.0, %v1839
      %1841 = vmatmul.bf16.gmra.mxu0 %v1815
      %v1842 = vpop.f32.mrf.mxu0
      %v1843 = vadd.f32 0.0, %v1842
      %v1844 = vpop.f32.mrf.mxu0
      %v1845 = vadd.f32 0.0, %v1844
      %1846 = vmatmul.bf16.gmra.mxu0 %v1818
      %v1847 = vpop.f32.mrf.mxu0
      %v1848 = vadd.f32 0.0, %v1847
      %v1849 = vpop.f32.mrf.mxu0
      %v1850 = vadd.f32 0.0, %v1849
      %1851 = vdwg.mxu0
      %v1852 = vadd.f32 %v1658, %v1833
      %v1853 = vadd.f32 %v1659, %v1835
      %v1854 = vadd.f32 %v1660, %v1838
      %v1855 = vadd.f32 %v1661, %v1840
      %v1856 = vadd.f32 %v1662, %v1843
      %v1857 = vadd.f32 %v1663, %v1845
      %v1858 = vadd.f32 %v1664, %v1848
      %v1859 = vadd.f32 %v1665, %v1850
      %v1860 = vld [vmem:[%s1583] sm:$0xf]
      %v1861 = vld [vmem:[%s1583 + $0x4] sm:$0x1]
      %v1862 = vld [vmem:[%s1583 + $0x8] sm:$0xf]
      %v1863 = vld [vmem:[%s1583 + $0xc] sm:$0x1]
      %v1864 = vld [vmem:[%s1583 + $0x10] sm:$0xf]
      %v1865 = vld [vmem:[%s1583 + $0x14] sm:$0x1]
      %v1866 = vld [vmem:[%s1583 + $0x18] sm:$0xf]
      %v1867 = vld [vmem:[%s1583 + $0x1c] sm:$0x1]
      %v1868 = vld [vmem:[%s1583 + $0x20] sm:$0xf]
      %v1869 = vld [vmem:[%s1583 + $0x24] sm:$0x1]
      %v1870 = vld [vmem:[%s1583 + $0x28] sm:$0xf]
      %v1871 = vld [vmem:[%s1583 + $0x2c] sm:$0x1]
      %v1872 = vld [vmem:[%s1583 + $0x30] sm:$0xf]
      %v1873 = vld [vmem:[%s1583 + $0x34] sm:$0x1]
      %v1874 = vld [vmem:[%s1583 + $0x38] sm:$0xf]
      %v1875 = vld [vmem:[%s1583 + $0x3c] sm:$0x1]
      %v1877 = vshrl.u32 %v1860, 16
      %v1879 = vrot.slane %v1877, 4
      %v1880 = vshll.u32 %v1860, 16
      %v1882 = vrot.slane %v1880, 5
      %v1883 = vor.u32 %v1879, %v1882
      %v1884 = vrot.slane %v1883, 4
      %v1886 = vshll.u32 %v1861, 16
      %v1888 = vrot.slane %v1886, 5
      %v1889 = vsel %vm567, %v1884, %v1888
      %v1891 = vshrl.u32 %v1862, 16
      %v1893 = vrot.slane %v1891, 4
      %v1894 = vshll.u32 %v1862, 16
      %v1896 = vrot.slane %v1894, 5
      %v1897 = vor.u32 %v1893, %v1896
      %v1898 = vrot.slane %v1897, 4
      %v1900 = vshll.u32 %v1863, 16
      %v1902 = vrot.slane %v1900, 5
      %v1903 = vsel %vm567, %v1898, %v1902
      %v1905 = vshrl.u32 %v1864, 16
      %v1907 = vrot.slane %v1905, 4
      %v1908 = vshll.u32 %v1864, 16
      %v1910 = vrot.slane %v1908, 5
      %v1911 = vor.u32 %v1907, %v1910
      %v1912 = vrot.slane %v1911, 4
      %v1914 = vshll.u32 %v1865, 16
      %v1916 = vrot.slane %v1914, 5
      %v1917 = vsel %vm567, %v1912, %v1916
      %v1919 = vshrl.u32 %v1866, 16
      %v1921 = vrot.slane %v1919, 4
      %v1922 = vshll.u32 %v1866, 16
      %v1924 = vrot.slane %v1922, 5
      %v1925 = vor.u32 %v1921, %v1924
      %v1926 = vrot.slane %v1925, 4
      %v1928 = vshll.u32 %v1867, 16
      %v1930 = vrot.slane %v1928, 5
      %v1931 = vsel %vm567, %v1926, %v1930
      %v1933 = vshrl.u32 %v1868, 16
      %v1935 = vrot.slane %v1933, 4
      %v1936 = vshll.u32 %v1868, 16
      %v1938 = vrot.slane %v1936, 5
      %v1939 = vor.u32 %v1935, %v1938
      %v1940 = vrot.slane %v1939, 4
      %v1942 = vshll.u32 %v1869, 16
      %v1944 = vrot.slane %v1942, 5
      %v1945 = vsel %vm567, %v1940, %v1944
      %v1947 = vshrl.u32 %v1870, 16
      %v1949 = vrot.slane %v1947, 4
      %v1950 = vshll.u32 %v1870, 16
      %v1952 = vrot.slane %v1950, 5
      %v1953 = vor.u32 %v1949, %v1952
      %v1954 = vrot.slane %v1953, 4
      %v1956 = vshll.u32 %v1871, 16
      %v1958 = vrot.slane %v1956, 5
      %v1959 = vsel %vm567, %v1954, %v1958
      %v1961 = vshrl.u32 %v1872, 16
      %v1963 = vrot.slane %v1961, 4
      %v1964 = vshll.u32 %v1872, 16
      %v1966 = vrot.slane %v1964, 5
      %v1967 = vor.u32 %v1963, %v1966
      %v1968 = vrot.slane %v1967, 4
      %v1970 = vshll.u32 %v1873, 16
      %v1972 = vrot.slane %v1970, 5
      %v1973 = vsel %vm567, %v1968, %v1972
      %v1975 = vshrl.u32 %v1874, 16
      %v1977 = vrot.slane %v1975, 4
      %v1978 = vshll.u32 %v1874, 16
      %v1980 = vrot.slane %v1978, 5
      %v1981 = vor.u32 %v1977, %v1980
      %v1982 = vrot.slane %v1981, 4
      %v1984 = vshll.u32 %v1875, 16
      %v1986 = vrot.slane %v1984, 5
      %v1987 = vsel %vm567, %v1982, %v1986
      %s1988 = scalar_lea.vmem %s4, 22
      %v1989 = vld [vmem:[%s1988] sm:$0x3]
      %v1990 = vunpack.c.l.b16 %v1889
      %v1991 = vunpack.c.l.b16 %v1903
      %v1992 = vunpack.c.l.b16 %v1917
      %v1993 = vunpack.c.l.b16 %v1931
      %v1994 = vunpack.c.l.b16 %v1945
      %v1995 = vunpack.c.l.b16 %v1959
      %v1996 = vunpack.c.l.b16 %v1973
      %v1997 = vunpack.c.l.b16 %v1987
      %v1998 = vpack.c.b16 %v1991, %v1990
      %v1999 = vpack.c.b16 %v1993, %v1992
      %v2000 = vpack.c.b16 %v1995, %v1994
      %v2001 = vpack.c.b16 %v1997, %v1996
      %v2003 = vsel %vm439, %v1998, 0
      %v2006 = vsel %vm439, %v1999, 0
      %v2009 = vsel %vm439, %v2000, 0
      %v2012 = vsel %vm439, %v2001, 0
      %v2015 = vsel %vm452, %v1989, 0
      %2017 = vmatpush.bf16.msra.mxu0 0
      %2018 = vmatpush.bf16.msra.mxu0 0
      %2019 = vmatpush.bf16.msra.mxu0 0
      %2020 = vmatpush.bf16.msra.mxu0 0
      %2021 = vmatpush.bf16.msra.mxu0 0
      %2022 = vmatpush.bf16.msra.mxu0 0
      %2023 = vmatpush.bf16.msra.mxu0 0
      %2024 = vmatpush.bf16.msra.mxu0 %v2015
      %2025 = vmatmul.bf16.gmra.mxu0 %v2003
      %v2026 = vpop.f32.mrf.mxu0
      %v2027 = vadd.f32 0.0, %v2026
      %v2028 = vpop.f32.mrf.mxu0
      %v2029 = vadd.f32 0.0, %v2028
      %2030 = vmatmul.bf16.gmra.mxu0 %v2006
      %v2031 = vpop.f32.mrf.mxu0
      %v2032 = vadd.f32 0.0, %v2031
      %v2033 = vpop.f32.mrf.mxu0
      %v2034 = vadd.f32 0.0, %v2033
      %2035 = vmatmul.bf16.gmra.mxu0 %v2009
      %v2036 = vpop.f32.mrf.mxu0
      %v2037 = vadd.f32 0.0, %v2036
      %v2038 = vpop.f32.mrf.mxu0
      %v2039 = vadd.f32 0.0, %v2038
      %2040 = vmatmul.bf16.gmra.mxu0 %v2012
      %v2041 = vpop.f32.mrf.mxu0
      %v2042 = vadd.f32 0.0, %v2041
      %v2043 = vpop.f32.mrf.mxu0
      %v2044 = vadd.f32 0.0, %v2043
      %2045 = vdwg.mxu0
      %v2046 = vadd.f32 %v1852, %v2027
      %v2047 = vadd.f32 %v1853, %v2029
      %v2048 = vadd.f32 %v1854, %v2032
      %v2049 = vadd.f32 %v1855, %v2034
      %v2050 = vadd.f32 %v1856, %v2037
      %v2051 = vadd.f32 %v1857, %v2039
      %v2052 = vadd.f32 %v1858, %v2042
      %v2053 = vadd.f32 %v1859, %v2044
      %s2054 = smul.addr %s1497, 4
      %s2055 = scalar_lea.vmem %s365, %s2054
      %v2056 = vld [vmem:[%s2055] sm:$0xf]
      %v2057 = vld [vmem:[%s2055 + $0x8] sm:$0xf]
      %v2058 = vld [vmem:[%s2055 + $0x10] sm:$0xf]
      %v2059 = vld [vmem:[%s2055 + $0x18] sm:$0xf]
      %v2060 = vld [vmem:[%s2055 + $0x20] sm:$0xf]
      %v2061 = vld [vmem:[%s2055 + $0x28] sm:$0xf]
      %v2062 = vld [vmem:[%s2055 + $0x30] sm:$0xf]
      %v2063 = vld [vmem:[%s2055 + $0x38] sm:$0xf]
      %s2064 = scalar_lea.vmem %s4, 24
      %v2065 = vld [vmem:[%s2064] sm:$0x3]
      %v2074 = vunpack.c.l.b16 %v2056
      %v2075 = vunpack.c.l.b16 %v2057
      %v2076 = vunpack.c.l.b16 %v2058
      %v2077 = vunpack.c.l.b16 %v2059
      %v2078 = vunpack.c.l.b16 %v2060
      %v2079 = vunpack.c.l.b16 %v2061
      %v2080 = vunpack.c.l.b16 %v2062
      %v2081 = vunpack.c.l.b16 %v2063
      %v2082 = vpack.c.b16 %v2075, %v2074
      %v2083 = vpack.c.b16 %v2077, %v2076
      %v2084 = vpack.c.b16 %v2079, %v2078
      %v2085 = vpack.c.b16 %v2081, %v2080
      %v2087 = vsel %vm439, %v2082, 0
      %v2090 = vsel %vm439, %v2083, 0
      %v2093 = vsel %vm439, %v2084, 0
      %v2096 = vsel %vm439, %v2085, 0
      %v2099 = vsel %vm452, %v2065, 0
      %2101 = vmatpush.bf16.msra.mxu0 0
      %2102 = vmatpush.bf16.msra.mxu0 0
      %2103 = vmatpush.bf16.msra.mxu0 0
      %2104 = vmatpush.bf16.msra.mxu0 0
      %2105 = vmatpush.bf16.msra.mxu0 0
      %2106 = vmatpush.bf16.msra.mxu0 0
      %2107 = vmatpush.bf16.msra.mxu0 0
      %2108 = vmatpush.bf16.msra.mxu0 %v2099
      %2109 = vmatmul.bf16.gmra.mxu0 %v2087
      %v2110 = vpop.f32.mrf.mxu0
      %v2111 = vadd.f32 0.0, %v2110
      %v2112 = vpop.f32.mrf.mxu0
      %v2113 = vadd.f32 0.0, %v2112
      %2114 = vmatmul.bf16.gmra.mxu0 %v2090
      %v2115 = vpop.f32.mrf.mxu0
      %v2116 = vadd.f32 0.0, %v2115
      %v2117 = vpop.f32.mrf.mxu0
      %v2118 = vadd.f32 0.0, %v2117
      %2119 = vmatmul.bf16.gmra.mxu0 %v2093
      %v2120 = vpop.f32.mrf.mxu0
      %v2121 = vadd.f32 0.0, %v2120
      %v2122 = vpop.f32.mrf.mxu0
      %v2123 = vadd.f32 0.0, %v2122
      %2124 = vmatmul.bf16.gmra.mxu0 %v2096
      %v2125 = vpop.f32.mrf.mxu0
      %v2126 = vadd.f32 0.0, %v2125
      %v2127 = vpop.f32.mrf.mxu0
      %v2128 = vadd.f32 0.0, %v2127
      %2129 = vdwg.mxu0
      %v2130 = vadd.f32 %v2046, %v2111
      %v2131 = vadd.f32 %v2047, %v2113
      %v2132 = vadd.f32 %v2048, %v2116
      %v2133 = vadd.f32 %v2049, %v2118
      %v2134 = vadd.f32 %v2050, %v2121
      %v2135 = vadd.f32 %v2051, %v2123
      %v2136 = vadd.f32 %v2052, %v2126
      %v2137 = vadd.f32 %v2053, %v2128
      %s2138 = smul.addr %s1497, 4
      %s2139 = scalar_lea.vmem %s370, %s2138
      %v2140 = vld [vmem:[%s2139] sm:$0xf]
      %v2141 = vld [vmem:[%s2139 + $0x8] sm:$0xf]
      %v2142 = vld [vmem:[%s2139 + $0x10] sm:$0xf]
      %v2143 = vld [vmem:[%s2139 + $0x18] sm:$0xf]
      %v2144 = vld [vmem:[%s2139 + $0x20] sm:$0xf]
      %v2145 = vld [vmem:[%s2139 + $0x28] sm:$0xf]
      %v2146 = vld [vmem:[%s2139 + $0x30] sm:$0xf]
      %v2147 = vld [vmem:[%s2139 + $0x38] sm:$0xf]
      %s2148 = scalar_lea.vmem %s4, 26
      %v2149 = vld [vmem:[%s2148] sm:$0x3]
      %v2158 = vunpack.c.l.b16 %v2140
      %v2159 = vunpack.c.l.b16 %v2141
      %v2160 = vunpack.c.l.b16 %v2142
      %v2161 = vunpack.c.l.b16 %v2143
      %v2162 = vunpack.c.l.b16 %v2144
      %v2163 = vunpack.c.l.b16 %v2145
      %v2164 = vunpack.c.l.b16 %v2146
      %v2165 = vunpack.c.l.b16 %v2147
      %v2166 = vpack.c.b16 %v2159, %v2158
      %v2167 = vpack.c.b16 %v2161, %v2160
      %v2168 = vpack.c.b16 %v2163, %v2162
      %v2169 = vpack.c.b16 %v2165, %v2164
      %v2171 = vsel %vm439, %v2166, 0
      %v2174 = vsel %vm439, %v2167, 0
      %v2177 = vsel %vm439, %v2168, 0
      %v2180 = vsel %vm439, %v2169, 0
      %v2183 = vsel %vm452, %v2149, 0
      %2185 = vmatpush.bf16.msra.mxu0 0
      %2186 = vmatpush.bf16.msra.mxu0 0
      %2187 = vmatpush.bf16.msra.mxu0 0
      %2188 = vmatpush.bf16.msra.mxu0 0
      %2189 = vmatpush.bf16.msra.mxu0 0
      %2190 = vmatpush.bf16.msra.mxu0 0
      %2191 = vmatpush.bf16.msra.mxu0 0
      %2192 = vmatpush.bf16.msra.mxu0 %v2183
      %2193 = vmatmul.bf16.gmra.mxu0 %v2171
      %v2194 = vpop.f32.mrf.mxu0
      %v2195 = vadd.f32 0.0, %v2194
      %v2196 = vpop.f32.mrf.mxu0
      %v2197 = vadd.f32 0.0, %v2196
      %2198 = vmatmul.bf16.gmra.mxu0 %v2174
      %v2199 = vpop.f32.mrf.mxu0
      %v2200 = vadd.f32 0.0, %v2199
      %v2201 = vpop.f32.mrf.mxu0
      %v2202 = vadd.f32 0.0, %v2201
      %2203 = vmatmul.bf16.gmra.mxu0 %v2177
      %v2204 = vpop.f32.mrf.mxu0
      %v2205 = vadd.f32 0.0, %v2204
      %v2206 = vpop.f32.mrf.mxu0
      %v2207 = vadd.f32 0.0, %v2206
      %2208 = vmatmul.bf16.gmra.mxu0 %v2180
      %v2209 = vpop.f32.mrf.mxu0
      %v2210 = vadd.f32 0.0, %v2209
      %v2211 = vpop.f32.mrf.mxu0
      %v2212 = vadd.f32 0.0, %v2211
      %2213 = vdwg.mxu0
      %v2214 = vadd.f32 %v2130, %v2195
      %v2215 = vadd.f32 %v2131, %v2197
      %v2216 = vadd.f32 %v2132, %v2200
      %v2217 = vadd.f32 %v2133, %v2202
      %v2218 = vadd.f32 %v2134, %v2205
      %v2219 = vadd.f32 %v2135, %v2207
      %v2220 = vadd.f32 %v2136, %v2210
      %v2221 = vadd.f32 %v2137, %v2212
      %v2222 = vld [vmem:[%s2055] sm:$0xf]
      %v2223 = vld [vmem:[%s2055 + $0x4] sm:$0x1]
      %v2224 = vld [vmem:[%s2055 + $0x8] sm:$0xf]
      %v2225 = vld [vmem:[%s2055 + $0xc] sm:$0x1]
      %v2226 = vld [vmem:[%s2055 + $0x10] sm:$0xf]
      %v2227 = vld [vmem:[%s2055 + $0x14] sm:$0x1]
      %v2228 = vld [vmem:[%s2055 + $0x18] sm:$0xf]
      %v2229 = vld [vmem:[%s2055 + $0x1c] sm:$0x1]
      %v2230 = vld [vmem:[%s2055 + $0x20] sm:$0xf]
      %v2231 = vld [vmem:[%s2055 + $0x24] sm:$0x1]
      %v2232 = vld [vmem:[%s2055 + $0x28] sm:$0xf]
      %v2233 = vld [vmem:[%s2055 + $0x2c] sm:$0x1]
      %v2234 = vld [vmem:[%s2055 + $0x30] sm:$0xf]
      %v2235 = vld [vmem:[%s2055 + $0x34] sm:$0x1]
      %v2236 = vld [vmem:[%s2055 + $0x38] sm:$0xf]
      %v2237 = vld [vmem:[%s2055 + $0x3c] sm:$0x1]
      %v2239 = vshrl.u32 %v2222, 16
      %v2241 = vrot.slane %v2239, 4
      %v2242 = vshll.u32 %v2222, 16
      %v2244 = vrot.slane %v2242, 5
      %v2245 = vor.u32 %v2241, %v2244
      %v2246 = vrot.slane %v2245, 4
      %v2248 = vshll.u32 %v2223, 16
      %v2250 = vrot.slane %v2248, 5
      %v2251 = vsel %vm567, %v2246, %v2250
      %v2253 = vshrl.u32 %v2224, 16
      %v2255 = vrot.slane %v2253, 4
      %v2256 = vshll.u32 %v2224, 16
      %v2258 = vrot.slane %v2256, 5
      %v2259 = vor.u32 %v2255, %v2258
      %v2260 = vrot.slane %v2259, 4
      %v2262 = vshll.u32 %v2225, 16
      %v2264 = vrot.slane %v2262, 5
      %v2265 = vsel %vm567, %v2260, %v2264
      %v2267 = vshrl.u32 %v2226, 16
      %v2269 = vrot.slane %v2267, 4
      %v2270 = vshll.u32 %v2226, 16
      %v2272 = vrot.slane %v2270, 5
      %v2273 = vor.u32 %v2269, %v2272
      %v2274 = vrot.slane %v2273, 4
      %v2276 = vshll.u32 %v2227, 16
      %v2278 = vrot.slane %v2276, 5
      %v2279 = vsel %vm567, %v2274, %v2278
      %v2281 = vshrl.u32 %v2228, 16
      %v2283 = vrot.slane %v2281, 4
      %v2284 = vshll.u32 %v2228, 16
      %v2286 = vrot.slane %v2284, 5
      %v2287 = vor.u32 %v2283, %v2286
      %v2288 = vrot.slane %v2287, 4
      %v2290 = vshll.u32 %v2229, 16
      %v2292 = vrot.slane %v2290, 5
      %v2293 = vsel %vm567, %v2288, %v2292
      %v2295 = vshrl.u32 %v2230, 16
      %v2297 = vrot.slane %v2295, 4
      %v2298 = vshll.u32 %v2230, 16
      %v2300 = vrot.slane %v2298, 5
      %v2301 = vor.u32 %v2297, %v2300
      %v2302 = vrot.slane %v2301, 4
      %v2304 = vshll.u32 %v2231, 16
      %v2306 = vrot.slane %v2304, 5
      %v2307 = vsel %vm567, %v2302, %v2306
      %v2309 = vshrl.u32 %v2232, 16
      %v2311 = vrot.slane %v2309, 4
      %v2312 = vshll.u32 %v2232, 16
      %v2314 = vrot.slane %v2312, 5
      %v2315 = vor.u32 %v2311, %v2314
      %v2316 = vrot.slane %v2315, 4
      %v2318 = vshll.u32 %v2233, 16
      %v2320 = vrot.slane %v2318, 5
      %v2321 = vsel %vm567, %v2316, %v2320
      %v2323 = vshrl.u32 %v2234, 16
      %v2325 = vrot.slane %v2323, 4
      %v2326 = vshll.u32 %v2234, 16
      %v2328 = vrot.slane %v2326, 5
      %v2329 = vor.u32 %v2325, %v2328
      %v2330 = vrot.slane %v2329, 4
      %v2332 = vshll.u32 %v2235, 16
      %v2334 = vrot.slane %v2332, 5
      %v2335 = vsel %vm567, %v2330, %v2334
      %v2337 = vshrl.u32 %v2236, 16
      %v2339 = vrot.slane %v2337, 4
      %v2340 = vshll.u32 %v2236, 16
      %v2342 = vrot.slane %v2340, 5
      %v2343 = vor.u32 %v2339, %v2342
      %v2344 = vrot.slane %v2343, 4
      %v2346 = vshll.u32 %v2237, 16
      %v2348 = vrot.slane %v2346, 5
      %v2349 = vsel %vm567, %v2344, %v2348
      %s2350 = scalar_lea.vmem %s4, 28
      %v2351 = vld [vmem:[%s2350] sm:$0x3]
      %v2352 = vunpack.c.l.b16 %v2251
      %v2353 = vunpack.c.l.b16 %v2265
      %v2354 = vunpack.c.l.b16 %v2279
      %v2355 = vunpack.c.l.b16 %v2293
      %v2356 = vunpack.c.l.b16 %v2307
      %v2357 = vunpack.c.l.b16 %v2321
      %v2358 = vunpack.c.l.b16 %v2335
      %v2359 = vunpack.c.l.b16 %v2349
      %v2360 = vpack.c.b16 %v2353, %v2352
      %v2361 = vpack.c.b16 %v2355, %v2354
      %v2362 = vpack.c.b16 %v2357, %v2356
      %v2363 = vpack.c.b16 %v2359, %v2358
      %v2365 = vsel %vm439, %v2360, 0
      %v2368 = vsel %vm439, %v2361, 0
      %v2371 = vsel %vm439, %v2362, 0
      %v2374 = vsel %vm439, %v2363, 0
      %v2377 = vsel %vm452, %v2351, 0
      %2379 = vmatpush.bf16.msra.mxu0 0
      %2380 = vmatpush.bf16.msra.mxu0 0
      %2381 = vmatpush.bf16.msra.mxu0 0
      %2382 = vmatpush.bf16.msra.mxu0 0
      %2383 = vmatpush.bf16.msra.mxu0 0
      %2384 = vmatpush.bf16.msra.mxu0 0
      %2385 = vmatpush.bf16.msra.mxu0 0
      %2386 = vmatpush.bf16.msra.mxu0 %v2377
      %2387 = vmatmul.bf16.gmra.mxu0 %v2365
      %v2388 = vpop.f32.mrf.mxu0
      %v2389 = vadd.f32 0.0, %v2388
      %v2390 = vpop.f32.mrf.mxu0
      %v2391 = vadd.f32 0.0, %v2390
      %2392 = vmatmul.bf16.gmra.mxu0 %v2368
      %v2393 = vpop.f32.mrf.mxu0
      %v2394 = vadd.f32 0.0, %v2393
      %v2395 = vpop.f32.mrf.mxu0
      %v2396 = vadd.f32 0.0, %v2395
      %2397 = vmatmul.bf16.gmra.mxu0 %v2371
      %v2398 = vpop.f32.mrf.mxu0
      %v2399 = vadd.f32 0.0, %v2398
      %v2400 = vpop.f32.mrf.mxu0
      %v2401 = vadd.f32 0.0, %v2400
      %2402 = vmatmul.bf16.gmra.mxu0 %v2374
      %v2403 = vpop.f32.mrf.mxu0
      %v2404 = vadd.f32 0.0, %v2403
      %v2405 = vpop.f32.mrf.mxu0
      %v2406 = vadd.f32 0.0, %v2405
      %2407 = vdwg.mxu0
      %v2408 = vadd.f32 %v2214, %v2389
      %v2409 = vadd.f32 %v2215, %v2391
      %v2410 = vadd.f32 %v2216, %v2394
      %v2411 = vadd.f32 %v2217, %v2396
      %v2412 = vadd.f32 %v2218, %v2399
      %v2413 = vadd.f32 %v2219, %v2401
      %v2414 = vadd.f32 %v2220, %v2404
      %v2415 = vadd.f32 %v2221, %v2406
      %v2416 = vld [vmem:[%s2139] sm:$0xf]
      %v2417 = vld [vmem:[%s2139 + $0x4] sm:$0x1]
      %v2418 = vld [vmem:[%s2139 + $0x8] sm:$0xf]
      %v2419 = vld [vmem:[%s2139 + $0xc] sm:$0x1]
      %v2420 = vld [vmem:[%s2139 + $0x10] sm:$0xf]
      %v2421 = vld [vmem:[%s2139 + $0x14] sm:$0x1]
      %v2422 = vld [vmem:[%s2139 + $0x18] sm:$0xf]
      %v2423 = vld [vmem:[%s2139 + $0x1c] sm:$0x1]
      %v2424 = vld [vmem:[%s2139 + $0x20] sm:$0xf]
      %v2425 = vld [vmem:[%s2139 + $0x24] sm:$0x1]
      %v2426 = vld [vmem:[%s2139 + $0x28] sm:$0xf]
      %v2427 = vld [vmem:[%s2139 + $0x2c] sm:$0x1]
      %v2428 = vld [vmem:[%s2139 + $0x30] sm:$0xf]
      %v2429 = vld [vmem:[%s2139 + $0x34] sm:$0x1]
      %v2430 = vld [vmem:[%s2139 + $0x38] sm:$0xf]
      %v2431 = vld [vmem:[%s2139 + $0x3c] sm:$0x1]
      %v2433 = vshrl.u32 %v2416, 16
      %v2435 = vrot.slane %v2433, 4
      %v2436 = vshll.u32 %v2416, 16
      %v2438 = vrot.slane %v2436, 5
      %v2439 = vor.u32 %v2435, %v2438
      %v2440 = vrot.slane %v2439, 4
      %v2442 = vshll.u32 %v2417, 16
      %v2444 = vrot.slane %v2442, 5
      %v2445 = vsel %vm567, %v2440, %v2444
      %v2447 = vshrl.u32 %v2418, 16
      %v2449 = vrot.slane %v2447, 4
      %v2450 = vshll.u32 %v2418, 16
      %v2452 = vrot.slane %v2450, 5
      %v2453 = vor.u32 %v2449, %v2452
      %v2454 = vrot.slane %v2453, 4
      %v2456 = vshll.u32 %v2419, 16
      %v2458 = vrot.slane %v2456, 5
      %v2459 = vsel %vm567, %v2454, %v2458
      %v2461 = vshrl.u32 %v2420, 16
      %v2463 = vrot.slane %v2461, 4
      %v2464 = vshll.u32 %v2420, 16
      %v2466 = vrot.slane %v2464, 5
      %v2467 = vor.u32 %v2463, %v2466
      %v2468 = vrot.slane %v2467, 4
      %v2470 = vshll.u32 %v2421, 16
      %v2472 = vrot.slane %v2470, 5
      %v2473 = vsel %vm567, %v2468, %v2472
      %v2475 = vshrl.u32 %v2422, 16
      %v2477 = vrot.slane %v2475, 4
      %v2478 = vshll.u32 %v2422, 16
      %v2480 = vrot.slane %v2478, 5
      %v2481 = vor.u32 %v2477, %v2480
      %v2482 = vrot.slane %v2481, 4
      %v2484 = vshll.u32 %v2423, 16
      %v2486 = vrot.slane %v2484, 5
      %v2487 = vsel %vm567, %v2482, %v2486
      %v2489 = vshrl.u32 %v2424, 16
      %v2491 = vrot.slane %v2489, 4
      %v2492 = vshll.u32 %v2424, 16
      %v2494 = vrot.slane %v2492, 5
      %v2495 = vor.u32 %v2491, %v2494
      %v2496 = vrot.slane %v2495, 4
      %v2498 = vshll.u32 %v2425, 16
      %v2500 = vrot.slane %v2498, 5
      %v2501 = vsel %vm567, %v2496, %v2500
      %v2503 = vshrl.u32 %v2426, 16
      %v2505 = vrot.slane %v2503, 4
      %v2506 = vshll.u32 %v2426, 16
      %v2508 = vrot.slane %v2506, 5
      %v2509 = vor.u32 %v2505, %v2508
      %v2510 = vrot.slane %v2509, 4
      %v2512 = vshll.u32 %v2427, 16
      %v2514 = vrot.slane %v2512, 5
      %v2515 = vsel %vm567, %v2510, %v2514
      %v2517 = vshrl.u32 %v2428, 16
      %v2519 = vrot.slane %v2517, 4
      %v2520 = vshll.u32 %v2428, 16
      %v2522 = vrot.slane %v2520, 5
      %v2523 = vor.u32 %v2519, %v2522
      %v2524 = vrot.slane %v2523, 4
      %v2526 = vshll.u32 %v2429, 16
      %v2528 = vrot.slane %v2526, 5
      %v2529 = vsel %vm567, %v2524, %v2528
      %v2531 = vshrl.u32 %v2430, 16
      %v2533 = vrot.slane %v2531, 4
      %v2534 = vshll.u32 %v2430, 16
      %v2536 = vrot.slane %v2534, 5
      %v2537 = vor.u32 %v2533, %v2536
      %v2538 = vrot.slane %v2537, 4
      %v2540 = vshll.u32 %v2431, 16
      %v2542 = vrot.slane %v2540, 5
      %v2543 = vsel %vm567, %v2538, %v2542
      %s2544 = scalar_lea.vmem %s4, 30
      %v2545 = vld [vmem:[%s2544] sm:$0x3]
      %v2546 = vunpack.c.l.b16 %v2445
      %v2547 = vunpack.c.l.b16 %v2459
      %v2548 = vunpack.c.l.b16 %v2473
      %v2549 = vunpack.c.l.b16 %v2487
      %v2550 = vunpack.c.l.b16 %v2501
      %v2551 = vunpack.c.l.b16 %v2515
      %v2552 = vunpack.c.l.b16 %v2529
      %v2553 = vunpack.c.l.b16 %v2543
      %v2554 = vpack.c.b16 %v2547, %v2546
      %v2555 = vpack.c.b16 %v2549, %v2548
      %v2556 = vpack.c.b16 %v2551, %v2550
      %v2557 = vpack.c.b16 %v2553, %v2552
      %v2559 = vsel %vm439, %v2554, 0
      %v2562 = vsel %vm439, %v2555, 0
      %v2565 = vsel %vm439, %v2556, 0
      %v2568 = vsel %vm439, %v2557, 0
      %v2571 = vsel %vm452, %v2545, 0
      %2573 = vmatpush.bf16.msra.mxu0 0
      %2574 = vmatpush.bf16.msra.mxu0 0
      %2575 = vmatpush.bf16.msra.mxu0 0
      %2576 = vmatpush.bf16.msra.mxu0 0
      %2577 = vmatpush.bf16.msra.mxu0 0
      %2578 = vmatpush.bf16.msra.mxu0 0
      %2579 = vmatpush.bf16.msra.mxu0 0
      %2580 = vmatpush.bf16.msra.mxu0 %v2571
      %2581 = vmatmul.bf16.gmra.mxu0 %v2559
      %v2582 = vpop.f32.mrf.mxu0
      %v2583 = vadd.f32 0.0, %v2582
      %v2584 = vpop.f32.mrf.mxu0
      %v2585 = vadd.f32 0.0, %v2584
      %2586 = vmatmul.bf16.gmra.mxu0 %v2562
      %v2587 = vpop.f32.mrf.mxu0
      %v2588 = vadd.f32 0.0, %v2587
      %v2589 = vpop.f32.mrf.mxu0
      %v2590 = vadd.f32 0.0, %v2589
      %2591 = vmatmul.bf16.gmra.mxu0 %v2565
      %v2592 = vpop.f32.mrf.mxu0
      %v2593 = vadd.f32 0.0, %v2592
      %v2594 = vpop.f32.mrf.mxu0
      %v2595 = vadd.f32 0.0, %v2594
      %2596 = vmatmul.bf16.gmra.mxu0 %v2568
      %v2597 = vpop.f32.mrf.mxu0
      %v2598 = vadd.f32 0.0, %v2597
      %v2599 = vpop.f32.mrf.mxu0
      %v2600 = vadd.f32 0.0, %v2599
      %2601 = vdwg.mxu0
      %v2602 = vadd.f32 %v2408, %v2583
      %v2603 = vadd.f32 %v2409, %v2585
      %v2604 = vadd.f32 %v2410, %v2588
      %v2605 = vadd.f32 %v2411, %v2590
      %v2606 = vadd.f32 %v2412, %v2593
      %v2607 = vadd.f32 %v2413, %v2595
      %v2608 = vadd.f32 %v2414, %v2598
      %v2609 = vadd.f32 %v2415, %v2600
      %v2610 = vpack.c.bf16 %v2602, %v2602
      %v2611 = vpack.c.bf16 %v2603, %v2603
      %v2612 = vpack.c.bf16 %v2604, %v2604
      %v2613 = vpack.c.bf16 %v2605, %v2605
      %v2614 = vpack.c.bf16 %v2606, %v2606
      %v2615 = vpack.c.bf16 %v2607, %v2607
      %v2616 = vpack.c.bf16 %v2608, %v2608
      %v2617 = vpack.c.bf16 %v2609, %v2609
      %2618 = vst [vmem:[%s379] sm:$0xf] %v2610
      %2619 = vst [vmem:[%s379 + $0x4] sm:$0xf] %v2611
      %2620 = vst [vmem:[%s379 + $0x8] sm:$0xf] %v2612
      %2621 = vst [vmem:[%s379 + $0xc] sm:$0xf] %v2613
      %2622 = vst [vmem:[%s379 + $0x10] sm:$0xf] %v2614
      %2623 = vst [vmem:[%s379 + $0x14] sm:$0xf] %v2615
      %2624 = vst [vmem:[%s379 + $0x18] sm:$0xf] %v2616
      %2625 = vst [vmem:[%s379 + $0x1c] sm:$0xf] %v2617
      %v2626 = vadd.f32 %v2602, %v2603
      %v2627 = vadd.f32 %v2626, %v2604
      %v2628 = vadd.f32 %v2627, %v2605
      %v2629 = vadd.f32 %v2628, %v2606
      %v2630 = vadd.f32 %v2629, %v2607
      %v2631 = vadd.f32 %v2630, %v2608
      %v2632 = vadd.f32 %v2631, %v2609
      %v2633 = vrot.slane %v2632, 4
      %v2634 = vadd.f32 %v2632, %v2633
      %v2635 = vrot.slane %v2634, 2
      %v2636 = vadd.f32 %v2634, %v2635
      %v2637 = vrot.slane %v2636, 1
      %v2638 = vadd.f32 %v2636, %v2637
      %v2639 = vrcp.pop 64.0
      %v2640 = vmul.f32 64.0, %v2639
      %v2641 = vsub.f32 1.0, %v2640
      %v2642 = vmul.f32 %v2639, %v2641
      %v2643 = vadd.f32 %v2639, %v2642
      %vm2644 = vweird.f32 %v2639
      %v2645 = vsel %vm2644, %v2639, %v2643
      %v2646 = vmul.f32 %v2638, %v2645
      %v2647 = vsub.f32 %v2602, %v2646
      %v2648 = vsub.f32 %v2603, %v2646
      %v2649 = vsub.f32 %v2604, %v2646
      %v2650 = vsub.f32 %v2605, %v2646
      %v2651 = vsub.f32 %v2606, %v2646
      %v2652 = vsub.f32 %v2607, %v2646
      %v2653 = vsub.f32 %v2608, %v2646
      %v2654 = vsub.f32 %v2609, %v2646
      %v2655 = vmul.f32 %v2647, %v2647
      %v2656 = vmul.f32 %v2648, %v2648
      %v2657 = vmul.f32 %v2649, %v2649
      %v2658 = vmul.f32 %v2650, %v2650
      %v2659 = vmul.f32 %v2651, %v2651
      %v2660 = vmul.f32 %v2652, %v2652
      %v2661 = vmul.f32 %v2653, %v2653
      %v2662 = vmul.f32 %v2654, %v2654
      %v2663 = vadd.f32 %v2655, %v2656
      %v2664 = vadd.f32 %v2663, %v2657
      %v2665 = vadd.f32 %v2664, %v2658
      %v2666 = vadd.f32 %v2665, %v2659
      %v2667 = vadd.f32 %v2666, %v2660
      %v2668 = vadd.f32 %v2667, %v2661
      %v2669 = vadd.f32 %v2668, %v2662
      %v2670 = vrot.slane %v2669, 4
      %v2671 = vadd.f32 %v2669, %v2670
      %v2672 = vrot.slane %v2671, 2
      %v2673 = vadd.f32 %v2671, %v2672
      %v2674 = vrot.slane %v2673, 1
      %v2675 = vadd.f32 %v2673, %v2674
      %2676 = vst [vmem:[%s385] sm:$0xff] %v2638
      %2677 = vst [vmem:[%s391] sm:$0xff] %v2675
      %s2678 = smul.u32 8, %s24
      %p2679 = scmp.lt.s32.totalorder %s23, 1
      %s2680 = scalar_select %p2679, %s23, 1
      %p2681 = scmp.lt.s32.totalorder %s2678, 7
      %s2682 = scalar_select %p2681, %s2678, 7
      %s2683 = smul.addr %s2680, 8
      %s2684 = sadd.s32 %s2682, %s2683
      %s2685 = smul.addr %s2684, 4
      %s2686 = scalar_lea.vmem %s5, %s2685
      %s2687 = sadd.s32 %s23, %s24
      %p2688 = scmp.lt.s32.totalorder %s2687, 1
      %s2689 = scalar_select %p2688, %s2687, 1
      %s2690 = smul.addr %s2689, 8
      %s2691 = scalar_lea.vmem %s6, %s2690
      %s2692 = sadd.s32 %s23, %s24
      %p2693 = scmp.lt.s32.totalorder %s2692, 1
      %s2694 = scalar_select %p2693, %s2692, 1
      %s2695 = smul.addr %s2694, 8
      %s2696 = scalar_lea.vmem %s7, %s2695
      // Predicated region
      $region41: #{block_forward.2} parent=39 // pred_check
        %p2697 = pneg %p176
      $region42: #{block_forward.2} parent=39 // pred_check_branch
        %2699 = sbr.rel (%p2697) target = $region44
      $region43: #{block_forward.2} parent=39 // pred_region
        %s2700 = smul.u32 8, %s24
      $region44: #{block_forward.2} parent=39 // pred_fallthru
        _
      // Predicated region
      $region45: #{block_forward.2} parent=39 // pred_check
        %p2701 = pneg %p204
      $region46: #{block_forward.2} parent=39 // pred_check_branch
        %2703 = sbr.rel (%p2701) target = $region48
      $region47: #{block_forward.2} parent=39 // pred_region
        %s2704 = sadd.s32 %s23, %s24
      $region48: #{block_forward.2} parent=39 // pred_fallthru
        _
      // Predicated region
      $region49: #{block_forward.2} parent=39 // pred_check
        %p2705 = pneg %p232
      $region50: #{block_forward.2} parent=39 // pred_check_branch
        %2707 = sbr.rel (%p2705) target = $region52
      $region51: #{block_forward.2} parent=39 // pred_region
        %s2708 = sadd.s32 %s23, %s24
      $region52: #{block_forward.2} parent=39 // pred_fallthru
        _
    $region40: #{block_forward.2} parent=5 // pred_fallthru
      _
    %p2709 = scmp.le.s32.totalorder 2, %s14
    // Predicated region
    $region53: #{block_forward.2} parent=5 // pred_check
      %p2710 = pneg %p2709
    $region54: #{block_forward.2} parent=5 // pred_check_branch
      %2712 = sbr.rel (%p2710) target = $region56
    $region55: #{block_forward.2} parent=5 // pred_region
      %s2713 = ssub.s32 %s14, 2
      // Predicated region
      $region57: #{block_forward.2} parent=55 // pred_check
        %p2714 = pneg %p182
      $region58: #{block_forward.2} parent=55 // pred_check_branch
        %2716 = sbr.rel (%p2714) target = $region60
      $region59: #{block_forward.2} parent=55 // pred_region
        %s2717 = smul.u32 8, %s26
        %p2718 = scmp.lt.s32.totalorder %s25, 1
        %s2719 = scalar_select %p2718, %s25, 1
        %p2720 = scmp.lt.s32.totalorder %s2717, 7
        %s2721 = scalar_select %p2720, %s2717, 7
        %s2722 = smul.addr %s2719, 8
        %s2723 = sadd.s32 %s2721, %s2722
        %s2724 = smul.addr %s2723, 4
        %s2725 = scalar_lea.vmem %s5, %s2724
      $region60: #{block_forward.2} parent=55 // pred_fallthru
        _
      // Predicated region
      $region61: #{block_forward.2} parent=55 // pred_check
        %p2726 = pneg %p210
      $region62: #{block_forward.2} parent=55 // pred_check_branch
        %2728 = sbr.rel (%p2726) target = $region64
      $region63: #{block_forward.2} parent=55 // pred_region
        %s2729 = sadd.s32 %s25, %s26
        %p2730 = scmp.lt.s32.totalorder %s2729, 1
        %s2731 = scalar_select %p2730, %s2729, 1
        %s2732 = smul.addr %s2731, 8
        %s2733 = scalar_lea.vmem %s6, %s2732
      $region64: #{block_forward.2} parent=55 // pred_fallthru
        _
      // Predicated region
      $region65: #{block_forward.2} parent=55 // pred_check
        %p2734 = pneg %p238
      $region66: #{block_forward.2} parent=55 // pred_check_branch
        %2736 = sbr.rel (%p2734) target = $region68
      $region67: #{block_forward.2} parent=55 // pred_region
        %s2737 = sadd.s32 %s25, %s26
        %p2738 = scmp.lt.s32.totalorder %s2737, 1
        %s2739 = scalar_select %p2738, %s2737, 1
        %s2740 = smul.addr %s2739, 8
        %s2741 = scalar_lea.vmem %s7, %s2740
      $region68: #{block_forward.2} parent=55 // pred_fallthru
        _
    $region56: #{block_forward.2} parent=5 // pred_fallthru
      _
  $region6: #{block_forward.2} parent=0 // loop_footer
    %s18 = sadd.s32 1, %s14
  $region7: #{block_forward.2} parent=0 // loop_footer_branch
    %13 = sbr.rel target = $region3
  $region8: #{block_forward.2} parent=0 // loop_exit
    _

</llo_original>
